<compile_context>
chip_gen: v6e
topology: v6e:2x2x1
jax: 0.10.0
libtpu: 0.0.40
codegen_flags: <defaults>
</compile_context>

<pallas_src>
import jax
import jax.numpy as jnp
from jax.experimental import pallas as pl
from jax.experimental.pallas import tpu as pltpu


def _round_up(x: int, m: int) -> int:
    return (x + m - 1) // m * m


def _round_down(x: int, m: int) -> int:
    return (x // m) * m


def _cdiv(a: int, b: int) -> int:
    return (a + b - 1) // b


def _tpu_config():
    """(vmem_capacity, vmem_limit_bytes, default tile_m) — generation aware."""
    vmem_cap = 64 * 1024 * 1024          # conservative default (v7x-sized VMEM)
    try:
        info = pltpu.get_tpu_info()
        cap = getattr(info, "vmem_capacity_bytes", None)
        if cap:
            vmem_cap = int(cap)
    except Exception:
        pass
    vmem_limit = min((vmem_cap * 3) // 4, 96 * 1024 * 1024)
    # 128 MiB-VMEM chips (v5e/v6e) get bigger M tiles than 64 MiB v7x.
    tile_m = 2048 if vmem_cap >= 100 * 1024 * 1024 else 1024
    return vmem_cap, vmem_limit, tile_m


def prepare_conv_weights(weight, bias, mxu_dtype=jnp.bfloat16):
    """OIHW weight -> ((KH*KW*Cin, Cout_pad) MXU matrix, (1, Cout_pad) f32 bias).

    Row ordering is (kh, kw, cin) minor — it must match the patch/offset
    ordering used by both the fused kernel and the im2col fallback.
    """
    Cout, Cin, KH, KW = weight.shape
    K = KH * KW * Cin
    Cout_pad = _round_up(Cout, 128)      # lane-dense output (unmasked vst)
    w_mat = jnp.transpose(weight, (2, 3, 1, 0)).reshape(K, Cout)
    w_mat = jnp.pad(w_mat, ((0, 0), (0, Cout_pad - Cout)))
    b_mat = jnp.pad(bias, (0, Cout_pad - Cout)).reshape(1, Cout_pad)
    dt = mxu_dtype if mxu_dtype is not None else weight.dtype
    return w_mat.astype(dt), b_mat.astype(jnp.float32)


# ---------------------------------------------------------------------------
# Fused (in-VMEM im2col) stride-1 path
# ---------------------------------------------------------------------------

def _make_fused_kernel(tm, cin, offsets):
    """Kernel: build the patch tile in VMEM from two adjacent row blocks,
    then one MXU GEMM + bias + ReLU written directly to the output block."""

    def kernel(xa_ref, xb_ref, w_ref, b_ref, o_ref, xp_ref):
        # In-VMEM im2col: static shifted copies (no HBM patch buffer).
        for t, d in enumerate(offsets):
            cs = slice(t * cin, (t + 1) * cin)
            if d == 0:
                xp_ref[:, cs] = xa_ref[...]
            else:
                xp_ref[0:tm - d, cs] = xa_ref[d:tm, :]
                xp_ref[tm - d:tm, cs] = xb_ref[0:d, :]
        # Single MXU dot over the fused K = KH*KW*Cin axis (f32 accumulate),
        # bias + ReLU epilogue, direct lane-dense store (no scratch acc).
        acc = jnp.dot(xp_ref[...], w_ref[...], preferred_element_type=jnp.float32)
        o_ref[...] = jnp.maximum(acc + b_ref[...], 0.0).astype(o_ref.dtype)

    return kernel


def _fused_conv_relu_nhwc(x_nhwc, w_mat, b_mat, KH, KW, padding, out_dtype, cfg):
    """stride-1 conv+ReLU.  x_nhwc already in MXU dtype.

    Returns (N, Ho, Wo, Cout_pad) or None if the working set does not fit the
    VMEM budget (caller then falls back to the im2col GEMM path)."""
    N, H, W, Cin = x_nhwc.shape
    Hp, Wp = H + 2 * padding, W + 2 * padding
    Ho, Wo = Hp - KH + 1, Wp - KW + 1
    K, Cout_pad = w_mat.shape
    assert K == KH * KW * Cin

    _, vmem_limit, tm_cfg = cfg
    in_b = jnp.dtype(x_nhwc.dtype).itemsize
    out_b = jnp.dtype(out_dtype).itemsize

    halo = (KH - 1) * Wp + (KW - 1)      # max row shift of any tap
    M_out = N * Hp * Wp                  # compute the full padded extent
                                         # (garbage rows/cols sliced off below)

    # VMEM working set per output-row of a tile:
    #   xa+xb double-buffered + in-VMEM patch tile + double-buffered output.
    per_row = 4 * Cin * in_b + K * in_b + 2 * Cout_pad * out_b
    fixed = 2 * K * Cout_pad * in_b + 4 * Cout_pad * 4     # weights + bias
    budget = int(vmem_limit * 0.55)
    tm_max = (budget - fixed) // per_row if budget > fixed else 0
    tm = min(tm_cfg, tm_max, _round_up(M_out, 256))
    tm = _round_down(tm, 256)            # MXU-aligned (256 | tm ⇒ 128 | tm)
    if tm < 256 or tm < halo:
        return None                      # fused window does not fit — fall back

    m_tiles = _cdiv(M_out, tm)
    M_pad = m_tiles * tm

    if padding:
        x_nhwc = jnp.pad(
            x_nhwc, ((0, 0), (padding, padding), (padding, padding), (0, 0)))
    x_flat = x_nhwc.reshape(N * Hp * Wp, Cin)        # free reshape of NHWC
    # Tail zero rows: back the "next block" fetch of the last tile and keep
    # the (discarded) garbage windows in-bounds.  This pads < 2*tm rows of the
    # 1x activation — NOT the old 9x patch buffer.
    x_flat = jnp.pad(x_flat, ((0, M_pad + tm - M_out), (0, 0)))

    offsets = [kh * Wp + kw for kh in range(KH) for kw in range(KW)]
    kernel = _make_fused_kernel(tm, Cin, offsets)

    cost = pl.CostEstimate(
        flops=2 * M_pad * K * Cout_pad,
        transcendentals=0,
        bytes_accessed=2 * (M_pad + tm) * Cin * in_b
                       + K * Cout_pad * in_b
                       + M_pad * Cout_pad * out_b)

    out_flat = pl.pallas_call(
        kernel,
        out_shape=jax.ShapeDtypeStruct((M_pad, Cout_pad), out_dtype),
        grid=(m_tiles,),
        in_specs=[
            pl.BlockSpec((tm, Cin), lambda i: (i, 0)),      # current row block
            pl.BlockSpec((tm, Cin), lambda i: (i + 1, 0)),  # next block (halo)
            pl.BlockSpec((K, Cout_pad), lambda i: (0, 0)),  # resident weights
            pl.BlockSpec((1, Cout_pad), lambda i: (0, 0)),  # resident bias
        ],
        out_specs=pl.BlockSpec((tm, Cout_pad), lambda i: (i, 0)),
        scratch_shapes=[pltpu.VMEM((tm, K), x_flat.dtype)],
        compiler_params=pltpu.CompilerParams(
            dimension_semantics=("parallel",),
            vmem_limit_bytes=vmem_limit),
        cost_estimate=cost,
    )(x_flat, x_flat, w_mat, b_mat)

    out = out_flat[:M_out].reshape(N, Hp, Wp, Cout_pad)[:, :Ho, :Wo, :]
    return out


# ---------------------------------------------------------------------------
# im2col GEMM fallback (stride != 1, or fused working set too large)
# ---------------------------------------------------------------------------

def _gemm_kernel_direct(p_ref, w_ref, b_ref, o_ref):
    # Single K step: no accumulator scratch, direct lane-dense write.
    acc = jnp.dot(p_ref[...], w_ref[...], preferred_element_type=jnp.float32)
    o_ref[...] = jnp.maximum(acc + b_ref[...], 0.0).astype(o_ref.dtype)


def _gemm_kernel_ktiled(p_ref, w_ref, b_ref, o_ref, acc_ref):
    k = pl.program_id(1)

    @pl.when(k == 0)
    def _init():
        acc_ref[...] = jnp.zeros_like(acc_ref)

    acc_ref[...] += jnp.dot(p_ref[...], w_ref[...],
                            preferred_element_type=jnp.float32)

    @pl.when(k == pl.num_programs(1) - 1)
    def _finalize():
        o_ref[...] = jnp.maximum(acc_ref[...] + b_ref[...], 0.0).astype(o_ref.dtype)


def _im2col(x_nhwc, KH, KW, Ho, Wo, stride):
    """(N, Hp, Wp, Cin) -> (N*Ho*Wo, KH*KW*Cin), (kh, kw, cin) minor ordering."""
    N = x_nhwc.shape[0]
    Cin = x_nhwc.shape[-1]
    taps = []
    for kh in range(KH):
        for kw in range(KW):
            taps.append(
                x_nhwc[:, kh:kh + (Ho - 1) * stride + 1:stride,
                          kw:kw + (Wo - 1) * stride + 1:stride, :])
    patches = jnp.stack(taps, axis=3)                 # (N, Ho, Wo, KH*KW, Cin)
    return patches.reshape(N * Ho * Wo, KH * KW * Cin)


def _gemm_conv_relu(patches, w_mat, b_mat, out_dtype, cfg, *,
                    tile_k=512, k_tile_threshold=2048):
    """relu(patches @ w_mat + b_mat) — fallback Pallas MXU GEMM."""
    M, K = patches.shape
    _, Cout_pad = w_mat.shape
    _, vmem_limit, tm_cfg = cfg
    in_b = jnp.dtype(patches.dtype).itemsize
    out_b = jnp.dtype(out_dtype).itemsize

    if K > k_tile_threshold:
        tk = tile_k
        Kp = _round_up(K, tk)
    else:
        tk, Kp = K, K
    n_k = Kp // tk

    # MXU-aligned M tile from the VMEM budget (no ">=2 tiles" halving).
    per_row = 2 * tk * in_b + 2 * Cout_pad * out_b + (Cout_pad * 4 if n_k > 1 else 0)
    fixed = 2 * tk * Cout_pad * in_b
    budget = int(vmem_limit * 0.55)
    tm_max = (budget - fixed) // per_row if budget > fixed else 256
    tm = min(tm_cfg, max(tm_max, 256), _round_up(M, 256))
    tm = max(256, _round_down(tm, 256))
    M_pad = _round_up(M, tm)

    if M_pad != M or Kp != K:
        patches = jnp.pad(patches, ((0, M_pad - M), (0, Kp - K)))
    if Kp != K:
        w_mat = jnp.pad(w_mat, ((0, Kp - K), (0, 0)))

    cost = pl.CostEstimate(
        flops=2 * M_pad * Kp * Cout_pad,
        transcendentals=0,
        bytes_accessed=(M_pad * Kp + (M_pad // tm) * Kp * Cout_pad) * in_b
                       + M_pad * Cout_pad * out_b)

    common = dict(
        out_shape=jax.ShapeDtypeStruct((M_pad, Cout_pad), out_dtype),
        compiler_params=pltpu.CompilerParams(
            dimension_semantics=("parallel",) if n_k == 1
            else ("parallel", "arbitrary"),
            vmem_limit_bytes=vmem_limit),
        cost_estimate=cost)

    if n_k == 1:
        return pl.pallas_call(
            _gemm_kernel_direct,
            grid=(M_pad // tm,),
            in_specs=[pl.BlockSpec((tm, K), lambda i: (i, 0)),
                      pl.BlockSpec((K, Cout_pad), lambda i: (0, 0)),
                      pl.BlockSpec((1, Cout_pad), lambda i: (0, 0))],
            out_specs=pl.BlockSpec((tm, Cout_pad), lambda i: (i, 0)),
            **common)(patches, w_mat, b_mat)

    return pl.pallas_call(
        _gemm_kernel_ktiled,
        grid=(M_pad // tm, n_k),
        in_specs=[pl.BlockSpec((tm, tk), lambda i, k: (i, k)),
                  pl.BlockSpec((tk, Cout_pad), lambda i, k: (k, 0)),
                  pl.BlockSpec((1, Cout_pad), lambda i, k: (0, 0))],
        out_specs=pl.BlockSpec((tm, Cout_pad), lambda i, k: (i, 0)),
        scratch_shapes=[pltpu.VMEM((tm, Cout_pad), jnp.float32)],
        **common)(patches, w_mat, b_mat)


# ---------------------------------------------------------------------------
# Layer-level wrappers
# ---------------------------------------------------------------------------

def conv_relu_nhwc(x_nhwc, w_mat, b_mat, KH, KW, stride, padding, *,
                   out_dtype=None, mxu_dtype=jnp.bfloat16, cfg=None):
    """relu(conv2d) with NHWC activations; returns (N, Ho, Wo, Cout_pad)."""
    if cfg is None:
        cfg = _tpu_config()
    if out_dtype is None:
        out_dtype = x_nhwc.dtype
    x_mxu = x_nhwc.astype(mxu_dtype) if mxu_dtype is not None else x_nhwc

    if stride == 1:
        out = _fused_conv_relu_nhwc(x_mxu, w_mat, b_mat, KH, KW, padding,
                                    out_dtype, cfg)
        if out is not None:
            return out

    # Fallback: strided conv (or oversized fused working set) -> im2col GEMM.
    N, H, W, _ = x_mxu.shape
    Ho = (H + 2 * padding - KH) // stride + 1
    Wo = (W + 2 * padding - KW) // stride + 1
    if padding:
        x_mxu = jnp.pad(
            x_mxu, ((0, 0), (padding, padding), (padding, padding), (0, 0)))
    patches = _im2col(x_mxu, KH, KW, Ho, Wo, stride)
    out = _gemm_conv_relu(patches, w_mat, b_mat, out_dtype, cfg)
    return out[:N * Ho * Wo].reshape(N, Ho, Wo, -1)


def _conv_relu_nchw(x, w_mat, b_mat, Cout, KH, KW, stride, padding, *,
                    mxu_dtype=jnp.bfloat16):
    # TODO(synk): a whole-model port would keep activations NHWC/bf16 between
    # layers (call conv_relu_nhwc directly) and drop these per-layer transposes.
    x_nhwc = jnp.transpose(x, (0, 2, 3, 1))
    out = conv_relu_nhwc(x_nhwc, w_mat, b_mat, KH, KW, stride, padding,
                         out_dtype=x.dtype, mxu_dtype=mxu_dtype)
    return jnp.transpose(out[..., :Cout], (0, 3, 1, 2))


def conv_relu_forward(x, weight, bias, stride=1, padding=0, *,
                      mxu_dtype=jnp.bfloat16):
    """PyTorch-semantics relu(conv2d(x)); x NCHW, weight OIHW, bias (Cout,)."""
    Cout, _, KH, KW = weight.shape
    w_mat, b_mat = prepare_conv_weights(weight, bias, mxu_dtype)
    return _conv_relu_nchw(x, w_mat, b_mat, Cout, KH, KW, stride, padding,
                           mxu_dtype=mxu_dtype)


class Conv:
    """Pallas equivalent of Squeezeseg.Conv: relu(Conv2d(inputs, outputs, ...))."""

    def __init__(self, inputs, outputs, kernel_size=3, stride=1, padding=0,
                 key=None, mxu_dtype=jnp.bfloat16):
        self.stride = stride
        self.padding = padding
        self.kernel_size = kernel_size
        self.outputs = outputs
        self.mxu_dtype = mxu_dtype
        if key is None:
            key = jax.random.PRNGKey(0)
        wkey, bkey = jax.random.split(key)
        fan_in = inputs * kernel_size * kernel_size
        bound = 1.0 / (fan_in ** 0.5)
        # Deterministic init mimicking nn.Conv2d default (uniform +/- 1/sqrt(fan_in)).
        self.weight = jax.random.uniform(
            wkey, (outputs, inputs, kernel_size, kernel_size),
            dtype=jnp.float32, minval=-bound, maxval=bound)
        self.bias = jax.random.uniform(
            bkey, (outputs,), dtype=jnp.float32, minval=-bound, maxval=bound)
        # Flatten / pad / cast weights once per model, not per call.
        self.w_mat, self.b_mat = prepare_conv_weights(
            self.weight, self.bias, mxu_dtype)

    def __call__(self, x):
        return _conv_relu_nchw(x, self.w_mat, self.b_mat, self.outputs,
                               self.kernel_size, self.kernel_size,
                               self.stride, self.padding,
                               mxu_dtype=self.mxu_dtype)


if __name__ == "__main__":
    key = jax.random.PRNGKey(0)
    kx, kp1, kp2 = jax.random.split(key, 3)

    N, Cin, H, W = 2, 4, 16, 16
    Cout = 8
    x = jax.random.normal(kx, (N, Cin, H, W), dtype=jnp.float32)

    def ref_conv_relu(x, w, b, stride, padding):
        out = jax.lax.conv_general_dilated(
            x, w, window_strides=(stride, stride),
            padding=[(padding, padding), (padding, padding)],
            dimension_numbers=("NCHW", "OIHW", "NCHW"))
        return jnp.maximum(out + b[None, :, None, None], 0.0)

    def check(conv, x, stride, padding, expect_shape):
        out = jax.block_until_ready(jax.jit(conv.__call__)(x))
        ref = ref_conv_relu(x, conv.weight, conv.bias, stride, padding)
        assert out.shape == expect_shape, (out.shape, expect_shape)
        max_err = float(jnp.max(jnp.abs(out - ref)))
        # bf16 MXU inputs with f32 accumulation vs. the f32 XLA reference.
        assert jnp.allclose(out, ref, atol=5e-2, rtol=5e-2), max_err

    # Fused stride-1 path, no padding (module defaults).
    check(Conv(Cin, Cout, kernel_size=3, stride=1, padding=0, key=kp1),
          x, 1, 0, (N, Cout, H - 2, W - 2))
    # Fused stride-1 path with spatial padding.
    check(Conv(Cin, Cout, kernel_size=3, stride=1, padding=1, key=kp2),
          x, 1, 1, (N, Cout, H, W))
    # Strided conv exercises the im2col GEMM fallback path.
    check(Conv(Cin, Cout, kernel_size=3, stride=2, padding=1, key=kp1),
          x, 2, 1, (N, Cout, H // 2, W // 2))

    print("KERNEL_OK")
</pallas_src>

<mosaic_0001>
module attributes {stable_mosaic.version = 11 : i64} {
  func.func @kernel(%arg0: i32, %arg1: memref<512x4xbf16, #tpu.memory_space<vmem>>, %arg2: memref<512x4xbf16, #tpu.memory_space<vmem>>, %arg3: memref<36x128xbf16, #tpu.memory_space<vmem>>, %arg4: memref<1x128xf32, #tpu.memory_space<vmem>>, %arg5: memref<512x128xf32, #tpu.memory_space<vmem>>, %arg6: memref<512x36xbf16, #tpu.memory_space<vmem>>) attributes {dimension_semantics = [#tpu.dimension_semantics<parallel>], iteration_bounds = array<i64: 1>, scalar_prefetch = 0 : i64, scratch_operands = 1 : i64, tpu.core_type = #tpu.core_type<tc>, window_params = [{transform_indices = @transform_0, window_bounds = array<i64: 512, 4>}, {transform_indices = @transform_1, window_bounds = array<i64: 512, 4>}, {pipeline_mode = #tpu.pipeline_mode<synchronous>, transform_indices = @transform_2, window_bounds = array<i64: 36, 128>}, {pipeline_mode = #tpu.pipeline_mode<synchronous>, transform_indices = @transform_3, window_bounds = array<i64: 1, 128>}, {transform_indices = @transform_4, window_bounds = array<i64: 512, 128>}]} {
    %c0 = arith.constant 0 : index
    %c0_0 = arith.constant 0 : index
    %0 = vector.load %arg1[%c0, %c0_0] : memref<512x4xbf16, #tpu.memory_space<vmem>>, vector<512x4xbf16>
    %c0_1 = arith.constant 0 : index
    %c0_2 = arith.constant 0 : index
    %1 = vector.load %arg6[%c0_1, %c0_2] : memref<512x36xbf16, #tpu.memory_space<vmem>>, vector<512x4xbf16>
    tpu.vector_store %arg6[%c0_1, %c0_2], %0 {strides = array<i32>} : memref<512x36xbf16, #tpu.memory_space<vmem>>, vector<512x4xbf16>,
    %c1 = arith.constant 1 : index
    %c0_3 = arith.constant 0 : index
    %2 = vector.load %arg1[%c1, %c0_3] : memref<512x4xbf16, #tpu.memory_space<vmem>>, vector<511x4xbf16>
    %c0_4 = arith.constant 0 : index
    %c4 = arith.constant 4 : index
    %3 = vector.load %arg6[%c0_4, %c4] : memref<512x36xbf16, #tpu.memory_space<vmem>>, vector<511x4xbf16>
    tpu.vector_store %arg6[%c0_4, %c4], %2 {strides = array<i32>} : memref<512x36xbf16, #tpu.memory_space<vmem>>, vector<511x4xbf16>,
    %c0_5 = arith.constant 0 : index
    %c0_6 = arith.constant 0 : index
    %4 = vector.load %arg2[%c0_5, %c0_6] : memref<512x4xbf16, #tpu.memory_space<vmem>>, vector<1x4xbf16>
    %c511 = arith.constant 511 : index
    %c4_7 = arith.constant 4 : index
    %5 = vector.load %arg6[%c511, %c4_7] : memref<512x36xbf16, #tpu.memory_space<vmem>>, vector<1x4xbf16>
    tpu.vector_store %arg6[%c511, %c4_7], %4 {strides = array<i32>} : memref<512x36xbf16, #tpu.memory_space<vmem>>, vector<1x4xbf16>,
    %c2 = arith.constant 2 : index
    %c0_8 = arith.constant 0 : index
    %6 = vector.load %arg1[%c2, %c0_8] : memref<512x4xbf16, #tpu.memory_space<vmem>>, vector<510x4xbf16>
    %c0_9 = arith.constant 0 : index
    %c8 = arith.constant 8 : index
    %7 = vector.load %arg6[%c0_9, %c8] : memref<512x36xbf16, #tpu.memory_space<vmem>>, vector<510x4xbf16>
    tpu.vector_store %arg6[%c0_9, %c8], %6 {strides = array<i32>} : memref<512x36xbf16, #tpu.memory_space<vmem>>, vector<510x4xbf16>,
    %c0_10 = arith.constant 0 : index
    %c0_11 = arith.constant 0 : index
    %8 = vector.load %arg2[%c0_10, %c0_11] : memref<512x4xbf16, #tpu.memory_space<vmem>>, vector<2x4xbf16>
    %c510 = arith.constant 510 : index
    %c8_12 = arith.constant 8 : index
    %9 = vector.load %arg6[%c510, %c8_12] : memref<512x36xbf16, #tpu.memory_space<vmem>>, vector<2x4xbf16>
    tpu.vector_store %arg6[%c510, %c8_12], %8 {strides = array<i32>} : memref<512x36xbf16, #tpu.memory_space<vmem>>, vector<2x4xbf16>,
    %c16 = arith.constant 16 : index
    %c0_13 = arith.constant 0 : index
    %10 = vector.load %arg1[%c16, %c0_13] : memref<512x4xbf16, #tpu.memory_space<vmem>>, vector<496x4xbf16>
    %c0_14 = arith.constant 0 : index
    %c12 = arith.constant 12 : index
    %11 = vector.load %arg6[%c0_14, %c12] : memref<512x36xbf16, #tpu.memory_space<vmem>>, vector<496x4xbf16>
    tpu.vector_store %arg6[%c0_14, %c12], %10 {strides = array<i32>} : memref<512x36xbf16, #tpu.memory_space<vmem>>, vector<496x4xbf16>,
    %c0_15 = arith.constant 0 : index
    %c0_16 = arith.constant 0 : index
    %12 = vector.load %arg2[%c0_15, %c0_16] : memref<512x4xbf16, #tpu.memory_space<vmem>>, vector<16x4xbf16>
    %c496 = arith.constant 496 : index
    %c12_17 = arith.constant 12 : index
    %13 = vector.load %arg6[%c496, %c12_17] : memref<512x36xbf16, #tpu.memory_space<vmem>>, vector<16x4xbf16>
    tpu.vector_store %arg6[%c496, %c12_17], %12 {strides = array<i32>} : memref<512x36xbf16, #tpu.memory_space<vmem>>, vector<16x4xbf16>,
    %c17 = arith.constant 17 : index
    %c0_18 = arith.constant 0 : index
    %14 = vector.load %arg1[%c17, %c0_18] : memref<512x4xbf16, #tpu.memory_space<vmem>>, vector<495x4xbf16>
    %c0_19 = arith.constant 0 : index
    %c16_20 = arith.constant 16 : index
    %15 = vector.load %arg6[%c0_19, %c16_20] : memref<512x36xbf16, #tpu.memory_space<vmem>>, vector<495x4xbf16>
    tpu.vector_store %arg6[%c0_19, %c16_20], %14 {strides = array<i32>} : memref<512x36xbf16, #tpu.memory_space<vmem>>, vector<495x4xbf16>,
    %c0_21 = arith.constant 0 : index
    %c0_22 = arith.constant 0 : index
    %16 = vector.load %arg2[%c0_21, %c0_22] : memref<512x4xbf16, #tpu.memory_space<vmem>>, vector<17x4xbf16>
    %c495 = arith.constant 495 : index
    %c16_23 = arith.constant 16 : index
    %17 = vector.load %arg6[%c495, %c16_23] : memref<512x36xbf16, #tpu.memory_space<vmem>>, vector<17x4xbf16>
    tpu.vector_store %arg6[%c495, %c16_23], %16 {strides = array<i32>} : memref<512x36xbf16, #tpu.memory_space<vmem>>, vector<17x4xbf16>,
    %c18 = arith.constant 18 : index
    %c0_24 = arith.constant 0 : index
    %18 = vector.load %arg1[%c18, %c0_24] : memref<512x4xbf16, #tpu.memory_space<vmem>>, vector<494x4xbf16>
    %c0_25 = arith.constant 0 : index
    %c20 = arith.constant 20 : index
    %19 = vector.load %arg6[%c0_25, %c20] : memref<512x36xbf16, #tpu.memory_space<vmem>>, vector<494x4xbf16>
    tpu.vector_store %arg6[%c0_25, %c20], %18 {strides = array<i32>} : memref<512x36xbf16, #tpu.memory_space<vmem>>, vector<494x4xbf16>,
    %c0_26 = arith.constant 0 : index
    %c0_27 = arith.constant 0 : index
    %20 = vector.load %arg2[%c0_26, %c0_27] : memref<512x4xbf16, #tpu.memory_space<vmem>>, vector<18x4xbf16>
    %c494 = arith.constant 494 : index
    %c20_28 = arith.constant 20 : index
    %21 = vector.load %arg6[%c494, %c20_28] : memref<512x36xbf16, #tpu.memory_space<vmem>>, vector<18x4xbf16>
    tpu.vector_store %arg6[%c494, %c20_28], %20 {strides = array<i32>} : memref<512x36xbf16, #tpu.memory_space<vmem>>, vector<18x4xbf16>,
    %c32 = arith.constant 32 : index
    %c0_29 = arith.constant 0 : index
    %22 = vector.load %arg1[%c32, %c0_29] : memref<512x4xbf16, #tpu.memory_space<vmem>>, vector<480x4xbf16>
    %c0_30 = arith.constant 0 : index
    %c24 = arith.constant 24 : index
    %23 = vector.load %arg6[%c0_30, %c24] : memref<512x36xbf16, #tpu.memory_space<vmem>>, vector<480x4xbf16>
    tpu.vector_store %arg6[%c0_30, %c24], %22 {strides = array<i32>} : memref<512x36xbf16, #tpu.memory_space<vmem>>, vector<480x4xbf16>,
    %c0_31 = arith.constant 0 : index
    %c0_32 = arith.constant 0 : index
    %24 = vector.load %arg2[%c0_31, %c0_32] : memref<512x4xbf16, #tpu.memory_space<vmem>>, vector<32x4xbf16>
    %c480 = arith.constant 480 : index
    %c24_33 = arith.constant 24 : index
    %25 = vector.load %arg6[%c480, %c24_33] : memref<512x36xbf16, #tpu.memory_space<vmem>>, vector<32x4xbf16>
    tpu.vector_store %arg6[%c480, %c24_33], %24 {strides = array<i32>} : memref<512x36xbf16, #tpu.memory_space<vmem>>, vector<32x4xbf16>,
    %c33 = arith.constant 33 : index
    %c0_34 = arith.constant 0 : index
    %26 = vector.load %arg1[%c33, %c0_34] : memref<512x4xbf16, #tpu.memory_space<vmem>>, vector<479x4xbf16>
    %c0_35 = arith.constant 0 : index
    %c28 = arith.constant 28 : index
    %27 = vector.load %arg6[%c0_35, %c28] : memref<512x36xbf16, #tpu.memory_space<vmem>>, vector<479x4xbf16>
    tpu.vector_store %arg6[%c0_35, %c28], %26 {strides = array<i32>} : memref<512x36xbf16, #tpu.memory_space<vmem>>, vector<479x4xbf16>,
    %c0_36 = arith.constant 0 : index
    %c0_37 = arith.constant 0 : index
    %28 = vector.load %arg2[%c0_36, %c0_37] : memref<512x4xbf16, #tpu.memory_space<vmem>>, vector<33x4xbf16>
    %c479 = arith.constant 479 : index
    %c28_38 = arith.constant 28 : index
    %29 = vector.load %arg6[%c479, %c28_38] : memref<512x36xbf16, #tpu.memory_space<vmem>>, vector<33x4xbf16>
    tpu.vector_store %arg6[%c479, %c28_38], %28 {strides = array<i32>} : memref<512x36xbf16, #tpu.memory_space<vmem>>, vector<33x4xbf16>,
    %c34 = arith.constant 34 : index
    %c0_39 = arith.constant 0 : index
    %30 = vector.load %arg1[%c34, %c0_39] : memref<512x4xbf16, #tpu.memory_space<vmem>>, vector<478x4xbf16>
    %c0_40 = arith.constant 0 : index
    %c32_41 = arith.constant 32 : index
    %31 = vector.load %arg6[%c0_40, %c32_41] : memref<512x36xbf16, #tpu.memory_space<vmem>>, vector<478x4xbf16>
    tpu.vector_store %arg6[%c0_40, %c32_41], %30 {strides = array<i32>} : memref<512x36xbf16, #tpu.memory_space<vmem>>, vector<478x4xbf16>,
    %c0_42 = arith.constant 0 : index
    %c0_43 = arith.constant 0 : index
    %32 = vector.load %arg2[%c0_42, %c0_43] : memref<512x4xbf16, #tpu.memory_space<vmem>>, vector<34x4xbf16>
    %c478 = arith.constant 478 : index
    %c32_44 = arith.constant 32 : index
    %33 = vector.load %arg6[%c478, %c32_44] : memref<512x36xbf16, #tpu.memory_space<vmem>>, vector<34x4xbf16>
    tpu.vector_store %arg6[%c478, %c32_44], %32 {strides = array<i32>} : memref<512x36xbf16, #tpu.memory_space<vmem>>, vector<34x4xbf16>,
    %c0_45 = arith.constant 0 : index
    %c0_46 = arith.constant 0 : index
    %34 = vector.load %arg6[%c0_45, %c0_46] : memref<512x36xbf16, #tpu.memory_space<vmem>>, vector<512x36xbf16>
    %c0_47 = arith.constant 0 : index
    %c0_48 = arith.constant 0 : index
    %35 = vector.load %arg3[%c0_47, %c0_48] : memref<36x128xbf16, #tpu.memory_space<vmem>>, vector<36x128xbf16>
    %cst = arith.constant dense<0.000000e+00> : vector<512x128xf32>
    %36 = tpu.matmul %34, %35, %cst {dimension_numbers = #tpu.dot_dimension_numbers<[1], [0], [0], [1], [0, 0, 1, 1], [], []>} : vector<512x36xbf16>, vector<36x128xbf16>, vector<512x128xf32> -> vector<512x128xf32>
    %c0_49 = arith.constant 0 : index
    %c0_50 = arith.constant 0 : index
    %37 = vector.load %arg4[%c0_49, %c0_50] : memref<1x128xf32, #tpu.memory_space<vmem>>, vector<1x128xf32>
    %38 = vector.broadcast %37 : vector<1x128xf32> to vector<512x128xf32>
    %39 = arith.addf %36, %38 : vector<512x128xf32>
    %cst_51 = arith.constant 0.000000e+00 : f32
    %40 = vector.broadcast %cst_51 : f32 to vector<512x128xf32>
    %41 = arith.maximumf %39, %40 : vector<512x128xf32>
    %c0_52 = arith.constant 0 : index
    %c0_53 = arith.constant 0 : index
    %42 = vector.load %arg5[%c0_52, %c0_53] : memref<512x128xf32, #tpu.memory_space<vmem>>, vector<512x128xf32>
    tpu.vector_store %arg5[%c0_52, %c0_53], %41 {strides = array<i32>} : memref<512x128xf32, #tpu.memory_space<vmem>>, vector<512x128xf32>,
    return
  }
  func.func @transform_0(%arg0: i32) -> (i32, i32) {
    %c0_i32 = arith.constant 0 : i32
    %c0_i32_0 = arith.constant 0 : i32
    return %arg0, %c0_i32 : i32, i32
  }
  func.func @transform_1(%arg0: i32) -> (i32, i32) {
    %c1_i32 = arith.constant 1 : i32
    %0 = arith.addi %arg0, %c1_i32 : i32
    %c0_i32 = arith.constant 0 : i32
    %c0_i32_0 = arith.constant 0 : i32
    return %0, %c0_i32 : i32, i32
  }
  func.func @transform_2(%arg0: i32) -> (i32, i32) {
    %c0_i32 = arith.constant 0 : i32
    %c0_i32_0 = arith.constant 0 : i32
    %c0_i32_1 = arith.constant 0 : i32
    return %c0_i32, %c0_i32_0 : i32, i32
  }
  func.func @transform_3(%arg0: i32) -> (i32, i32) {
    %c0_i32 = arith.constant 0 : i32
    %c0_i32_0 = arith.constant 0 : i32
    %c0_i32_1 = arith.constant 0 : i32
    return %c0_i32, %c0_i32_0 : i32, i32
  }
  func.func @transform_4(%arg0: i32) -> (i32, i32) {
    %c0_i32 = arith.constant 0 : i32
    %c0_i32_0 = arith.constant 0 : i32
    return %arg0, %c0_i32 : i32, i32
  }
}

</mosaic_0001>

<llo_original>
// kernel: a_call__.1
$region0: #{a_call__.1}
  #allocation0 [shape = 'u32[]', space=smem, size = 0x4, offset = 0x4, fixed_abs, tag = 'smem constant byte address 0x4 - core index']
  #allocation1 [shape = 'u32[144,128]{1,0:T(1,128)}', space=vmem, size = 0x12000, scoped, tag = 'internal scratch']
  #allocation2 [shape = 'bf16[512,36]{1,0:T(8,128)(2,1)}', space=vmem, size = 0x20000, scoped, tag = 'scratch operand']
  %s0 = inlined_call_operand.vmem [shape: bf16[1024,4], index: 0, kind: input, shape index: {}, may-alias: {0,1}]
  %s1 = inlined_call_operand.vmem [shape: bf16[1024,4], index: 1, kind: input, shape index: {}, may-alias: {0,1}]
  %s2 = inlined_call_operand.vmem [shape: bf16[36,128], index: 2, kind: input, shape index: {}]
  %s3 = inlined_call_operand.vmem [shape: f32[1,128], index: 3, kind: input, shape index: {}]
  %s4 = inlined_call_operand.vmem [shape: f32[512,128], index: 4, kind: output, shape index: {}]
  %s5 = sld [smem:[#allocation0]]
  $region26: #{a_call__.1} parent=0
    _
  %s7 = ssub.s32 1, %s5
  %s8 = scalar_select 0, %s7, %s5
  // Predicated region
  $region2: #{a_call__.1} parent=0 // pred_check
    _
  $region3: #{a_call__.1} parent=0 // pred_check_branch
    %10 = sbr.rel (0) target = $region5
  $region4: #{a_call__.1} parent=0 // pred_region
    _
  $region5: #{a_call__.1} parent=0 // pred_fallthru
    _
  // Predicated region
  $region6: #{a_call__.1} parent=0 // pred_check
    _
  $region7: #{a_call__.1} parent=0 // pred_check_branch
    %12 = sbr.rel (0) target = $region9
  $region8: #{a_call__.1} parent=0 // pred_region
    %s13 = sadd.s32 0, 1
    %s14 = smul.u32 64, %s13
    %p15 = scmp.lt.s32.totalorder %s14, 127
    %s16 = scalar_select %p15, %s14, 127
    %s17 = smul.addr %s16, 4
    %s18 = scalar_lea.vmem %s1, %s17
    %s19 = sadd.s32 0, 1
    %s20 = smul.u32 64, %s19
  $region9: #{a_call__.1} parent=0 // pred_fallthru
    _
  // Predicated region
  $region10: #{a_call__.1} parent=0 // pred_check
    _
  $region11: #{a_call__.1} parent=0 // pred_check_branch
    %22 = sbr.rel (0) target = $region13
  $region12: #{a_call__.1} parent=0 // pred_region
    _
  $region13: #{a_call__.1} parent=0 // pred_fallthru
    _
  // Predicated region
  $region14: #{a_call__.1} parent=0 // pred_check
    _
  $region15: #{a_call__.1} parent=0 // pred_check_branch
    %24 = sbr.rel (0) target = $region17
  $region16: #{a_call__.1} parent=0 // pred_region
    _
  $region17: #{a_call__.1} parent=0 // pred_fallthru
    _
  %s25 = sadd.s32 0, 1
  %s26 = smul.u32 64, %s25
  %p27 = scmp.lt.s32.totalorder %s26, 127
  %s28 = scalar_select %p27, %s26, 127
  %s29 = smul.addr %s28, 4
  %s30 = scalar_lea.vmem %s1, %s29
  %s31 = sadd.s32 0, 1
  %s32 = smul.u32 64, %s31
  %p33 = scmp.lt.s32.totalorder %s32, 127
  %s34 = scalar_select %p33, %s32, 127
  %s35 = smul.addr %s34, 4
  %s36 = scalar_lea.vmem %s1, %s35
  %s37 = sadd.s32 0, 1
  %s38 = smul.u32 64, %s37
  %v40 = vld [vmem:[%s0] sm:$0xf]
  %v41 = vld [vmem:[%s0 + $0x4] sm:$0xf]
  %v42 = vld [vmem:[%s0 + $0x8] sm:$0xf]
  %v43 = vld [vmem:[%s0 + $0xc] sm:$0xf]
  %v44 = vld [vmem:[%s0 + $0x10] sm:$0xf]
  %v45 = vld [vmem:[%s0 + $0x14] sm:$0xf]
  %v46 = vld [vmem:[%s0 + $0x18] sm:$0xf]
  %v47 = vld [vmem:[%s0 + $0x1c] sm:$0xf]
  %v48 = vld [vmem:[%s0 + $0x20] sm:$0xf]
  %v49 = vld [vmem:[%s0 + $0x24] sm:$0xf]
  %v50 = vld [vmem:[%s0 + $0x28] sm:$0xf]
  %v51 = vld [vmem:[%s0 + $0x2c] sm:$0xf]
  %v52 = vld [vmem:[%s0 + $0x30] sm:$0xf]
  %v53 = vld [vmem:[%s0 + $0x34] sm:$0xf]
  %v54 = vld [vmem:[%s0 + $0x38] sm:$0xf]
  %v55 = vld [vmem:[%s0 + $0x3c] sm:$0xf]
  %v56 = vld [vmem:[%s0 + $0x40] sm:$0xf]
  %v57 = vld [vmem:[%s0 + $0x44] sm:$0xf]
  %v58 = vld [vmem:[%s0 + $0x48] sm:$0xf]
  %v59 = vld [vmem:[%s0 + $0x4c] sm:$0xf]
  %v60 = vld [vmem:[%s0 + $0x50] sm:$0xf]
  %v61 = vld [vmem:[%s0 + $0x54] sm:$0xf]
  %v62 = vld [vmem:[%s0 + $0x58] sm:$0xf]
  %v63 = vld [vmem:[%s0 + $0x5c] sm:$0xf]
  %v64 = vld [vmem:[%s0 + $0x60] sm:$0xf]
  %v65 = vld [vmem:[%s0 + $0x64] sm:$0xf]
  %v66 = vld [vmem:[%s0 + $0x68] sm:$0xf]
  %v67 = vld [vmem:[%s0 + $0x6c] sm:$0xf]
  %v68 = vld [vmem:[%s0 + $0x70] sm:$0xf]
  %v69 = vld [vmem:[%s0 + $0x74] sm:$0xf]
  %v70 = vld [vmem:[%s0 + $0x78] sm:$0xf]
  %v71 = vld [vmem:[%s0 + $0x7c] sm:$0xf]
  %v72 = vld [vmem:[%s0 + $0x80] sm:$0xf]
  %v73 = vld [vmem:[%s0 + $0x84] sm:$0xf]
  %v74 = vld [vmem:[%s0 + $0x88] sm:$0xf]
  %v75 = vld [vmem:[%s0 + $0x8c] sm:$0xf]
  %v76 = vld [vmem:[%s0 + $0x90] sm:$0xf]
  %v77 = vld [vmem:[%s0 + $0x94] sm:$0xf]
  %v78 = vld [vmem:[%s0 + $0x98] sm:$0xf]
  %v79 = vld [vmem:[%s0 + $0x9c] sm:$0xf]
  %v80 = vld [vmem:[%s0 + $0xa0] sm:$0xf]
  %v81 = vld [vmem:[%s0 + $0xa4] sm:$0xf]
  %v82 = vld [vmem:[%s0 + $0xa8] sm:$0xf]
  %v83 = vld [vmem:[%s0 + $0xac] sm:$0xf]
  %v84 = vld [vmem:[%s0 + $0xb0] sm:$0xf]
  %v85 = vld [vmem:[%s0 + $0xb4] sm:$0xf]
  %v86 = vld [vmem:[%s0 + $0xb8] sm:$0xf]
  %v87 = vld [vmem:[%s0 + $0xbc] sm:$0xf]
  %v88 = vld [vmem:[%s0 + $0xc0] sm:$0xf]
  %v89 = vld [vmem:[%s0 + $0xc4] sm:$0xf]
  %v90 = vld [vmem:[%s0 + $0xc8] sm:$0xf]
  %v91 = vld [vmem:[%s0 + $0xcc] sm:$0xf]
  %v92 = vld [vmem:[%s0 + $0xd0] sm:$0xf]
  %v93 = vld [vmem:[%s0 + $0xd4] sm:$0xf]
  %v94 = vld [vmem:[%s0 + $0xd8] sm:$0xf]
  %v95 = vld [vmem:[%s0 + $0xdc] sm:$0xf]
  %v96 = vld [vmem:[%s0 + $0xe0] sm:$0xf]
  %v97 = vld [vmem:[%s0 + $0xe4] sm:$0xf]
  %v98 = vld [vmem:[%s0 + $0xe8] sm:$0xf]
  %v99 = vld [vmem:[%s0 + $0xec] sm:$0xf]
  %v100 = vld [vmem:[%s0 + $0xf0] sm:$0xf]
  %v101 = vld [vmem:[%s0 + $0xf4] sm:$0xf]
  %v102 = vld [vmem:[%s0 + $0xf8] sm:$0xf]
  %v103 = vld [vmem:[%s0 + $0xfc] sm:$0xf]
  %vm104 = vcmask 27648
  %105 = vst.msk [vmem:[#allocation2] sm:$0xf] %vm104, %v40
  %106 = vst.msk [vmem:[#allocation2 + $0x4] sm:$0xf] %vm104, %v41
  %107 = vst.msk [vmem:[#allocation2 + $0x8] sm:$0xf] %vm104, %v42
  %108 = vst.msk [vmem:[#allocation2 + $0xc] sm:$0xf] %vm104, %v43
  %109 = vst.msk [vmem:[#allocation2 + $0x10] sm:$0xf] %vm104, %v44
  %110 = vst.msk [vmem:[#allocation2 + $0x14] sm:$0xf] %vm104, %v45
  %111 = vst.msk [vmem:[#allocation2 + $0x18] sm:$0xf] %vm104, %v46
  %112 = vst.msk [vmem:[#allocation2 + $0x1c] sm:$0xf] %vm104, %v47
  %113 = vst.msk [vmem:[#allocation2 + $0x20] sm:$0xf] %vm104, %v48
  %114 = vst.msk [vmem:[#allocation2 + $0x24] sm:$0xf] %vm104, %v49
  %115 = vst.msk [vmem:[#allocation2 + $0x28] sm:$0xf] %vm104, %v50
  %116 = vst.msk [vmem:[#allocation2 + $0x2c] sm:$0xf] %vm104, %v51
  %117 = vst.msk [vmem:[#allocation2 + $0x30] sm:$0xf] %vm104, %v52
  %118 = vst.msk [vmem:[#allocation2 + $0x34] sm:$0xf] %vm104, %v53
  %119 = vst.msk [vmem:[#allocation2 + $0x38] sm:$0xf] %vm104, %v54
  %120 = vst.msk [vmem:[#allocation2 + $0x3c] sm:$0xf] %vm104, %v55
  %121 = vst.msk [vmem:[#allocation2 + $0x40] sm:$0xf] %vm104, %v56
  %122 = vst.msk [vmem:[#allocation2 + $0x44] sm:$0xf] %vm104, %v57
  %123 = vst.msk [vmem:[#allocation2 + $0x48] sm:$0xf] %vm104, %v58
  %124 = vst.msk [vmem:[#allocation2 + $0x4c] sm:$0xf] %vm104, %v59
  %125 = vst.msk [vmem:[#allocation2 + $0x50] sm:$0xf] %vm104, %v60
  %126 = vst.msk [vmem:[#allocation2 + $0x54] sm:$0xf] %vm104, %v61
  %127 = vst.msk [vmem:[#allocation2 + $0x58] sm:$0xf] %vm104, %v62
  %128 = vst.msk [vmem:[#allocation2 + $0x5c] sm:$0xf] %vm104, %v63
  %129 = vst.msk [vmem:[#allocation2 + $0x60] sm:$0xf] %vm104, %v64
  %130 = vst.msk [vmem:[#allocation2 + $0x64] sm:$0xf] %vm104, %v65
  %131 = vst.msk [vmem:[#allocation2 + $0x68] sm:$0xf] %vm104, %v66
  %132 = vst.msk [vmem:[#allocation2 + $0x6c] sm:$0xf] %vm104, %v67
  %133 = vst.msk [vmem:[#allocation2 + $0x70] sm:$0xf] %vm104, %v68
  %134 = vst.msk [vmem:[#allocation2 + $0x74] sm:$0xf] %vm104, %v69
  %135 = vst.msk [vmem:[#allocation2 + $0x78] sm:$0xf] %vm104, %v70
  %136 = vst.msk [vmem:[#allocation2 + $0x7c] sm:$0xf] %vm104, %v71
  %137 = vst.msk [vmem:[#allocation2 + $0x80] sm:$0xf] %vm104, %v72
  %138 = vst.msk [vmem:[#allocation2 + $0x84] sm:$0xf] %vm104, %v73
  %139 = vst.msk [vmem:[#allocation2 + $0x88] sm:$0xf] %vm104, %v74
  %140 = vst.msk [vmem:[#allocation2 + $0x8c] sm:$0xf] %vm104, %v75
  %141 = vst.msk [vmem:[#allocation2 + $0x90] sm:$0xf] %vm104, %v76
  %142 = vst.msk [vmem:[#allocation2 + $0x94] sm:$0xf] %vm104, %v77
  %143 = vst.msk [vmem:[#allocation2 + $0x98] sm:$0xf] %vm104, %v78
  %144 = vst.msk [vmem:[#allocation2 + $0x9c] sm:$0xf] %vm104, %v79
  %145 = vst.msk [vmem:[#allocation2 + $0xa0] sm:$0xf] %vm104, %v80
  %146 = vst.msk [vmem:[#allocation2 + $0xa4] sm:$0xf] %vm104, %v81
  %147 = vst.msk [vmem:[#allocation2 + $0xa8] sm:$0xf] %vm104, %v82
  %148 = vst.msk [vmem:[#allocation2 + $0xac] sm:$0xf] %vm104, %v83
  %149 = vst.msk [vmem:[#allocation2 + $0xb0] sm:$0xf] %vm104, %v84
  %150 = vst.msk [vmem:[#allocation2 + $0xb4] sm:$0xf] %vm104, %v85
  %151 = vst.msk [vmem:[#allocation2 + $0xb8] sm:$0xf] %vm104, %v86
  %152 = vst.msk [vmem:[#allocation2 + $0xbc] sm:$0xf] %vm104, %v87
  %153 = vst.msk [vmem:[#allocation2 + $0xc0] sm:$0xf] %vm104, %v88
  %154 = vst.msk [vmem:[#allocation2 + $0xc4] sm:$0xf] %vm104, %v89
  %155 = vst.msk [vmem:[#allocation2 + $0xc8] sm:$0xf] %vm104, %v90
  %156 = vst.msk [vmem:[#allocation2 + $0xcc] sm:$0xf] %vm104, %v91
  %157 = vst.msk [vmem:[#allocation2 + $0xd0] sm:$0xf] %vm104, %v92
  %158 = vst.msk [vmem:[#allocation2 + $0xd4] sm:$0xf] %vm104, %v93
  %159 = vst.msk [vmem:[#allocation2 + $0xd8] sm:$0xf] %vm104, %v94
  %160 = vst.msk [vmem:[#allocation2 + $0xdc] sm:$0xf] %vm104, %v95
  %161 = vst.msk [vmem:[#allocation2 + $0xe0] sm:$0xf] %vm104, %v96
  %162 = vst.msk [vmem:[#allocation2 + $0xe4] sm:$0xf] %vm104, %v97
  %163 = vst.msk [vmem:[#allocation2 + $0xe8] sm:$0xf] %vm104, %v98
  %164 = vst.msk [vmem:[#allocation2 + $0xec] sm:$0xf] %vm104, %v99
  %165 = vst.msk [vmem:[#allocation2 + $0xf0] sm:$0xf] %vm104, %v100
  %166 = vst.msk [vmem:[#allocation2 + $0xf4] sm:$0xf] %vm104, %v101
  %167 = vst.msk [vmem:[#allocation2 + $0xf8] sm:$0xf] %vm104, %v102
  %168 = vst.msk [vmem:[#allocation2 + $0xfc] sm:$0xf] %vm104, %v103
  %v169 = vld [vmem:[%s0] sm:$0xf]
  %v170 = vld [vmem:[%s0 + $0x4] sm:$0xf]
  %v171 = vld [vmem:[%s0 + $0x8] sm:$0xf]
  %v172 = vld [vmem:[%s0 + $0xc] sm:$0xf]
  %v173 = vld [vmem:[%s0 + $0x10] sm:$0xf]
  %v174 = vld [vmem:[%s0 + $0x14] sm:$0xf]
  %v175 = vld [vmem:[%s0 + $0x18] sm:$0xf]
  %v176 = vld [vmem:[%s0 + $0x1c] sm:$0xf]
  %v177 = vld [vmem:[%s0 + $0x20] sm:$0xf]
  %v178 = vld [vmem:[%s0 + $0x24] sm:$0xf]
  %v179 = vld [vmem:[%s0 + $0x28] sm:$0xf]
  %v180 = vld [vmem:[%s0 + $0x2c] sm:$0xf]
  %v181 = vld [vmem:[%s0 + $0x30] sm:$0xf]
  %v182 = vld [vmem:[%s0 + $0x34] sm:$0xf]
  %v183 = vld [vmem:[%s0 + $0x38] sm:$0xf]
  %v184 = vld [vmem:[%s0 + $0x3c] sm:$0xf]
  %v185 = vld [vmem:[%s0 + $0x40] sm:$0xf]
  %v186 = vld [vmem:[%s0 + $0x44] sm:$0xf]
  %v187 = vld [vmem:[%s0 + $0x48] sm:$0xf]
  %v188 = vld [vmem:[%s0 + $0x4c] sm:$0xf]
  %v189 = vld [vmem:[%s0 + $0x50] sm:$0xf]
  %v190 = vld [vmem:[%s0 + $0x54] sm:$0xf]
  %v191 = vld [vmem:[%s0 + $0x58] sm:$0xf]
  %v192 = vld [vmem:[%s0 + $0x5c] sm:$0xf]
  %v193 = vld [vmem:[%s0 + $0x60] sm:$0xf]
  %v194 = vld [vmem:[%s0 + $0x64] sm:$0xf]
  %v195 = vld [vmem:[%s0 + $0x68] sm:$0xf]
  %v196 = vld [vmem:[%s0 + $0x6c] sm:$0xf]
  %v197 = vld [vmem:[%s0 + $0x70] sm:$0xf]
  %v198 = vld [vmem:[%s0 + $0x74] sm:$0xf]
  %v199 = vld [vmem:[%s0 + $0x78] sm:$0xf]
  %v200 = vld [vmem:[%s0 + $0x7c] sm:$0xf]
  %v201 = vld [vmem:[%s0 + $0x80] sm:$0xf]
  %v202 = vld [vmem:[%s0 + $0x84] sm:$0xf]
  %v203 = vld [vmem:[%s0 + $0x88] sm:$0xf]
  %v204 = vld [vmem:[%s0 + $0x8c] sm:$0xf]
  %v205 = vld [vmem:[%s0 + $0x90] sm:$0xf]
  %v206 = vld [vmem:[%s0 + $0x94] sm:$0xf]
  %v207 = vld [vmem:[%s0 + $0x98] sm:$0xf]
  %v208 = vld [vmem:[%s0 + $0x9c] sm:$0xf]
  %v209 = vld [vmem:[%s0 + $0xa0] sm:$0xf]
  %v210 = vld [vmem:[%s0 + $0xa4] sm:$0xf]
  %v211 = vld [vmem:[%s0 + $0xa8] sm:$0xf]
  %v212 = vld [vmem:[%s0 + $0xac] sm:$0xf]
  %v213 = vld [vmem:[%s0 + $0xb0] sm:$0xf]
  %v214 = vld [vmem:[%s0 + $0xb4] sm:$0xf]
  %v215 = vld [vmem:[%s0 + $0xb8] sm:$0xf]
  %v216 = vld [vmem:[%s0 + $0xbc] sm:$0xf]
  %v217 = vld [vmem:[%s0 + $0xc0] sm:$0xf]
  %v218 = vld [vmem:[%s0 + $0xc4] sm:$0xf]
  %v219 = vld [vmem:[%s0 + $0xc8] sm:$0xf]
  %v220 = vld [vmem:[%s0 + $0xcc] sm:$0xf]
  %v221 = vld [vmem:[%s0 + $0xd0] sm:$0xf]
  %v222 = vld [vmem:[%s0 + $0xd4] sm:$0xf]
  %v223 = vld [vmem:[%s0 + $0xd8] sm:$0xf]
  %v224 = vld [vmem:[%s0 + $0xdc] sm:$0xf]
  %v225 = vld [vmem:[%s0 + $0xe0] sm:$0xf]
  %v226 = vld [vmem:[%s0 + $0xe4] sm:$0xf]
  %v227 = vld [vmem:[%s0 + $0xe8] sm:$0xf]
  %v228 = vld [vmem:[%s0 + $0xec] sm:$0xf]
  %v229 = vld [vmem:[%s0 + $0xf0] sm:$0xf]
  %v230 = vld [vmem:[%s0 + $0xf4] sm:$0xf]
  %v231 = vld [vmem:[%s0 + $0xf8] sm:$0xf]
  %v232 = vld [vmem:[%s0 + $0xfc] sm:$0xf]
  %vm233 = vsmask.f32 3328
  %vm234 = vsmask.f32 7440
  %vm235 = vmor %vm233, %vm234
  %v237 = vshrl.u32 %v169, 16
  %v239 = vrot.slane %v237, 4
  %v240 = vshll.u32 %v169, 16
  %v242 = vrot.slane %v240, 5
  %v243 = vor.u32 %v239, %v242
  %v244 = vrot.slane %v243, 4
  %v246 = vshll.u32 %v170, 16
  %v248 = vrot.slane %v246, 5
  %v249 = vsel %vm235, %v244, %v248
  %v250 = vshrl.u32 %v170, 16
  %v252 = vrot.slane %v250, 4
  %v253 = vor.u32 %v252, %v248
  %v254 = vrot.slane %v253, 4
  %v256 = vshll.u32 %v171, 16
  %v258 = vrot.slane %v256, 5
  %v259 = vsel %vm235, %v254, %v258
  %v260 = vshrl.u32 %v171, 16
  %v262 = vrot.slane %v260, 4
  %v263 = vor.u32 %v262, %v258
  %v264 = vrot.slane %v263, 4
  %v266 = vshll.u32 %v172, 16
  %v268 = vrot.slane %v266, 5
  %v269 = vsel %vm235, %v264, %v268
  %v270 = vshrl.u32 %v172, 16
  %v272 = vrot.slane %v270, 4
  %v273 = vor.u32 %v272, %v268
  %v274 = vrot.slane %v273, 4
  %v276 = vshll.u32 %v173, 16
  %v278 = vrot.slane %v276, 5
  %v279 = vsel %vm235, %v274, %v278
  %v280 = vshrl.u32 %v173, 16
  %v282 = vrot.slane %v280, 4
  %v283 = vor.u32 %v282, %v278
  %v284 = vrot.slane %v283, 4
  %v286 = vshll.u32 %v174, 16
  %v288 = vrot.slane %v286, 5
  %v289 = vsel %vm235, %v284, %v288
  %v290 = vshrl.u32 %v174, 16
  %v292 = vrot.slane %v290, 4
  %v293 = vor.u32 %v292, %v288
  %v294 = vrot.slane %v293, 4
  %v296 = vshll.u32 %v175, 16
  %v298 = vrot.slane %v296, 5
  %v299 = vsel %vm235, %v294, %v298
  %v300 = vshrl.u32 %v175, 16
  %v302 = vrot.slane %v300, 4
  %v303 = vor.u32 %v302, %v298
  %v304 = vrot.slane %v303, 4
  %v306 = vshll.u32 %v176, 16
  %v308 = vrot.slane %v306, 5
  %v309 = vsel %vm235, %v304, %v308
  %v310 = vshrl.u32 %v176, 16
  %v312 = vrot.slane %v310, 4
  %v313 = vor.u32 %v312, %v308
  %v314 = vrot.slane %v313, 4
  %v316 = vshll.u32 %v177, 16
  %v318 = vrot.slane %v316, 5
  %v319 = vsel %vm235, %v314, %v318
  %v320 = vshrl.u32 %v177, 16
  %v322 = vrot.slane %v320, 4
  %v323 = vor.u32 %v322, %v318
  %v324 = vrot.slane %v323, 4
  %v326 = vshll.u32 %v178, 16
  %v328 = vrot.slane %v326, 5
  %v329 = vsel %vm235, %v324, %v328
  %v330 = vshrl.u32 %v178, 16
  %v332 = vrot.slane %v330, 4
  %v333 = vor.u32 %v332, %v328
  %v334 = vrot.slane %v333, 4
  %v336 = vshll.u32 %v179, 16
  %v338 = vrot.slane %v336, 5
  %v339 = vsel %vm235, %v334, %v338
  %v340 = vshrl.u32 %v179, 16
  %v342 = vrot.slane %v340, 4
  %v343 = vor.u32 %v342, %v338
  %v344 = vrot.slane %v343, 4
  %v346 = vshll.u32 %v180, 16
  %v348 = vrot.slane %v346, 5
  %v349 = vsel %vm235, %v344, %v348
  %v350 = vshrl.u32 %v180, 16
  %v352 = vrot.slane %v350, 4
  %v353 = vor.u32 %v352, %v348
  %v354 = vrot.slane %v353, 4
  %v356 = vshll.u32 %v181, 16
  %v358 = vrot.slane %v356, 5
  %v359 = vsel %vm235, %v354, %v358
  %v360 = vshrl.u32 %v181, 16
  %v362 = vrot.slane %v360, 4
  %v363 = vor.u32 %v362, %v358
  %v364 = vrot.slane %v363, 4
  %v366 = vshll.u32 %v182, 16
  %v368 = vrot.slane %v366, 5
  %v369 = vsel %vm235, %v364, %v368
  %v370 = vshrl.u32 %v182, 16
  %v372 = vrot.slane %v370, 4
  %v373 = vor.u32 %v372, %v368
  %v374 = vrot.slane %v373, 4
  %v376 = vshll.u32 %v183, 16
  %v378 = vrot.slane %v376, 5
  %v379 = vsel %vm235, %v374, %v378
  %v380 = vshrl.u32 %v183, 16
  %v382 = vrot.slane %v380, 4
  %v383 = vor.u32 %v382, %v378
  %v384 = vrot.slane %v383, 4
  %v386 = vshll.u32 %v184, 16
  %v388 = vrot.slane %v386, 5
  %v389 = vsel %vm235, %v384, %v388
  %v390 = vshrl.u32 %v184, 16
  %v392 = vrot.slane %v390, 4
  %v393 = vor.u32 %v392, %v388
  %v394 = vrot.slane %v393, 4
  %v396 = vshll.u32 %v185, 16
  %v398 = vrot.slane %v396, 5
  %v399 = vsel %vm235, %v394, %v398
  %v400 = vshrl.u32 %v185, 16
  %v402 = vrot.slane %v400, 4
  %v403 = vor.u32 %v402, %v398
  %v404 = vrot.slane %v403, 4
  %v406 = vshll.u32 %v186, 16
  %v408 = vrot.slane %v406, 5
  %v409 = vsel %vm235, %v404, %v408
  %v410 = vshrl.u32 %v186, 16
  %v412 = vrot.slane %v410, 4
  %v413 = vor.u32 %v412, %v408
  %v414 = vrot.slane %v413, 4
  %v416 = vshll.u32 %v187, 16
  %v418 = vrot.slane %v416, 5
  %v419 = vsel %vm235, %v414, %v418
  %v420 = vshrl.u32 %v187, 16
  %v422 = vrot.slane %v420, 4
  %v423 = vor.u32 %v422, %v418
  %v424 = vrot.slane %v423, 4
  %v426 = vshll.u32 %v188, 16
  %v428 = vrot.slane %v426, 5
  %v429 = vsel %vm235, %v424, %v428
  %v430 = vshrl.u32 %v188, 16
  %v432 = vrot.slane %v430, 4
  %v433 = vor.u32 %v432, %v428
  %v434 = vrot.slane %v433, 4
  %v436 = vshll.u32 %v189, 16
  %v438 = vrot.slane %v436, 5
  %v439 = vsel %vm235, %v434, %v438
  %v440 = vshrl.u32 %v189, 16
  %v442 = vrot.slane %v440, 4
  %v443 = vor.u32 %v442, %v438
  %v444 = vrot.slane %v443, 4
  %v446 = vshll.u32 %v190, 16
  %v448 = vrot.slane %v446, 5
  %v449 = vsel %vm235, %v444, %v448
  %v450 = vshrl.u32 %v190, 16
  %v452 = vrot.slane %v450, 4
  %v453 = vor.u32 %v452, %v448
  %v454 = vrot.slane %v453, 4
  %v456 = vshll.u32 %v191, 16
  %v458 = vrot.slane %v456, 5
  %v459 = vsel %vm235, %v454, %v458
  %v460 = vshrl.u32 %v191, 16
  %v462 = vrot.slane %v460, 4
  %v463 = vor.u32 %v462, %v458
  %v464 = vrot.slane %v463, 4
  %v466 = vshll.u32 %v192, 16
  %v468 = vrot.slane %v466, 5
  %v469 = vsel %vm235, %v464, %v468
  %v470 = vshrl.u32 %v192, 16
  %v472 = vrot.slane %v470, 4
  %v473 = vor.u32 %v472, %v468
  %v474 = vrot.slane %v473, 4
  %v476 = vshll.u32 %v193, 16
  %v478 = vrot.slane %v476, 5
  %v479 = vsel %vm235, %v474, %v478
  %v480 = vshrl.u32 %v193, 16
  %v482 = vrot.slane %v480, 4
  %v483 = vor.u32 %v482, %v478
  %v484 = vrot.slane %v483, 4
  %v486 = vshll.u32 %v194, 16
  %v488 = vrot.slane %v486, 5
  %v489 = vsel %vm235, %v484, %v488
  %v490 = vshrl.u32 %v194, 16
  %v492 = vrot.slane %v490, 4
  %v493 = vor.u32 %v492, %v488
  %v494 = vrot.slane %v493, 4
  %v496 = vshll.u32 %v195, 16
  %v498 = vrot.slane %v496, 5
  %v499 = vsel %vm235, %v494, %v498
  %v500 = vshrl.u32 %v195, 16
  %v502 = vrot.slane %v500, 4
  %v503 = vor.u32 %v502, %v498
  %v504 = vrot.slane %v503, 4
  %v506 = vshll.u32 %v196, 16
  %v508 = vrot.slane %v506, 5
  %v509 = vsel %vm235, %v504, %v508
  %v510 = vshrl.u32 %v196, 16
  %v512 = vrot.slane %v510, 4
  %v513 = vor.u32 %v512, %v508
  %v514 = vrot.slane %v513, 4
  %v516 = vshll.u32 %v197, 16
  %v518 = vrot.slane %v516, 5
  %v519 = vsel %vm235, %v514, %v518
  %v520 = vshrl.u32 %v197, 16
  %v522 = vrot.slane %v520, 4
  %v523 = vor.u32 %v522, %v518
  %v524 = vrot.slane %v523, 4
  %v526 = vshll.u32 %v198, 16
  %v528 = vrot.slane %v526, 5
  %v529 = vsel %vm235, %v524, %v528
  %v530 = vshrl.u32 %v198, 16
  %v532 = vrot.slane %v530, 4
  %v533 = vor.u32 %v532, %v528
  %v534 = vrot.slane %v533, 4
  %v536 = vshll.u32 %v199, 16
  %v538 = vrot.slane %v536, 5
  %v539 = vsel %vm235, %v534, %v538
  %v540 = vshrl.u32 %v199, 16
  %v542 = vrot.slane %v540, 4
  %v543 = vor.u32 %v542, %v538
  %v544 = vrot.slane %v543, 4
  %v546 = vshll.u32 %v200, 16
  %v548 = vrot.slane %v546, 5
  %v549 = vsel %vm235, %v544, %v548
  %v550 = vshrl.u32 %v200, 16
  %v552 = vrot.slane %v550, 4
  %v553 = vor.u32 %v552, %v548
  %v554 = vrot.slane %v553, 4
  %v556 = vshll.u32 %v201, 16
  %v558 = vrot.slane %v556, 5
  %v559 = vsel %vm235, %v554, %v558
  %v560 = vshrl.u32 %v201, 16
  %v562 = vrot.slane %v560, 4
  %v563 = vor.u32 %v562, %v558
  %v564 = vrot.slane %v563, 4
  %v566 = vshll.u32 %v202, 16
  %v568 = vrot.slane %v566, 5
  %v569 = vsel %vm235, %v564, %v568
  %v570 = vshrl.u32 %v202, 16
  %v572 = vrot.slane %v570, 4
  %v573 = vor.u32 %v572, %v568
  %v574 = vrot.slane %v573, 4
  %v576 = vshll.u32 %v203, 16
  %v578 = vrot.slane %v576, 5
  %v579 = vsel %vm235, %v574, %v578
  %v580 = vshrl.u32 %v203, 16
  %v582 = vrot.slane %v580, 4
  %v583 = vor.u32 %v582, %v578
  %v584 = vrot.slane %v583, 4
  %v586 = vshll.u32 %v204, 16
  %v588 = vrot.slane %v586, 5
  %v589 = vsel %vm235, %v584, %v588
  %v590 = vshrl.u32 %v204, 16
  %v592 = vrot.slane %v590, 4
  %v593 = vor.u32 %v592, %v588
  %v594 = vrot.slane %v593, 4
  %v596 = vshll.u32 %v205, 16
  %v598 = vrot.slane %v596, 5
  %v599 = vsel %vm235, %v594, %v598
  %v600 = vshrl.u32 %v205, 16
  %v602 = vrot.slane %v600, 4
  %v603 = vor.u32 %v602, %v598
  %v604 = vrot.slane %v603, 4
  %v606 = vshll.u32 %v206, 16
  %v608 = vrot.slane %v606, 5
  %v609 = vsel %vm235, %v604, %v608
  %v610 = vshrl.u32 %v206, 16
  %v612 = vrot.slane %v610, 4
  %v613 = vor.u32 %v612, %v608
  %v614 = vrot.slane %v613, 4
  %v616 = vshll.u32 %v207, 16
  %v618 = vrot.slane %v616, 5
  %v619 = vsel %vm235, %v614, %v618
  %v620 = vshrl.u32 %v207, 16
  %v622 = vrot.slane %v620, 4
  %v623 = vor.u32 %v622, %v618
  %v624 = vrot.slane %v623, 4
  %v626 = vshll.u32 %v208, 16
  %v628 = vrot.slane %v626, 5
  %v629 = vsel %vm235, %v624, %v628
  %v630 = vshrl.u32 %v208, 16
  %v632 = vrot.slane %v630, 4
  %v633 = vor.u32 %v632, %v628
  %v634 = vrot.slane %v633, 4
  %v636 = vshll.u32 %v209, 16
  %v638 = vrot.slane %v636, 5
  %v639 = vsel %vm235, %v634, %v638
  %v640 = vshrl.u32 %v209, 16
  %v642 = vrot.slane %v640, 4
  %v643 = vor.u32 %v642, %v638
  %v644 = vrot.slane %v643, 4
  %v646 = vshll.u32 %v210, 16
  %v648 = vrot.slane %v646, 5
  %v649 = vsel %vm235, %v644, %v648
  %v650 = vshrl.u32 %v210, 16
  %v652 = vrot.slane %v650, 4
  %v653 = vor.u32 %v652, %v648
  %v654 = vrot.slane %v653, 4
  %v656 = vshll.u32 %v211, 16
  %v658 = vrot.slane %v656, 5
  %v659 = vsel %vm235, %v654, %v658
  %v660 = vshrl.u32 %v211, 16
  %v662 = vrot.slane %v660, 4
  %v663 = vor.u32 %v662, %v658
  %v664 = vrot.slane %v663, 4
  %v666 = vshll.u32 %v212, 16
  %v668 = vrot.slane %v666, 5
  %v669 = vsel %vm235, %v664, %v668
  %v670 = vshrl.u32 %v212, 16
  %v672 = vrot.slane %v670, 4
  %v673 = vor.u32 %v672, %v668
  %v674 = vrot.slane %v673, 4
  %v676 = vshll.u32 %v213, 16
  %v678 = vrot.slane %v676, 5
  %v679 = vsel %vm235, %v674, %v678
  %v680 = vshrl.u32 %v213, 16
  %v682 = vrot.slane %v680, 4
  %v683 = vor.u32 %v682, %v678
  %v684 = vrot.slane %v683, 4
  %v686 = vshll.u32 %v214, 16
  %v688 = vrot.slane %v686, 5
  %v689 = vsel %vm235, %v684, %v688
  %v690 = vshrl.u32 %v214, 16
  %v692 = vrot.slane %v690, 4
  %v693 = vor.u32 %v692, %v688
  %v694 = vrot.slane %v693, 4
  %v696 = vshll.u32 %v215, 16
  %v698 = vrot.slane %v696, 5
  %v699 = vsel %vm235, %v694, %v698
  %v700 = vshrl.u32 %v215, 16
  %v702 = vrot.slane %v700, 4
  %v703 = vor.u32 %v702, %v698
  %v704 = vrot.slane %v703, 4
  %v706 = vshll.u32 %v216, 16
  %v708 = vrot.slane %v706, 5
  %v709 = vsel %vm235, %v704, %v708
  %v710 = vshrl.u32 %v216, 16
  %v712 = vrot.slane %v710, 4
  %v713 = vor.u32 %v712, %v708
  %v714 = vrot.slane %v713, 4
  %v716 = vshll.u32 %v217, 16
  %v718 = vrot.slane %v716, 5
  %v719 = vsel %vm235, %v714, %v718
  %v720 = vshrl.u32 %v217, 16
  %v722 = vrot.slane %v720, 4
  %v723 = vor.u32 %v722, %v718
  %v724 = vrot.slane %v723, 4
  %v726 = vshll.u32 %v218, 16
  %v728 = vrot.slane %v726, 5
  %v729 = vsel %vm235, %v724, %v728
  %v730 = vshrl.u32 %v218, 16
  %v732 = vrot.slane %v730, 4
  %v733 = vor.u32 %v732, %v728
  %v734 = vrot.slane %v733, 4
  %v736 = vshll.u32 %v219, 16
  %v738 = vrot.slane %v736, 5
  %v739 = vsel %vm235, %v734, %v738
  %v740 = vshrl.u32 %v219, 16
  %v742 = vrot.slane %v740, 4
  %v743 = vor.u32 %v742, %v738
  %v744 = vrot.slane %v743, 4
  %v746 = vshll.u32 %v220, 16
  %v748 = vrot.slane %v746, 5
  %v749 = vsel %vm235, %v744, %v748
  %v750 = vshrl.u32 %v220, 16
  %v752 = vrot.slane %v750, 4
  %v753 = vor.u32 %v752, %v748
  %v754 = vrot.slane %v753, 4
  %v756 = vshll.u32 %v221, 16
  %v758 = vrot.slane %v756, 5
  %v759 = vsel %vm235, %v754, %v758
  %v760 = vshrl.u32 %v221, 16
  %v762 = vrot.slane %v760, 4
  %v763 = vor.u32 %v762, %v758
  %v764 = vrot.slane %v763, 4
  %v766 = vshll.u32 %v222, 16
  %v768 = vrot.slane %v766, 5
  %v769 = vsel %vm235, %v764, %v768
  %v770 = vshrl.u32 %v222, 16
  %v772 = vrot.slane %v770, 4
  %v773 = vor.u32 %v772, %v768
  %v774 = vrot.slane %v773, 4
  %v776 = vshll.u32 %v223, 16
  %v778 = vrot.slane %v776, 5
  %v779 = vsel %vm235, %v774, %v778
  %v780 = vshrl.u32 %v223, 16
  %v782 = vrot.slane %v780, 4
  %v783 = vor.u32 %v782, %v778
  %v784 = vrot.slane %v783, 4
  %v786 = vshll.u32 %v224, 16
  %v788 = vrot.slane %v786, 5
  %v789 = vsel %vm235, %v784, %v788
  %v790 = vshrl.u32 %v224, 16
  %v792 = vrot.slane %v790, 4
  %v793 = vor.u32 %v792, %v788
  %v794 = vrot.slane %v793, 4
  %v796 = vshll.u32 %v225, 16
  %v798 = vrot.slane %v796, 5
  %v799 = vsel %vm235, %v794, %v798
  %v800 = vshrl.u32 %v225, 16
  %v802 = vrot.slane %v800, 4
  %v803 = vor.u32 %v802, %v798
  %v804 = vrot.slane %v803, 4
  %v806 = vshll.u32 %v226, 16
  %v808 = vrot.slane %v806, 5
  %v809 = vsel %vm235, %v804, %v808
  %v810 = vshrl.u32 %v226, 16
  %v812 = vrot.slane %v810, 4
  %v813 = vor.u32 %v812, %v808
  %v814 = vrot.slane %v813, 4
  %v816 = vshll.u32 %v227, 16
  %v818 = vrot.slane %v816, 5
  %v819 = vsel %vm235, %v814, %v818
  %v820 = vshrl.u32 %v227, 16
  %v822 = vrot.slane %v820, 4
  %v823 = vor.u32 %v822, %v818
  %v824 = vrot.slane %v823, 4
  %v826 = vshll.u32 %v228, 16
  %v828 = vrot.slane %v826, 5
  %v829 = vsel %vm235, %v824, %v828
  %v830 = vshrl.u32 %v228, 16
  %v832 = vrot.slane %v830, 4
  %v833 = vor.u32 %v832, %v828
  %v834 = vrot.slane %v833, 4
  %v836 = vshll.u32 %v229, 16
  %v838 = vrot.slane %v836, 5
  %v839 = vsel %vm235, %v834, %v838
  %v840 = vshrl.u32 %v229, 16
  %v842 = vrot.slane %v840, 4
  %v843 = vor.u32 %v842, %v838
  %v844 = vrot.slane %v843, 4
  %v846 = vshll.u32 %v230, 16
  %v848 = vrot.slane %v846, 5
  %v849 = vsel %vm235, %v844, %v848
  %v850 = vshrl.u32 %v230, 16
  %v852 = vrot.slane %v850, 4
  %v853 = vor.u32 %v852, %v848
  %v854 = vrot.slane %v853, 4
  %v856 = vshll.u32 %v231, 16
  %v858 = vrot.slane %v856, 5
  %v859 = vsel %vm235, %v854, %v858
  %v860 = vshrl.u32 %v231, 16
  %v862 = vrot.slane %v860, 4
  %v863 = vor.u32 %v862, %v858
  %v864 = vrot.slane %v863, 4
  %v866 = vshll.u32 %v232, 16
  %v868 = vrot.slane %v866, 5
  %v869 = vsel %vm235, %v864, %v868
  %v870 = vshrl.u32 %v232, 16
  %v872 = vrot.slane %v870, 4
  %v873 = vor.u32 %v872, %v868
  %v874 = vrot.slane %v873, 4
  %875 = vrot.lane.b32.xlu0 %v249, 4
  %v876 = vpop.permute.xlu0 %875
  %877 = vrot.lane.b32.xlu0 %v259, 4
  %v878 = vpop.permute.xlu0 %877
  %879 = vrot.lane.b32.xlu0 %v269, 4
  %v880 = vpop.permute.xlu0 %879
  %881 = vrot.lane.b32.xlu0 %v279, 4
  %v882 = vpop.permute.xlu0 %881
  %883 = vrot.lane.b32.xlu0 %v289, 4
  %v884 = vpop.permute.xlu0 %883
  %885 = vrot.lane.b32.xlu0 %v299, 4
  %v886 = vpop.permute.xlu0 %885
  %887 = vrot.lane.b32.xlu0 %v309, 4
  %v888 = vpop.permute.xlu0 %887
  %889 = vrot.lane.b32.xlu0 %v319, 4
  %v890 = vpop.permute.xlu0 %889
  %891 = vrot.lane.b32.xlu0 %v329, 4
  %v892 = vpop.permute.xlu0 %891
  %893 = vrot.lane.b32.xlu0 %v339, 4
  %v894 = vpop.permute.xlu0 %893
  %895 = vrot.lane.b32.xlu0 %v349, 4
  %v896 = vpop.permute.xlu0 %895
  %897 = vrot.lane.b32.xlu0 %v359, 4
  %v898 = vpop.permute.xlu0 %897
  %899 = vrot.lane.b32.xlu0 %v369, 4
  %v900 = vpop.permute.xlu0 %899
  %901 = vrot.lane.b32.xlu0 %v379, 4
  %v902 = vpop.permute.xlu0 %901
  %903 = vrot.lane.b32.xlu0 %v389, 4
  %v904 = vpop.permute.xlu0 %903
  %905 = vrot.lane.b32.xlu0 %v399, 4
  %v906 = vpop.permute.xlu0 %905
  %907 = vrot.lane.b32.xlu0 %v409, 4
  %v908 = vpop.permute.xlu0 %907
  %909 = vrot.lane.b32.xlu0 %v419, 4
  %v910 = vpop.permute.xlu0 %909
  %911 = vrot.lane.b32.xlu0 %v429, 4
  %v912 = vpop.permute.xlu0 %911
  %913 = vrot.lane.b32.xlu0 %v439, 4
  %v914 = vpop.permute.xlu0 %913
  %915 = vrot.lane.b32.xlu0 %v449, 4
  %v916 = vpop.permute.xlu0 %915
  %917 = vrot.lane.b32.xlu0 %v459, 4
  %v918 = vpop.permute.xlu0 %917
  %919 = vrot.lane.b32.xlu0 %v469, 4
  %v920 = vpop.permute.xlu0 %919
  %921 = vrot.lane.b32.xlu0 %v479, 4
  %v922 = vpop.permute.xlu0 %921
  %923 = vrot.lane.b32.xlu0 %v489, 4
  %v924 = vpop.permute.xlu0 %923
  %925 = vrot.lane.b32.xlu0 %v499, 4
  %v926 = vpop.permute.xlu0 %925
  %927 = vrot.lane.b32.xlu0 %v509, 4
  %v928 = vpop.permute.xlu0 %927
  %929 = vrot.lane.b32.xlu0 %v519, 4
  %v930 = vpop.permute.xlu0 %929
  %931 = vrot.lane.b32.xlu0 %v529, 4
  %v932 = vpop.permute.xlu0 %931
  %933 = vrot.lane.b32.xlu0 %v539, 4
  %v934 = vpop.permute.xlu0 %933
  %935 = vrot.lane.b32.xlu0 %v549, 4
  %v936 = vpop.permute.xlu0 %935
  %937 = vrot.lane.b32.xlu0 %v559, 4
  %v938 = vpop.permute.xlu0 %937
  %939 = vrot.lane.b32.xlu0 %v569, 4
  %v940 = vpop.permute.xlu0 %939
  %941 = vrot.lane.b32.xlu0 %v579, 4
  %v942 = vpop.permute.xlu0 %941
  %943 = vrot.lane.b32.xlu0 %v589, 4
  %v944 = vpop.permute.xlu0 %943
  %945 = vrot.lane.b32.xlu0 %v599, 4
  %v946 = vpop.permute.xlu0 %945
  %947 = vrot.lane.b32.xlu0 %v609, 4
  %v948 = vpop.permute.xlu0 %947
  %949 = vrot.lane.b32.xlu0 %v619, 4
  %v950 = vpop.permute.xlu0 %949
  %951 = vrot.lane.b32.xlu0 %v629, 4
  %v952 = vpop.permute.xlu0 %951
  %953 = vrot.lane.b32.xlu0 %v639, 4
  %v954 = vpop.permute.xlu0 %953
  %955 = vrot.lane.b32.xlu0 %v649, 4
  %v956 = vpop.permute.xlu0 %955
  %957 = vrot.lane.b32.xlu0 %v659, 4
  %v958 = vpop.permute.xlu0 %957
  %959 = vrot.lane.b32.xlu0 %v669, 4
  %v960 = vpop.permute.xlu0 %959
  %961 = vrot.lane.b32.xlu0 %v679, 4
  %v962 = vpop.permute.xlu0 %961
  %963 = vrot.lane.b32.xlu0 %v689, 4
  %v964 = vpop.permute.xlu0 %963
  %965 = vrot.lane.b32.xlu0 %v699, 4
  %v966 = vpop.permute.xlu0 %965
  %967 = vrot.lane.b32.xlu0 %v709, 4
  %v968 = vpop.permute.xlu0 %967
  %969 = vrot.lane.b32.xlu0 %v719, 4
  %v970 = vpop.permute.xlu0 %969
  %971 = vrot.lane.b32.xlu0 %v729, 4
  %v972 = vpop.permute.xlu0 %971
  %973 = vrot.lane.b32.xlu0 %v739, 4
  %v974 = vpop.permute.xlu0 %973
  %975 = vrot.lane.b32.xlu0 %v749, 4
  %v976 = vpop.permute.xlu0 %975
  %977 = vrot.lane.b32.xlu0 %v759, 4
  %v978 = vpop.permute.xlu0 %977
  %979 = vrot.lane.b32.xlu0 %v769, 4
  %v980 = vpop.permute.xlu0 %979
  %981 = vrot.lane.b32.xlu0 %v779, 4
  %v982 = vpop.permute.xlu0 %981
  %983 = vrot.lane.b32.xlu0 %v789, 4
  %v984 = vpop.permute.xlu0 %983
  %985 = vrot.lane.b32.xlu0 %v799, 4
  %v986 = vpop.permute.xlu0 %985
  %987 = vrot.lane.b32.xlu0 %v809, 4
  %v988 = vpop.permute.xlu0 %987
  %989 = vrot.lane.b32.xlu0 %v819, 4
  %v990 = vpop.permute.xlu0 %989
  %991 = vrot.lane.b32.xlu0 %v829, 4
  %v992 = vpop.permute.xlu0 %991
  %993 = vrot.lane.b32.xlu0 %v839, 4
  %v994 = vpop.permute.xlu0 %993
  %995 = vrot.lane.b32.xlu0 %v849, 4
  %v996 = vpop.permute.xlu0 %995
  %997 = vrot.lane.b32.xlu0 %v859, 4
  %v998 = vpop.permute.xlu0 %997
  %999 = vrot.lane.b32.xlu0 %v869, 4
  %v1000 = vpop.permute.xlu0 %999
  %1001 = vrot.lane.b32.xlu0 %v874, 4
  %v1002 = vpop.permute.xlu0 %1001
  %vm1067 = vcmask 60448
  %1068 = vst.msk [vmem:[#allocation2] sm:$0xf] %vm1067, %v876
  %1069 = vst.msk [vmem:[#allocation2 + $0x4] sm:$0xf] %vm1067, %v878
  %1070 = vst.msk [vmem:[#allocation2 + $0x8] sm:$0xf] %vm1067, %v880
  %1071 = vst.msk [vmem:[#allocation2 + $0xc] sm:$0xf] %vm1067, %v882
  %1072 = vst.msk [vmem:[#allocation2 + $0x10] sm:$0xf] %vm1067, %v884
  %1073 = vst.msk [vmem:[#allocation2 + $0x14] sm:$0xf] %vm1067, %v886
  %1074 = vst.msk [vmem:[#allocation2 + $0x18] sm:$0xf] %vm1067, %v888
  %1075 = vst.msk [vmem:[#allocation2 + $0x1c] sm:$0xf] %vm1067, %v890
  %1076 = vst.msk [vmem:[#allocation2 + $0x20] sm:$0xf] %vm1067, %v892
  %1077 = vst.msk [vmem:[#allocation2 + $0x24] sm:$0xf] %vm1067, %v894
  %1078 = vst.msk [vmem:[#allocation2 + $0x28] sm:$0xf] %vm1067, %v896
  %1079 = vst.msk [vmem:[#allocation2 + $0x2c] sm:$0xf] %vm1067, %v898
  %1080 = vst.msk [vmem:[#allocation2 + $0x30] sm:$0xf] %vm1067, %v900
  %1081 = vst.msk [vmem:[#allocation2 + $0x34] sm:$0xf] %vm1067, %v902
  %1082 = vst.msk [vmem:[#allocation2 + $0x38] sm:$0xf] %vm1067, %v904
  %1083 = vst.msk [vmem:[#allocation2 + $0x3c] sm:$0xf] %vm1067, %v906
  %1084 = vst.msk [vmem:[#allocation2 + $0x40] sm:$0xf] %vm1067, %v908
  %1085 = vst.msk [vmem:[#allocation2 + $0x44] sm:$0xf] %vm1067, %v910
  %1086 = vst.msk [vmem:[#allocation2 + $0x48] sm:$0xf] %vm1067, %v912
  %1087 = vst.msk [vmem:[#allocation2 + $0x4c] sm:$0xf] %vm1067, %v914
  %1088 = vst.msk [vmem:[#allocation2 + $0x50] sm:$0xf] %vm1067, %v916
  %1089 = vst.msk [vmem:[#allocation2 + $0x54] sm:$0xf] %vm1067, %v918
  %1090 = vst.msk [vmem:[#allocation2 + $0x58] sm:$0xf] %vm1067, %v920
  %1091 = vst.msk [vmem:[#allocation2 + $0x5c] sm:$0xf] %vm1067, %v922
  %1092 = vst.msk [vmem:[#allocation2 + $0x60] sm:$0xf] %vm1067, %v924
  %1093 = vst.msk [vmem:[#allocation2 + $0x64] sm:$0xf] %vm1067, %v926
  %1094 = vst.msk [vmem:[#allocation2 + $0x68] sm:$0xf] %vm1067, %v928
  %1095 = vst.msk [vmem:[#allocation2 + $0x6c] sm:$0xf] %vm1067, %v930
  %1096 = vst.msk [vmem:[#allocation2 + $0x70] sm:$0xf] %vm1067, %v932
  %1097 = vst.msk [vmem:[#allocation2 + $0x74] sm:$0xf] %vm1067, %v934
  %1098 = vst.msk [vmem:[#allocation2 + $0x78] sm:$0xf] %vm1067, %v936
  %1099 = vst.msk [vmem:[#allocation2 + $0x7c] sm:$0xf] %vm1067, %v938
  %1100 = vst.msk [vmem:[#allocation2 + $0x80] sm:$0xf] %vm1067, %v940
  %1101 = vst.msk [vmem:[#allocation2 + $0x84] sm:$0xf] %vm1067, %v942
  %1102 = vst.msk [vmem:[#allocation2 + $0x88] sm:$0xf] %vm1067, %v944
  %1103 = vst.msk [vmem:[#allocation2 + $0x8c] sm:$0xf] %vm1067, %v946
  %1104 = vst.msk [vmem:[#allocation2 + $0x90] sm:$0xf] %vm1067, %v948
  %1105 = vst.msk [vmem:[#allocation2 + $0x94] sm:$0xf] %vm1067, %v950
  %1106 = vst.msk [vmem:[#allocation2 + $0x98] sm:$0xf] %vm1067, %v952
  %1107 = vst.msk [vmem:[#allocation2 + $0x9c] sm:$0xf] %vm1067, %v954
  %1108 = vst.msk [vmem:[#allocation2 + $0xa0] sm:$0xf] %vm1067, %v956
  %1109 = vst.msk [vmem:[#allocation2 + $0xa4] sm:$0xf] %vm1067, %v958
  %1110 = vst.msk [vmem:[#allocation2 + $0xa8] sm:$0xf] %vm1067, %v960
  %1111 = vst.msk [vmem:[#allocation2 + $0xac] sm:$0xf] %vm1067, %v962
  %1112 = vst.msk [vmem:[#allocation2 + $0xb0] sm:$0xf] %vm1067, %v964
  %1113 = vst.msk [vmem:[#allocation2 + $0xb4] sm:$0xf] %vm1067, %v966
  %1114 = vst.msk [vmem:[#allocation2 + $0xb8] sm:$0xf] %vm1067, %v968
  %1115 = vst.msk [vmem:[#allocation2 + $0xbc] sm:$0xf] %vm1067, %v970
  %1116 = vst.msk [vmem:[#allocation2 + $0xc0] sm:$0xf] %vm1067, %v972
  %1117 = vst.msk [vmem:[#allocation2 + $0xc4] sm:$0xf] %vm1067, %v974
  %1118 = vst.msk [vmem:[#allocation2 + $0xc8] sm:$0xf] %vm1067, %v976
  %1119 = vst.msk [vmem:[#allocation2 + $0xcc] sm:$0xf] %vm1067, %v978
  %1120 = vst.msk [vmem:[#allocation2 + $0xd0] sm:$0xf] %vm1067, %v980
  %1121 = vst.msk [vmem:[#allocation2 + $0xd4] sm:$0xf] %vm1067, %v982
  %1122 = vst.msk [vmem:[#allocation2 + $0xd8] sm:$0xf] %vm1067, %v984
  %1123 = vst.msk [vmem:[#allocation2 + $0xdc] sm:$0xf] %vm1067, %v986
  %1124 = vst.msk [vmem:[#allocation2 + $0xe0] sm:$0xf] %vm1067, %v988
  %1125 = vst.msk [vmem:[#allocation2 + $0xe4] sm:$0xf] %vm1067, %v990
  %1126 = vst.msk [vmem:[#allocation2 + $0xe8] sm:$0xf] %vm1067, %v992
  %1127 = vst.msk [vmem:[#allocation2 + $0xec] sm:$0xf] %vm1067, %v994
  %1128 = vst.msk [vmem:[#allocation2 + $0xf0] sm:$0xf] %vm1067, %v996
  %1129 = vst.msk [vmem:[#allocation2 + $0xf4] sm:$0xf] %vm1067, %v998
  %1130 = vst.msk [vmem:[#allocation2 + $0xf8] sm:$0xf] %vm1067, %v1000
  %vm1131 = vcmask 60448
  %vm1132 = vmand %vm1131, %vm233
  %v1133 = vld [vmem:[#allocation2 + $0xfc] sm:$0xf]
  %v1134 = vsel %vm1132, %v1002, %v1133
  %1135 = vst [vmem:[#allocation2 + $0xfc] sm:$0xf] %v1134
  %v1136 = vld [vmem:[%s36] sm:$0x1]
  %v1138 = vshll.u32 %v1136, 16
  %v1140 = vrot.slane %v1138, 5
  %1141 = vrot.lane.b32.xlu0 %v1140, 4
  %v1142 = vpop.permute.xlu0 %1141
  %vm1144 = vcmask 60451
  %vm1145 = vsmask.f32 7950
  %vm1146 = vmand %vm1144, %vm1145
  %v1147 = vld [vmem:[#allocation2 + $0xfc] sm:$0x8]
  %v1148 = vsel %vm1146, %v1142, %v1147
  %1149 = vst [vmem:[#allocation2 + $0xfc] sm:$0x8] %v1148
  %v1150 = vld [vmem:[%s0] sm:$0xe]
  %v1151 = vld [vmem:[%s0 + $0x4] sm:$0xf]
  %v1152 = vld [vmem:[%s0 + $0x8] sm:$0xf]
  %v1153 = vld [vmem:[%s0 + $0xc] sm:$0xf]
  %v1154 = vld [vmem:[%s0 + $0x10] sm:$0xf]
  %v1155 = vld [vmem:[%s0 + $0x14] sm:$0xf]
  %v1156 = vld [vmem:[%s0 + $0x18] sm:$0xf]
  %v1157 = vld [vmem:[%s0 + $0x1c] sm:$0xf]
  %v1158 = vld [vmem:[%s0 + $0x20] sm:$0xf]
  %v1159 = vld [vmem:[%s0 + $0x24] sm:$0xf]
  %v1160 = vld [vmem:[%s0 + $0x28] sm:$0xf]
  %v1161 = vld [vmem:[%s0 + $0x2c] sm:$0xf]
  %v1162 = vld [vmem:[%s0 + $0x30] sm:$0xf]
  %v1163 = vld [vmem:[%s0 + $0x34] sm:$0xf]
  %v1164 = vld [vmem:[%s0 + $0x38] sm:$0xf]
  %v1165 = vld [vmem:[%s0 + $0x3c] sm:$0xf]
  %v1166 = vld [vmem:[%s0 + $0x40] sm:$0xf]
  %v1167 = vld [vmem:[%s0 + $0x44] sm:$0xf]
  %v1168 = vld [vmem:[%s0 + $0x48] sm:$0xf]
  %v1169 = vld [vmem:[%s0 + $0x4c] sm:$0xf]
  %v1170 = vld [vmem:[%s0 + $0x50] sm:$0xf]
  %v1171 = vld [vmem:[%s0 + $0x54] sm:$0xf]
  %v1172 = vld [vmem:[%s0 + $0x58] sm:$0xf]
  %v1173 = vld [vmem:[%s0 + $0x5c] sm:$0xf]
  %v1174 = vld [vmem:[%s0 + $0x60] sm:$0xf]
  %v1175 = vld [vmem:[%s0 + $0x64] sm:$0xf]
  %v1176 = vld [vmem:[%s0 + $0x68] sm:$0xf]
  %v1177 = vld [vmem:[%s0 + $0x6c] sm:$0xf]
  %v1178 = vld [vmem:[%s0 + $0x70] sm:$0xf]
  %v1179 = vld [vmem:[%s0 + $0x74] sm:$0xf]
  %v1180 = vld [vmem:[%s0 + $0x78] sm:$0xf]
  %v1181 = vld [vmem:[%s0 + $0x7c] sm:$0xf]
  %v1182 = vld [vmem:[%s0 + $0x80] sm:$0xf]
  %v1183 = vld [vmem:[%s0 + $0x84] sm:$0xf]
  %v1184 = vld [vmem:[%s0 + $0x88] sm:$0xf]
  %v1185 = vld [vmem:[%s0 + $0x8c] sm:$0xf]
  %v1186 = vld [vmem:[%s0 + $0x90] sm:$0xf]
  %v1187 = vld [vmem:[%s0 + $0x94] sm:$0xf]
  %v1188 = vld [vmem:[%s0 + $0x98] sm:$0xf]
  %v1189 = vld [vmem:[%s0 + $0x9c] sm:$0xf]
  %v1190 = vld [vmem:[%s0 + $0xa0] sm:$0xf]
  %v1191 = vld [vmem:[%s0 + $0xa4] sm:$0xf]
  %v1192 = vld [vmem:[%s0 + $0xa8] sm:$0xf]
  %v1193 = vld [vmem:[%s0 + $0xac] sm:$0xf]
  %v1194 = vld [vmem:[%s0 + $0xb0] sm:$0xf]
  %v1195 = vld [vmem:[%s0 + $0xb4] sm:$0xf]
  %v1196 = vld [vmem:[%s0 + $0xb8] sm:$0xf]
  %v1197 = vld [vmem:[%s0 + $0xbc] sm:$0xf]
  %v1198 = vld [vmem:[%s0 + $0xc0] sm:$0xf]
  %v1199 = vld [vmem:[%s0 + $0xc4] sm:$0xf]
  %v1200 = vld [vmem:[%s0 + $0xc8] sm:$0xf]
  %v1201 = vld [vmem:[%s0 + $0xcc] sm:$0xf]
  %v1202 = vld [vmem:[%s0 + $0xd0] sm:$0xf]
  %v1203 = vld [vmem:[%s0 + $0xd4] sm:$0xf]
  %v1204 = vld [vmem:[%s0 + $0xd8] sm:$0xf]
  %v1205 = vld [vmem:[%s0 + $0xdc] sm:$0xf]
  %v1206 = vld [vmem:[%s0 + $0xe0] sm:$0xf]
  %v1207 = vld [vmem:[%s0 + $0xe4] sm:$0xf]
  %v1208 = vld [vmem:[%s0 + $0xe8] sm:$0xf]
  %v1209 = vld [vmem:[%s0 + $0xec] sm:$0xf]
  %v1210 = vld [vmem:[%s0 + $0xf0] sm:$0xf]
  %v1211 = vld [vmem:[%s0 + $0xf4] sm:$0xf]
  %v1212 = vld [vmem:[%s0 + $0xf8] sm:$0xf]
  %v1213 = vld [vmem:[%s0 + $0xfc] sm:$0xf]
  %vm1278 = vcmask 1042432
  %vm1279 = vcmask 1046532
  %vm1280 = vmor %vm1278, %vm1279
  %v1281 = vrot.slane %v1150, 5
  %v1282 = vrot.slane %v1281, 4
  %v1283 = vrot.slane %v1151, 5
  %v1284 = vsel %vm1280, %v1282, %v1283
  %v1285 = vrot.slane %v1283, 4
  %v1286 = vrot.slane %v1152, 5
  %v1287 = vsel %vm1280, %v1285, %v1286
  %v1288 = vrot.slane %v1286, 4
  %v1289 = vrot.slane %v1153, 5
  %v1290 = vsel %vm1280, %v1288, %v1289
  %v1291 = vrot.slane %v1289, 4
  %v1292 = vrot.slane %v1154, 5
  %v1293 = vsel %vm1280, %v1291, %v1292
  %v1294 = vrot.slane %v1292, 4
  %v1295 = vrot.slane %v1155, 5
  %v1296 = vsel %vm1280, %v1294, %v1295
  %v1297 = vrot.slane %v1295, 4
  %v1298 = vrot.slane %v1156, 5
  %v1299 = vsel %vm1280, %v1297, %v1298
  %v1300 = vrot.slane %v1298, 4
  %v1301 = vrot.slane %v1157, 5
  %v1302 = vsel %vm1280, %v1300, %v1301
  %v1303 = vrot.slane %v1301, 4
  %v1304 = vrot.slane %v1158, 5
  %v1305 = vsel %vm1280, %v1303, %v1304
  %v1306 = vrot.slane %v1304, 4
  %v1307 = vrot.slane %v1159, 5
  %v1308 = vsel %vm1280, %v1306, %v1307
  %v1309 = vrot.slane %v1307, 4
  %v1310 = vrot.slane %v1160, 5
  %v1311 = vsel %vm1280, %v1309, %v1310
  %v1312 = vrot.slane %v1310, 4
  %v1313 = vrot.slane %v1161, 5
  %v1314 = vsel %vm1280, %v1312, %v1313
  %v1315 = vrot.slane %v1313, 4
  %v1316 = vrot.slane %v1162, 5
  %v1317 = vsel %vm1280, %v1315, %v1316
  %v1318 = vrot.slane %v1316, 4
  %v1319 = vrot.slane %v1163, 5
  %v1320 = vsel %vm1280, %v1318, %v1319
  %v1321 = vrot.slane %v1319, 4
  %v1322 = vrot.slane %v1164, 5
  %v1323 = vsel %vm1280, %v1321, %v1322
  %v1324 = vrot.slane %v1322, 4
  %v1325 = vrot.slane %v1165, 5
  %v1326 = vsel %vm1280, %v1324, %v1325
  %v1327 = vrot.slane %v1325, 4
  %v1328 = vrot.slane %v1166, 5
  %v1329 = vsel %vm1280, %v1327, %v1328
  %v1330 = vrot.slane %v1328, 4
  %v1331 = vrot.slane %v1167, 5
  %v1332 = vsel %vm1280, %v1330, %v1331
  %v1333 = vrot.slane %v1331, 4
  %v1334 = vrot.slane %v1168, 5
  %v1335 = vsel %vm1280, %v1333, %v1334
  %v1336 = vrot.slane %v1334, 4
  %v1337 = vrot.slane %v1169, 5
  %v1338 = vsel %vm1280, %v1336, %v1337
  %v1339 = vrot.slane %v1337, 4
  %v1340 = vrot.slane %v1170, 5
  %v1341 = vsel %vm1280, %v1339, %v1340
  %v1342 = vrot.slane %v1340, 4
  %v1343 = vrot.slane %v1171, 5
  %v1344 = vsel %vm1280, %v1342, %v1343
  %v1345 = vrot.slane %v1343, 4
  %v1346 = vrot.slane %v1172, 5
  %v1347 = vsel %vm1280, %v1345, %v1346
  %v1348 = vrot.slane %v1346, 4
  %v1349 = vrot.slane %v1173, 5
  %v1350 = vsel %vm1280, %v1348, %v1349
  %v1351 = vrot.slane %v1349, 4
  %v1352 = vrot.slane %v1174, 5
  %v1353 = vsel %vm1280, %v1351, %v1352
  %v1354 = vrot.slane %v1352, 4
  %v1355 = vrot.slane %v1175, 5
  %v1356 = vsel %vm1280, %v1354, %v1355
  %v1357 = vrot.slane %v1355, 4
  %v1358 = vrot.slane %v1176, 5
  %v1359 = vsel %vm1280, %v1357, %v1358
  %v1360 = vrot.slane %v1358, 4
  %v1361 = vrot.slane %v1177, 5
  %v1362 = vsel %vm1280, %v1360, %v1361
  %v1363 = vrot.slane %v1361, 4
  %v1364 = vrot.slane %v1178, 5
  %v1365 = vsel %vm1280, %v1363, %v1364
  %v1366 = vrot.slane %v1364, 4
  %v1367 = vrot.slane %v1179, 5
  %v1368 = vsel %vm1280, %v1366, %v1367
  %v1369 = vrot.slane %v1367, 4
  %v1370 = vrot.slane %v1180, 5
  %v1371 = vsel %vm1280, %v1369, %v1370
  %v1372 = vrot.slane %v1370, 4
  %v1373 = vrot.slane %v1181, 5
  %v1374 = vsel %vm1280, %v1372, %v1373
  %v1375 = vrot.slane %v1373, 4
  %v1376 = vrot.slane %v1182, 5
  %v1377 = vsel %vm1280, %v1375, %v1376
  %v1378 = vrot.slane %v1376, 4
  %v1379 = vrot.slane %v1183, 5
  %v1380 = vsel %vm1280, %v1378, %v1379
  %v1381 = vrot.slane %v1379, 4
  %v1382 = vrot.slane %v1184, 5
  %v1383 = vsel %vm1280, %v1381, %v1382
  %v1384 = vrot.slane %v1382, 4
  %v1385 = vrot.slane %v1185, 5
  %v1386 = vsel %vm1280, %v1384, %v1385
  %v1387 = vrot.slane %v1385, 4
  %v1388 = vrot.slane %v1186, 5
  %v1389 = vsel %vm1280, %v1387, %v1388
  %v1390 = vrot.slane %v1388, 4
  %v1391 = vrot.slane %v1187, 5
  %v1392 = vsel %vm1280, %v1390, %v1391
  %v1393 = vrot.slane %v1391, 4
  %v1394 = vrot.slane %v1188, 5
  %v1395 = vsel %vm1280, %v1393, %v1394
  %v1396 = vrot.slane %v1394, 4
  %v1397 = vrot.slane %v1189, 5
  %v1398 = vsel %vm1280, %v1396, %v1397
  %v1399 = vrot.slane %v1397, 4
  %v1400 = vrot.slane %v1190, 5
  %v1401 = vsel %vm1280, %v1399, %v1400
  %v1402 = vrot.slane %v1400, 4
  %v1403 = vrot.slane %v1191, 5
  %v1404 = vsel %vm1280, %v1402, %v1403
  %v1405 = vrot.slane %v1403, 4
  %v1406 = vrot.slane %v1192, 5
  %v1407 = vsel %vm1280, %v1405, %v1406
  %v1408 = vrot.slane %v1406, 4
  %v1409 = vrot.slane %v1193, 5
  %v1410 = vsel %vm1280, %v1408, %v1409
  %v1411 = vrot.slane %v1409, 4
  %v1412 = vrot.slane %v1194, 5
  %v1413 = vsel %vm1280, %v1411, %v1412
  %v1414 = vrot.slane %v1412, 4
  %v1415 = vrot.slane %v1195, 5
  %v1416 = vsel %vm1280, %v1414, %v1415
  %v1417 = vrot.slane %v1415, 4
  %v1418 = vrot.slane %v1196, 5
  %v1419 = vsel %vm1280, %v1417, %v1418
  %v1420 = vrot.slane %v1418, 4
  %v1421 = vrot.slane %v1197, 5
  %v1422 = vsel %vm1280, %v1420, %v1421
  %v1423 = vrot.slane %v1421, 4
  %v1424 = vrot.slane %v1198, 5
  %v1425 = vsel %vm1280, %v1423, %v1424
  %v1426 = vrot.slane %v1424, 4
  %v1427 = vrot.slane %v1199, 5
  %v1428 = vsel %vm1280, %v1426, %v1427
  %v1429 = vrot.slane %v1427, 4
  %v1430 = vrot.slane %v1200, 5
  %v1431 = vsel %vm1280, %v1429, %v1430
  %v1432 = vrot.slane %v1430, 4
  %v1433 = vrot.slane %v1201, 5
  %v1434 = vsel %vm1280, %v1432, %v1433
  %v1435 = vrot.slane %v1433, 4
  %v1436 = vrot.slane %v1202, 5
  %v1437 = vsel %vm1280, %v1435, %v1436
  %v1438 = vrot.slane %v1436, 4
  %v1439 = vrot.slane %v1203, 5
  %v1440 = vsel %vm1280, %v1438, %v1439
  %v1441 = vrot.slane %v1439, 4
  %v1442 = vrot.slane %v1204, 5
  %v1443 = vsel %vm1280, %v1441, %v1442
  %v1444 = vrot.slane %v1442, 4
  %v1445 = vrot.slane %v1205, 5
  %v1446 = vsel %vm1280, %v1444, %v1445
  %v1447 = vrot.slane %v1445, 4
  %v1448 = vrot.slane %v1206, 5
  %v1449 = vsel %vm1280, %v1447, %v1448
  %v1450 = vrot.slane %v1448, 4
  %v1451 = vrot.slane %v1207, 5
  %v1452 = vsel %vm1280, %v1450, %v1451
  %v1453 = vrot.slane %v1451, 4
  %v1454 = vrot.slane %v1208, 5
  %v1455 = vsel %vm1280, %v1453, %v1454
  %v1456 = vrot.slane %v1454, 4
  %v1457 = vrot.slane %v1209, 5
  %v1458 = vsel %vm1280, %v1456, %v1457
  %v1459 = vrot.slane %v1457, 4
  %v1460 = vrot.slane %v1210, 5
  %v1461 = vsel %vm1280, %v1459, %v1460
  %v1462 = vrot.slane %v1460, 4
  %v1463 = vrot.slane %v1211, 5
  %v1464 = vsel %vm1280, %v1462, %v1463
  %v1465 = vrot.slane %v1463, 4
  %v1466 = vrot.slane %v1212, 5
  %v1467 = vsel %vm1280, %v1465, %v1466
  %v1468 = vrot.slane %v1466, 4
  %v1469 = vrot.slane %v1213, 5
  %v1470 = vsel %vm1280, %v1468, %v1469
  %v1471 = vrot.slane %v1469, 4
  %1472 = vrot.lane.b32.xlu0 %v1284, 8
  %v1473 = vpop.permute.xlu0 %1472
  %1474 = vrot.lane.b32.xlu0 %v1287, 8
  %v1475 = vpop.permute.xlu0 %1474
  %1476 = vrot.lane.b32.xlu0 %v1290, 8
  %v1477 = vpop.permute.xlu0 %1476
  %1478 = vrot.lane.b32.xlu0 %v1293, 8
  %v1479 = vpop.permute.xlu0 %1478
  %1480 = vrot.lane.b32.xlu0 %v1296, 8
  %v1481 = vpop.permute.xlu0 %1480
  %1482 = vrot.lane.b32.xlu0 %v1299, 8
  %v1483 = vpop.permute.xlu0 %1482
  %1484 = vrot.lane.b32.xlu0 %v1302, 8
  %v1485 = vpop.permute.xlu0 %1484
  %1486 = vrot.lane.b32.xlu0 %v1305, 8
  %v1487 = vpop.permute.xlu0 %1486
  %1488 = vrot.lane.b32.xlu0 %v1308, 8
  %v1489 = vpop.permute.xlu0 %1488
  %1490 = vrot.lane.b32.xlu0 %v1311, 8
  %v1491 = vpop.permute.xlu0 %1490
  %1492 = vrot.lane.b32.xlu0 %v1314, 8
  %v1493 = vpop.permute.xlu0 %1492
  %1494 = vrot.lane.b32.xlu0 %v1317, 8
  %v1495 = vpop.permute.xlu0 %1494
  %1496 = vrot.lane.b32.xlu0 %v1320, 8
  %v1497 = vpop.permute.xlu0 %1496
  %1498 = vrot.lane.b32.xlu0 %v1323, 8
  %v1499 = vpop.permute.xlu0 %1498
  %1500 = vrot.lane.b32.xlu0 %v1326, 8
  %v1501 = vpop.permute.xlu0 %1500
  %1502 = vrot.lane.b32.xlu0 %v1329, 8
  %v1503 = vpop.permute.xlu0 %1502
  %1504 = vrot.lane.b32.xlu0 %v1332, 8
  %v1505 = vpop.permute.xlu0 %1504
  %1506 = vrot.lane.b32.xlu0 %v1335, 8
  %v1507 = vpop.permute.xlu0 %1506
  %1508 = vrot.lane.b32.xlu0 %v1338, 8
  %v1509 = vpop.permute.xlu0 %1508
  %1510 = vrot.lane.b32.xlu0 %v1341, 8
  %v1511 = vpop.permute.xlu0 %1510
  %1512 = vrot.lane.b32.xlu0 %v1344, 8
  %v1513 = vpop.permute.xlu0 %1512
  %1514 = vrot.lane.b32.xlu0 %v1347, 8
  %v1515 = vpop.permute.xlu0 %1514
  %1516 = vrot.lane.b32.xlu0 %v1350, 8
  %v1517 = vpop.permute.xlu0 %1516
  %1518 = vrot.lane.b32.xlu0 %v1353, 8
  %v1519 = vpop.permute.xlu0 %1518
  %1520 = vrot.lane.b32.xlu0 %v1356, 8
  %v1521 = vpop.permute.xlu0 %1520
  %1522 = vrot.lane.b32.xlu0 %v1359, 8
  %v1523 = vpop.permute.xlu0 %1522
  %1524 = vrot.lane.b32.xlu0 %v1362, 8
  %v1525 = vpop.permute.xlu0 %1524
  %1526 = vrot.lane.b32.xlu0 %v1365, 8
  %v1527 = vpop.permute.xlu0 %1526
  %1528 = vrot.lane.b32.xlu0 %v1368, 8
  %v1529 = vpop.permute.xlu0 %1528
  %1530 = vrot.lane.b32.xlu0 %v1371, 8
  %v1531 = vpop.permute.xlu0 %1530
  %1532 = vrot.lane.b32.xlu0 %v1374, 8
  %v1533 = vpop.permute.xlu0 %1532
  %1534 = vrot.lane.b32.xlu0 %v1377, 8
  %v1535 = vpop.permute.xlu0 %1534
  %1536 = vrot.lane.b32.xlu0 %v1380, 8
  %v1537 = vpop.permute.xlu0 %1536
  %1538 = vrot.lane.b32.xlu0 %v1383, 8
  %v1539 = vpop.permute.xlu0 %1538
  %1540 = vrot.lane.b32.xlu0 %v1386, 8
  %v1541 = vpop.permute.xlu0 %1540
  %1542 = vrot.lane.b32.xlu0 %v1389, 8
  %v1543 = vpop.permute.xlu0 %1542
  %1544 = vrot.lane.b32.xlu0 %v1392, 8
  %v1545 = vpop.permute.xlu0 %1544
  %1546 = vrot.lane.b32.xlu0 %v1395, 8
  %v1547 = vpop.permute.xlu0 %1546
  %1548 = vrot.lane.b32.xlu0 %v1398, 8
  %v1549 = vpop.permute.xlu0 %1548
  %1550 = vrot.lane.b32.xlu0 %v1401, 8
  %v1551 = vpop.permute.xlu0 %1550
  %1552 = vrot.lane.b32.xlu0 %v1404, 8
  %v1553 = vpop.permute.xlu0 %1552
  %1554 = vrot.lane.b32.xlu0 %v1407, 8
  %v1555 = vpop.permute.xlu0 %1554
  %1556 = vrot.lane.b32.xlu0 %v1410, 8
  %v1557 = vpop.permute.xlu0 %1556
  %1558 = vrot.lane.b32.xlu0 %v1413, 8
  %v1559 = vpop.permute.xlu0 %1558
  %1560 = vrot.lane.b32.xlu0 %v1416, 8
  %v1561 = vpop.permute.xlu0 %1560
  %1562 = vrot.lane.b32.xlu0 %v1419, 8
  %v1563 = vpop.permute.xlu0 %1562
  %1564 = vrot.lane.b32.xlu0 %v1422, 8
  %v1565 = vpop.permute.xlu0 %1564
  %1566 = vrot.lane.b32.xlu0 %v1425, 8
  %v1567 = vpop.permute.xlu0 %1566
  %1568 = vrot.lane.b32.xlu0 %v1428, 8
  %v1569 = vpop.permute.xlu0 %1568
  %1570 = vrot.lane.b32.xlu0 %v1431, 8
  %v1571 = vpop.permute.xlu0 %1570
  %1572 = vrot.lane.b32.xlu0 %v1434, 8
  %v1573 = vpop.permute.xlu0 %1572
  %1574 = vrot.lane.b32.xlu0 %v1437, 8
  %v1575 = vpop.permute.xlu0 %1574
  %1576 = vrot.lane.b32.xlu0 %v1440, 8
  %v1577 = vpop.permute.xlu0 %1576
  %1578 = vrot.lane.b32.xlu0 %v1443, 8
  %v1579 = vpop.permute.xlu0 %1578
  %1580 = vrot.lane.b32.xlu0 %v1446, 8
  %v1581 = vpop.permute.xlu0 %1580
  %1582 = vrot.lane.b32.xlu0 %v1449, 8
  %v1583 = vpop.permute.xlu0 %1582
  %1584 = vrot.lane.b32.xlu0 %v1452, 8
  %v1585 = vpop.permute.xlu0 %1584
  %1586 = vrot.lane.b32.xlu0 %v1455, 8
  %v1587 = vpop.permute.xlu0 %1586
  %1588 = vrot.lane.b32.xlu0 %v1458, 8
  %v1589 = vpop.permute.xlu0 %1588
  %1590 = vrot.lane.b32.xlu0 %v1461, 8
  %v1591 = vpop.permute.xlu0 %1590
  %1592 = vrot.lane.b32.xlu0 %v1464, 8
  %v1593 = vpop.permute.xlu0 %1592
  %1594 = vrot.lane.b32.xlu0 %v1467, 8
  %v1595 = vpop.permute.xlu0 %1594
  %1596 = vrot.lane.b32.xlu0 %v1470, 8
  %v1597 = vpop.permute.xlu0 %1596
  %1598 = vrot.lane.b32.xlu0 %v1471, 8
  %v1599 = vpop.permute.xlu0 %1598
  %vm1664 = vcmask 93248
  %1665 = vst.msk [vmem:[#allocation2] sm:$0xf] %vm1664, %v1473
  %1666 = vst.msk [vmem:[#allocation2 + $0x4] sm:$0xf] %vm1664, %v1475
  %1667 = vst.msk [vmem:[#allocation2 + $0x8] sm:$0xf] %vm1664, %v1477
  %1668 = vst.msk [vmem:[#allocation2 + $0xc] sm:$0xf] %vm1664, %v1479
  %1669 = vst.msk [vmem:[#allocation2 + $0x10] sm:$0xf] %vm1664, %v1481
  %1670 = vst.msk [vmem:[#allocation2 + $0x14] sm:$0xf] %vm1664, %v1483
  %1671 = vst.msk [vmem:[#allocation2 + $0x18] sm:$0xf] %vm1664, %v1485
  %1672 = vst.msk [vmem:[#allocation2 + $0x1c] sm:$0xf] %vm1664, %v1487
  %1673 = vst.msk [vmem:[#allocation2 + $0x20] sm:$0xf] %vm1664, %v1489
  %1674 = vst.msk [vmem:[#allocation2 + $0x24] sm:$0xf] %vm1664, %v1491
  %1675 = vst.msk [vmem:[#allocation2 + $0x28] sm:$0xf] %vm1664, %v1493
  %1676 = vst.msk [vmem:[#allocation2 + $0x2c] sm:$0xf] %vm1664, %v1495
  %1677 = vst.msk [vmem:[#allocation2 + $0x30] sm:$0xf] %vm1664, %v1497
  %1678 = vst.msk [vmem:[#allocation2 + $0x34] sm:$0xf] %vm1664, %v1499
  %1679 = vst.msk [vmem:[#allocation2 + $0x38] sm:$0xf] %vm1664, %v1501
  %1680 = vst.msk [vmem:[#allocation2 + $0x3c] sm:$0xf] %vm1664, %v1503
  %1681 = vst.msk [vmem:[#allocation2 + $0x40] sm:$0xf] %vm1664, %v1505
  %1682 = vst.msk [vmem:[#allocation2 + $0x44] sm:$0xf] %vm1664, %v1507
  %1683 = vst.msk [vmem:[#allocation2 + $0x48] sm:$0xf] %vm1664, %v1509
  %1684 = vst.msk [vmem:[#allocation2 + $0x4c] sm:$0xf] %vm1664, %v1511
  %1685 = vst.msk [vmem:[#allocation2 + $0x50] sm:$0xf] %vm1664, %v1513
  %1686 = vst.msk [vmem:[#allocation2 + $0x54] sm:$0xf] %vm1664, %v1515
  %1687 = vst.msk [vmem:[#allocation2 + $0x58] sm:$0xf] %vm1664, %v1517
  %1688 = vst.msk [vmem:[#allocation2 + $0x5c] sm:$0xf] %vm1664, %v1519
  %1689 = vst.msk [vmem:[#allocation2 + $0x60] sm:$0xf] %vm1664, %v1521
  %1690 = vst.msk [vmem:[#allocation2 + $0x64] sm:$0xf] %vm1664, %v1523
  %1691 = vst.msk [vmem:[#allocation2 + $0x68] sm:$0xf] %vm1664, %v1525
  %1692 = vst.msk [vmem:[#allocation2 + $0x6c] sm:$0xf] %vm1664, %v1527
  %1693 = vst.msk [vmem:[#allocation2 + $0x70] sm:$0xf] %vm1664, %v1529
  %1694 = vst.msk [vmem:[#allocation2 + $0x74] sm:$0xf] %vm1664, %v1531
  %1695 = vst.msk [vmem:[#allocation2 + $0x78] sm:$0xf] %vm1664, %v1533
  %1696 = vst.msk [vmem:[#allocation2 + $0x7c] sm:$0xf] %vm1664, %v1535
  %1697 = vst.msk [vmem:[#allocation2 + $0x80] sm:$0xf] %vm1664, %v1537
  %1698 = vst.msk [vmem:[#allocation2 + $0x84] sm:$0xf] %vm1664, %v1539
  %1699 = vst.msk [vmem:[#allocation2 + $0x88] sm:$0xf] %vm1664, %v1541
  %1700 = vst.msk [vmem:[#allocation2 + $0x8c] sm:$0xf] %vm1664, %v1543
  %1701 = vst.msk [vmem:[#allocation2 + $0x90] sm:$0xf] %vm1664, %v1545
  %1702 = vst.msk [vmem:[#allocation2 + $0x94] sm:$0xf] %vm1664, %v1547
  %1703 = vst.msk [vmem:[#allocation2 + $0x98] sm:$0xf] %vm1664, %v1549
  %1704 = vst.msk [vmem:[#allocation2 + $0x9c] sm:$0xf] %vm1664, %v1551
  %1705 = vst.msk [vmem:[#allocation2 + $0xa0] sm:$0xf] %vm1664, %v1553
  %1706 = vst.msk [vmem:[#allocation2 + $0xa4] sm:$0xf] %vm1664, %v1555
  %1707 = vst.msk [vmem:[#allocation2 + $0xa8] sm:$0xf] %vm1664, %v1557
  %1708 = vst.msk [vmem:[#allocation2 + $0xac] sm:$0xf] %vm1664, %v1559
  %1709 = vst.msk [vmem:[#allocation2 + $0xb0] sm:$0xf] %vm1664, %v1561
  %1710 = vst.msk [vmem:[#allocation2 + $0xb4] sm:$0xf] %vm1664, %v1563
  %1711 = vst.msk [vmem:[#allocation2 + $0xb8] sm:$0xf] %vm1664, %v1565
  %1712 = vst.msk [vmem:[#allocation2 + $0xbc] sm:$0xf] %vm1664, %v1567
  %1713 = vst.msk [vmem:[#allocation2 + $0xc0] sm:$0xf] %vm1664, %v1569
  %1714 = vst.msk [vmem:[#allocation2 + $0xc4] sm:$0xf] %vm1664, %v1571
  %1715 = vst.msk [vmem:[#allocation2 + $0xc8] sm:$0xf] %vm1664, %v1573
  %1716 = vst.msk [vmem:[#allocation2 + $0xcc] sm:$0xf] %vm1664, %v1575
  %1717 = vst.msk [vmem:[#allocation2 + $0xd0] sm:$0xf] %vm1664, %v1577
  %1718 = vst.msk [vmem:[#allocation2 + $0xd4] sm:$0xf] %vm1664, %v1579
  %1719 = vst.msk [vmem:[#allocation2 + $0xd8] sm:$0xf] %vm1664, %v1581
  %1720 = vst.msk [vmem:[#allocation2 + $0xdc] sm:$0xf] %vm1664, %v1583
  %1721 = vst.msk [vmem:[#allocation2 + $0xe0] sm:$0xf] %vm1664, %v1585
  %1722 = vst.msk [vmem:[#allocation2 + $0xe4] sm:$0xf] %vm1664, %v1587
  %1723 = vst.msk [vmem:[#allocation2 + $0xe8] sm:$0xf] %vm1664, %v1589
  %1724 = vst.msk [vmem:[#allocation2 + $0xec] sm:$0xf] %vm1664, %v1591
  %1725 = vst.msk [vmem:[#allocation2 + $0xf0] sm:$0xf] %vm1664, %v1593
  %1726 = vst.msk [vmem:[#allocation2 + $0xf4] sm:$0xf] %vm1664, %v1595
  %1727 = vst.msk [vmem:[#allocation2 + $0xf8] sm:$0xf] %vm1664, %v1597
  %vm1728 = vcmask 92224
  %1729 = vst.msk [vmem:[#allocation2 + $0xfc] sm:$0x7] %vm1728, %v1599
  %v1730 = vld [vmem:[%s36] sm:$0x1]
  %v1732 = vrot.slane %v1730, 5
  %1733 = vrot.lane.b32.xlu0 %v1732, 8
  %v1734 = vpop.permute.xlu0 %1733
  %vm1736 = vcmask 93251
  %1737 = vst.msk [vmem:[#allocation2 + $0xfc] sm:$0x8] %vm1736, %v1734
  %v1738 = vld [vmem:[%s0 + $0x8] sm:$0xf]
  %v1739 = vld [vmem:[%s0 + $0xc] sm:$0xf]
  %v1740 = vld [vmem:[%s0 + $0x10] sm:$0xf]
  %v1741 = vld [vmem:[%s0 + $0x14] sm:$0xf]
  %v1742 = vld [vmem:[%s0 + $0x18] sm:$0xf]
  %v1743 = vld [vmem:[%s0 + $0x1c] sm:$0xf]
  %v1744 = vld [vmem:[%s0 + $0x20] sm:$0xf]
  %v1745 = vld [vmem:[%s0 + $0x24] sm:$0xf]
  %v1746 = vld [vmem:[%s0 + $0x28] sm:$0xf]
  %v1747 = vld [vmem:[%s0 + $0x2c] sm:$0xf]
  %v1748 = vld [vmem:[%s0 + $0x30] sm:$0xf]
  %v1749 = vld [vmem:[%s0 + $0x34] sm:$0xf]
  %v1750 = vld [vmem:[%s0 + $0x38] sm:$0xf]
  %v1751 = vld [vmem:[%s0 + $0x3c] sm:$0xf]
  %v1752 = vld [vmem:[%s0 + $0x40] sm:$0xf]
  %v1753 = vld [vmem:[%s0 + $0x44] sm:$0xf]
  %v1754 = vld [vmem:[%s0 + $0x48] sm:$0xf]
  %v1755 = vld [vmem:[%s0 + $0x4c] sm:$0xf]
  %v1756 = vld [vmem:[%s0 + $0x50] sm:$0xf]
  %v1757 = vld [vmem:[%s0 + $0x54] sm:$0xf]
  %v1758 = vld [vmem:[%s0 + $0x58] sm:$0xf]
  %v1759 = vld [vmem:[%s0 + $0x5c] sm:$0xf]
  %v1760 = vld [vmem:[%s0 + $0x60] sm:$0xf]
  %v1761 = vld [vmem:[%s0 + $0x64] sm:$0xf]
  %v1762 = vld [vmem:[%s0 + $0x68] sm:$0xf]
  %v1763 = vld [vmem:[%s0 + $0x6c] sm:$0xf]
  %v1764 = vld [vmem:[%s0 + $0x70] sm:$0xf]
  %v1765 = vld [vmem:[%s0 + $0x74] sm:$0xf]
  %v1766 = vld [vmem:[%s0 + $0x78] sm:$0xf]
  %v1767 = vld [vmem:[%s0 + $0x7c] sm:$0xf]
  %v1768 = vld [vmem:[%s0 + $0x80] sm:$0xf]
  %v1769 = vld [vmem:[%s0 + $0x84] sm:$0xf]
  %v1770 = vld [vmem:[%s0 + $0x88] sm:$0xf]
  %v1771 = vld [vmem:[%s0 + $0x8c] sm:$0xf]
  %v1772 = vld [vmem:[%s0 + $0x90] sm:$0xf]
  %v1773 = vld [vmem:[%s0 + $0x94] sm:$0xf]
  %v1774 = vld [vmem:[%s0 + $0x98] sm:$0xf]
  %v1775 = vld [vmem:[%s0 + $0x9c] sm:$0xf]
  %v1776 = vld [vmem:[%s0 + $0xa0] sm:$0xf]
  %v1777 = vld [vmem:[%s0 + $0xa4] sm:$0xf]
  %v1778 = vld [vmem:[%s0 + $0xa8] sm:$0xf]
  %v1779 = vld [vmem:[%s0 + $0xac] sm:$0xf]
  %v1780 = vld [vmem:[%s0 + $0xb0] sm:$0xf]
  %v1781 = vld [vmem:[%s0 + $0xb4] sm:$0xf]
  %v1782 = vld [vmem:[%s0 + $0xb8] sm:$0xf]
  %v1783 = vld [vmem:[%s0 + $0xbc] sm:$0xf]
  %v1784 = vld [vmem:[%s0 + $0xc0] sm:$0xf]
  %v1785 = vld [vmem:[%s0 + $0xc4] sm:$0xf]
  %v1786 = vld [vmem:[%s0 + $0xc8] sm:$0xf]
  %v1787 = vld [vmem:[%s0 + $0xcc] sm:$0xf]
  %v1788 = vld [vmem:[%s0 + $0xd0] sm:$0xf]
  %v1789 = vld [vmem:[%s0 + $0xd4] sm:$0xf]
  %v1790 = vld [vmem:[%s0 + $0xd8] sm:$0xf]
  %v1791 = vld [vmem:[%s0 + $0xdc] sm:$0xf]
  %v1792 = vld [vmem:[%s0 + $0xe0] sm:$0xf]
  %v1793 = vld [vmem:[%s0 + $0xe4] sm:$0xf]
  %v1794 = vld [vmem:[%s0 + $0xe8] sm:$0xf]
  %v1795 = vld [vmem:[%s0 + $0xec] sm:$0xf]
  %v1796 = vld [vmem:[%s0 + $0xf0] sm:$0xf]
  %v1797 = vld [vmem:[%s0 + $0xf4] sm:$0xf]
  %v1798 = vld [vmem:[%s0 + $0xf8] sm:$0xf]
  %v1799 = vld [vmem:[%s0 + $0xfc] sm:$0xf]
  %1862 = vrot.lane.b32.xlu0 %v1738, 12
  %v1863 = vpop.permute.xlu0 %1862
  %1864 = vrot.lane.b32.xlu0 %v1739, 12
  %v1865 = vpop.permute.xlu0 %1864
  %1866 = vrot.lane.b32.xlu0 %v1740, 12
  %v1867 = vpop.permute.xlu0 %1866
  %1868 = vrot.lane.b32.xlu0 %v1741, 12
  %v1869 = vpop.permute.xlu0 %1868
  %1870 = vrot.lane.b32.xlu0 %v1742, 12
  %v1871 = vpop.permute.xlu0 %1870
  %1872 = vrot.lane.b32.xlu0 %v1743, 12
  %v1873 = vpop.permute.xlu0 %1872
  %1874 = vrot.lane.b32.xlu0 %v1744, 12
  %v1875 = vpop.permute.xlu0 %1874
  %1876 = vrot.lane.b32.xlu0 %v1745, 12
  %v1877 = vpop.permute.xlu0 %1876
  %1878 = vrot.lane.b32.xlu0 %v1746, 12
  %v1879 = vpop.permute.xlu0 %1878
  %1880 = vrot.lane.b32.xlu0 %v1747, 12
  %v1881 = vpop.permute.xlu0 %1880
  %1882 = vrot.lane.b32.xlu0 %v1748, 12
  %v1883 = vpop.permute.xlu0 %1882
  %1884 = vrot.lane.b32.xlu0 %v1749, 12
  %v1885 = vpop.permute.xlu0 %1884
  %1886 = vrot.lane.b32.xlu0 %v1750, 12
  %v1887 = vpop.permute.xlu0 %1886
  %1888 = vrot.lane.b32.xlu0 %v1751, 12
  %v1889 = vpop.permute.xlu0 %1888
  %1890 = vrot.lane.b32.xlu0 %v1752, 12
  %v1891 = vpop.permute.xlu0 %1890
  %1892 = vrot.lane.b32.xlu0 %v1753, 12
  %v1893 = vpop.permute.xlu0 %1892
  %1894 = vrot.lane.b32.xlu0 %v1754, 12
  %v1895 = vpop.permute.xlu0 %1894
  %1896 = vrot.lane.b32.xlu0 %v1755, 12
  %v1897 = vpop.permute.xlu0 %1896
  %1898 = vrot.lane.b32.xlu0 %v1756, 12
  %v1899 = vpop.permute.xlu0 %1898
  %1900 = vrot.lane.b32.xlu0 %v1757, 12
  %v1901 = vpop.permute.xlu0 %1900
  %1902 = vrot.lane.b32.xlu0 %v1758, 12
  %v1903 = vpop.permute.xlu0 %1902
  %1904 = vrot.lane.b32.xlu0 %v1759, 12
  %v1905 = vpop.permute.xlu0 %1904
  %1906 = vrot.lane.b32.xlu0 %v1760, 12
  %v1907 = vpop.permute.xlu0 %1906
  %1908 = vrot.lane.b32.xlu0 %v1761, 12
  %v1909 = vpop.permute.xlu0 %1908
  %1910 = vrot.lane.b32.xlu0 %v1762, 12
  %v1911 = vpop.permute.xlu0 %1910
  %1912 = vrot.lane.b32.xlu0 %v1763, 12
  %v1913 = vpop.permute.xlu0 %1912
  %1914 = vrot.lane.b32.xlu0 %v1764, 12
  %v1915 = vpop.permute.xlu0 %1914
  %1916 = vrot.lane.b32.xlu0 %v1765, 12
  %v1917 = vpop.permute.xlu0 %1916
  %1918 = vrot.lane.b32.xlu0 %v1766, 12
  %v1919 = vpop.permute.xlu0 %1918
  %1920 = vrot.lane.b32.xlu0 %v1767, 12
  %v1921 = vpop.permute.xlu0 %1920
  %1922 = vrot.lane.b32.xlu0 %v1768, 12
  %v1923 = vpop.permute.xlu0 %1922
  %1924 = vrot.lane.b32.xlu0 %v1769, 12
  %v1925 = vpop.permute.xlu0 %1924
  %1926 = vrot.lane.b32.xlu0 %v1770, 12
  %v1927 = vpop.permute.xlu0 %1926
  %1928 = vrot.lane.b32.xlu0 %v1771, 12
  %v1929 = vpop.permute.xlu0 %1928
  %1930 = vrot.lane.b32.xlu0 %v1772, 12
  %v1931 = vpop.permute.xlu0 %1930
  %1932 = vrot.lane.b32.xlu0 %v1773, 12
  %v1933 = vpop.permute.xlu0 %1932
  %1934 = vrot.lane.b32.xlu0 %v1774, 12
  %v1935 = vpop.permute.xlu0 %1934
  %1936 = vrot.lane.b32.xlu0 %v1775, 12
  %v1937 = vpop.permute.xlu0 %1936
  %1938 = vrot.lane.b32.xlu0 %v1776, 12
  %v1939 = vpop.permute.xlu0 %1938
  %1940 = vrot.lane.b32.xlu0 %v1777, 12
  %v1941 = vpop.permute.xlu0 %1940
  %1942 = vrot.lane.b32.xlu0 %v1778, 12
  %v1943 = vpop.permute.xlu0 %1942
  %1944 = vrot.lane.b32.xlu0 %v1779, 12
  %v1945 = vpop.permute.xlu0 %1944
  %1946 = vrot.lane.b32.xlu0 %v1780, 12
  %v1947 = vpop.permute.xlu0 %1946
  %1948 = vrot.lane.b32.xlu0 %v1781, 12
  %v1949 = vpop.permute.xlu0 %1948
  %1950 = vrot.lane.b32.xlu0 %v1782, 12
  %v1951 = vpop.permute.xlu0 %1950
  %1952 = vrot.lane.b32.xlu0 %v1783, 12
  %v1953 = vpop.permute.xlu0 %1952
  %1954 = vrot.lane.b32.xlu0 %v1784, 12
  %v1955 = vpop.permute.xlu0 %1954
  %1956 = vrot.lane.b32.xlu0 %v1785, 12
  %v1957 = vpop.permute.xlu0 %1956
  %1958 = vrot.lane.b32.xlu0 %v1786, 12
  %v1959 = vpop.permute.xlu0 %1958
  %1960 = vrot.lane.b32.xlu0 %v1787, 12
  %v1961 = vpop.permute.xlu0 %1960
  %1962 = vrot.lane.b32.xlu0 %v1788, 12
  %v1963 = vpop.permute.xlu0 %1962
  %1964 = vrot.lane.b32.xlu0 %v1789, 12
  %v1965 = vpop.permute.xlu0 %1964
  %1966 = vrot.lane.b32.xlu0 %v1790, 12
  %v1967 = vpop.permute.xlu0 %1966
  %1968 = vrot.lane.b32.xlu0 %v1791, 12
  %v1969 = vpop.permute.xlu0 %1968
  %1970 = vrot.lane.b32.xlu0 %v1792, 12
  %v1971 = vpop.permute.xlu0 %1970
  %1972 = vrot.lane.b32.xlu0 %v1793, 12
  %v1973 = vpop.permute.xlu0 %1972
  %1974 = vrot.lane.b32.xlu0 %v1794, 12
  %v1975 = vpop.permute.xlu0 %1974
  %1976 = vrot.lane.b32.xlu0 %v1795, 12
  %v1977 = vpop.permute.xlu0 %1976
  %1978 = vrot.lane.b32.xlu0 %v1796, 12
  %v1979 = vpop.permute.xlu0 %1978
  %1980 = vrot.lane.b32.xlu0 %v1797, 12
  %v1981 = vpop.permute.xlu0 %1980
  %1982 = vrot.lane.b32.xlu0 %v1798, 12
  %v1983 = vpop.permute.xlu0 %1982
  %1984 = vrot.lane.b32.xlu0 %v1799, 12
  %v1985 = vpop.permute.xlu0 %1984
  %vm2048 = vcmask 126048
  %2049 = vst.msk [vmem:[#allocation2] sm:$0xf] %vm2048, %v1863
  %2050 = vst.msk [vmem:[#allocation2 + $0x4] sm:$0xf] %vm2048, %v1865
  %2051 = vst.msk [vmem:[#allocation2 + $0x8] sm:$0xf] %vm2048, %v1867
  %2052 = vst.msk [vmem:[#allocation2 + $0xc] sm:$0xf] %vm2048, %v1869
  %2053 = vst.msk [vmem:[#allocation2 + $0x10] sm:$0xf] %vm2048, %v1871
  %2054 = vst.msk [vmem:[#allocation2 + $0x14] sm:$0xf] %vm2048, %v1873
  %2055 = vst.msk [vmem:[#allocation2 + $0x18] sm:$0xf] %vm2048, %v1875
  %2056 = vst.msk [vmem:[#allocation2 + $0x1c] sm:$0xf] %vm2048, %v1877
  %2057 = vst.msk [vmem:[#allocation2 + $0x20] sm:$0xf] %vm2048, %v1879
  %2058 = vst.msk [vmem:[#allocation2 + $0x24] sm:$0xf] %vm2048, %v1881
  %2059 = vst.msk [vmem:[#allocation2 + $0x28] sm:$0xf] %vm2048, %v1883
  %2060 = vst.msk [vmem:[#allocation2 + $0x2c] sm:$0xf] %vm2048, %v1885
  %2061 = vst.msk [vmem:[#allocation2 + $0x30] sm:$0xf] %vm2048, %v1887
  %2062 = vst.msk [vmem:[#allocation2 + $0x34] sm:$0xf] %vm2048, %v1889
  %2063 = vst.msk [vmem:[#allocation2 + $0x38] sm:$0xf] %vm2048, %v1891
  %2064 = vst.msk [vmem:[#allocation2 + $0x3c] sm:$0xf] %vm2048, %v1893
  %2065 = vst.msk [vmem:[#allocation2 + $0x40] sm:$0xf] %vm2048, %v1895
  %2066 = vst.msk [vmem:[#allocation2 + $0x44] sm:$0xf] %vm2048, %v1897
  %2067 = vst.msk [vmem:[#allocation2 + $0x48] sm:$0xf] %vm2048, %v1899
  %2068 = vst.msk [vmem:[#allocation2 + $0x4c] sm:$0xf] %vm2048, %v1901
  %2069 = vst.msk [vmem:[#allocation2 + $0x50] sm:$0xf] %vm2048, %v1903
  %2070 = vst.msk [vmem:[#allocation2 + $0x54] sm:$0xf] %vm2048, %v1905
  %2071 = vst.msk [vmem:[#allocation2 + $0x58] sm:$0xf] %vm2048, %v1907
  %2072 = vst.msk [vmem:[#allocation2 + $0x5c] sm:$0xf] %vm2048, %v1909
  %2073 = vst.msk [vmem:[#allocation2 + $0x60] sm:$0xf] %vm2048, %v1911
  %2074 = vst.msk [vmem:[#allocation2 + $0x64] sm:$0xf] %vm2048, %v1913
  %2075 = vst.msk [vmem:[#allocation2 + $0x68] sm:$0xf] %vm2048, %v1915
  %2076 = vst.msk [vmem:[#allocation2 + $0x6c] sm:$0xf] %vm2048, %v1917
  %2077 = vst.msk [vmem:[#allocation2 + $0x70] sm:$0xf] %vm2048, %v1919
  %2078 = vst.msk [vmem:[#allocation2 + $0x74] sm:$0xf] %vm2048, %v1921
  %2079 = vst.msk [vmem:[#allocation2 + $0x78] sm:$0xf] %vm2048, %v1923
  %2080 = vst.msk [vmem:[#allocation2 + $0x7c] sm:$0xf] %vm2048, %v1925
  %2081 = vst.msk [vmem:[#allocation2 + $0x80] sm:$0xf] %vm2048, %v1927
  %2082 = vst.msk [vmem:[#allocation2 + $0x84] sm:$0xf] %vm2048, %v1929
  %2083 = vst.msk [vmem:[#allocation2 + $0x88] sm:$0xf] %vm2048, %v1931
  %2084 = vst.msk [vmem:[#allocation2 + $0x8c] sm:$0xf] %vm2048, %v1933
  %2085 = vst.msk [vmem:[#allocation2 + $0x90] sm:$0xf] %vm2048, %v1935
  %2086 = vst.msk [vmem:[#allocation2 + $0x94] sm:$0xf] %vm2048, %v1937
  %2087 = vst.msk [vmem:[#allocation2 + $0x98] sm:$0xf] %vm2048, %v1939
  %2088 = vst.msk [vmem:[#allocation2 + $0x9c] sm:$0xf] %vm2048, %v1941
  %2089 = vst.msk [vmem:[#allocation2 + $0xa0] sm:$0xf] %vm2048, %v1943
  %2090 = vst.msk [vmem:[#allocation2 + $0xa4] sm:$0xf] %vm2048, %v1945
  %2091 = vst.msk [vmem:[#allocation2 + $0xa8] sm:$0xf] %vm2048, %v1947
  %2092 = vst.msk [vmem:[#allocation2 + $0xac] sm:$0xf] %vm2048, %v1949
  %2093 = vst.msk [vmem:[#allocation2 + $0xb0] sm:$0xf] %vm2048, %v1951
  %2094 = vst.msk [vmem:[#allocation2 + $0xb4] sm:$0xf] %vm2048, %v1953
  %2095 = vst.msk [vmem:[#allocation2 + $0xb8] sm:$0xf] %vm2048, %v1955
  %2096 = vst.msk [vmem:[#allocation2 + $0xbc] sm:$0xf] %vm2048, %v1957
  %2097 = vst.msk [vmem:[#allocation2 + $0xc0] sm:$0xf] %vm2048, %v1959
  %2098 = vst.msk [vmem:[#allocation2 + $0xc4] sm:$0xf] %vm2048, %v1961
  %2099 = vst.msk [vmem:[#allocation2 + $0xc8] sm:$0xf] %vm2048, %v1963
  %2100 = vst.msk [vmem:[#allocation2 + $0xcc] sm:$0xf] %vm2048, %v1965
  %2101 = vst.msk [vmem:[#allocation2 + $0xd0] sm:$0xf] %vm2048, %v1967
  %2102 = vst.msk [vmem:[#allocation2 + $0xd4] sm:$0xf] %vm2048, %v1969
  %2103 = vst.msk [vmem:[#allocation2 + $0xd8] sm:$0xf] %vm2048, %v1971
  %2104 = vst.msk [vmem:[#allocation2 + $0xdc] sm:$0xf] %vm2048, %v1973
  %2105 = vst.msk [vmem:[#allocation2 + $0xe0] sm:$0xf] %vm2048, %v1975
  %2106 = vst.msk [vmem:[#allocation2 + $0xe4] sm:$0xf] %vm2048, %v1977
  %2107 = vst.msk [vmem:[#allocation2 + $0xe8] sm:$0xf] %vm2048, %v1979
  %2108 = vst.msk [vmem:[#allocation2 + $0xec] sm:$0xf] %vm2048, %v1981
  %2109 = vst.msk [vmem:[#allocation2 + $0xf0] sm:$0xf] %vm2048, %v1983
  %2110 = vst.msk [vmem:[#allocation2 + $0xf4] sm:$0xf] %vm2048, %v1985
  %v2111 = vld [vmem:[%s36] sm:$0xf]
  %v2112 = vld [vmem:[%s36 + $0x4] sm:$0xf]
  %2115 = vrot.lane.b32.xlu0 %v2111, 12
  %v2116 = vpop.permute.xlu0 %2115
  %2117 = vrot.lane.b32.xlu0 %v2112, 12
  %v2118 = vpop.permute.xlu0 %2117
  %2121 = vst.msk [vmem:[#allocation2 + $0xf8] sm:$0xf] %vm2048, %v2116
  %2122 = vst.msk [vmem:[#allocation2 + $0xfc] sm:$0xf] %vm2048, %v2118
  %v2123 = vld [vmem:[%s0 + $0x8] sm:$0xf]
  %v2124 = vld [vmem:[%s0 + $0xc] sm:$0xf]
  %v2125 = vld [vmem:[%s0 + $0x10] sm:$0xf]
  %v2126 = vld [vmem:[%s0 + $0x14] sm:$0xf]
  %v2127 = vld [vmem:[%s0 + $0x18] sm:$0xf]
  %v2128 = vld [vmem:[%s0 + $0x1c] sm:$0xf]
  %v2129 = vld [vmem:[%s0 + $0x20] sm:$0xf]
  %v2130 = vld [vmem:[%s0 + $0x24] sm:$0xf]
  %v2131 = vld [vmem:[%s0 + $0x28] sm:$0xf]
  %v2132 = vld [vmem:[%s0 + $0x2c] sm:$0xf]
  %v2133 = vld [vmem:[%s0 + $0x30] sm:$0xf]
  %v2134 = vld [vmem:[%s0 + $0x34] sm:$0xf]
  %v2135 = vld [vmem:[%s0 + $0x38] sm:$0xf]
  %v2136 = vld [vmem:[%s0 + $0x3c] sm:$0xf]
  %v2137 = vld [vmem:[%s0 + $0x40] sm:$0xf]
  %v2138 = vld [vmem:[%s0 + $0x44] sm:$0xf]
  %v2139 = vld [vmem:[%s0 + $0x48] sm:$0xf]
  %v2140 = vld [vmem:[%s0 + $0x4c] sm:$0xf]
  %v2141 = vld [vmem:[%s0 + $0x50] sm:$0xf]
  %v2142 = vld [vmem:[%s0 + $0x54] sm:$0xf]
  %v2143 = vld [vmem:[%s0 + $0x58] sm:$0xf]
  %v2144 = vld [vmem:[%s0 + $0x5c] sm:$0xf]
  %v2145 = vld [vmem:[%s0 + $0x60] sm:$0xf]
  %v2146 = vld [vmem:[%s0 + $0x64] sm:$0xf]
  %v2147 = vld [vmem:[%s0 + $0x68] sm:$0xf]
  %v2148 = vld [vmem:[%s0 + $0x6c] sm:$0xf]
  %v2149 = vld [vmem:[%s0 + $0x70] sm:$0xf]
  %v2150 = vld [vmem:[%s0 + $0x74] sm:$0xf]
  %v2151 = vld [vmem:[%s0 + $0x78] sm:$0xf]
  %v2152 = vld [vmem:[%s0 + $0x7c] sm:$0xf]
  %v2153 = vld [vmem:[%s0 + $0x80] sm:$0xf]
  %v2154 = vld [vmem:[%s0 + $0x84] sm:$0xf]
  %v2155 = vld [vmem:[%s0 + $0x88] sm:$0xf]
  %v2156 = vld [vmem:[%s0 + $0x8c] sm:$0xf]
  %v2157 = vld [vmem:[%s0 + $0x90] sm:$0xf]
  %v2158 = vld [vmem:[%s0 + $0x94] sm:$0xf]
  %v2159 = vld [vmem:[%s0 + $0x98] sm:$0xf]
  %v2160 = vld [vmem:[%s0 + $0x9c] sm:$0xf]
  %v2161 = vld [vmem:[%s0 + $0xa0] sm:$0xf]
  %v2162 = vld [vmem:[%s0 + $0xa4] sm:$0xf]
  %v2163 = vld [vmem:[%s0 + $0xa8] sm:$0xf]
  %v2164 = vld [vmem:[%s0 + $0xac] sm:$0xf]
  %v2165 = vld [vmem:[%s0 + $0xb0] sm:$0xf]
  %v2166 = vld [vmem:[%s0 + $0xb4] sm:$0xf]
  %v2167 = vld [vmem:[%s0 + $0xb8] sm:$0xf]
  %v2168 = vld [vmem:[%s0 + $0xbc] sm:$0xf]
  %v2169 = vld [vmem:[%s0 + $0xc0] sm:$0xf]
  %v2170 = vld [vmem:[%s0 + $0xc4] sm:$0xf]
  %v2171 = vld [vmem:[%s0 + $0xc8] sm:$0xf]
  %v2172 = vld [vmem:[%s0 + $0xcc] sm:$0xf]
  %v2173 = vld [vmem:[%s0 + $0xd0] sm:$0xf]
  %v2174 = vld [vmem:[%s0 + $0xd4] sm:$0xf]
  %v2175 = vld [vmem:[%s0 + $0xd8] sm:$0xf]
  %v2176 = vld [vmem:[%s0 + $0xdc] sm:$0xf]
  %v2177 = vld [vmem:[%s0 + $0xe0] sm:$0xf]
  %v2178 = vld [vmem:[%s0 + $0xe4] sm:$0xf]
  %v2179 = vld [vmem:[%s0 + $0xe8] sm:$0xf]
  %v2180 = vld [vmem:[%s0 + $0xec] sm:$0xf]
  %v2181 = vld [vmem:[%s0 + $0xf0] sm:$0xf]
  %v2182 = vld [vmem:[%s0 + $0xf4] sm:$0xf]
  %v2183 = vld [vmem:[%s0 + $0xf8] sm:$0xf]
  %v2184 = vld [vmem:[%s0 + $0xfc] sm:$0xf]
  %v2186 = vshrl.u32 %v2123, 16
  %v2188 = vrot.slane %v2186, 4
  %v2189 = vshll.u32 %v2123, 16
  %v2191 = vrot.slane %v2189, 5
  %v2192 = vor.u32 %v2188, %v2191
  %v2193 = vrot.slane %v2192, 4
  %v2195 = vshll.u32 %v2124, 16
  %v2197 = vrot.slane %v2195, 5
  %v2198 = vsel %vm235, %v2193, %v2197
  %v2199 = vshrl.u32 %v2124, 16
  %v2201 = vrot.slane %v2199, 4
  %v2202 = vor.u32 %v2201, %v2197
  %v2203 = vrot.slane %v2202, 4
  %v2205 = vshll.u32 %v2125, 16
  %v2207 = vrot.slane %v2205, 5
  %v2208 = vsel %vm235, %v2203, %v2207
  %v2209 = vshrl.u32 %v2125, 16
  %v2211 = vrot.slane %v2209, 4
  %v2212 = vor.u32 %v2211, %v2207
  %v2213 = vrot.slane %v2212, 4
  %v2215 = vshll.u32 %v2126, 16
  %v2217 = vrot.slane %v2215, 5
  %v2218 = vsel %vm235, %v2213, %v2217
  %v2219 = vshrl.u32 %v2126, 16
  %v2221 = vrot.slane %v2219, 4
  %v2222 = vor.u32 %v2221, %v2217
  %v2223 = vrot.slane %v2222, 4
  %v2225 = vshll.u32 %v2127, 16
  %v2227 = vrot.slane %v2225, 5
  %v2228 = vsel %vm235, %v2223, %v2227
  %v2229 = vshrl.u32 %v2127, 16
  %v2231 = vrot.slane %v2229, 4
  %v2232 = vor.u32 %v2231, %v2227
  %v2233 = vrot.slane %v2232, 4
  %v2235 = vshll.u32 %v2128, 16
  %v2237 = vrot.slane %v2235, 5
  %v2238 = vsel %vm235, %v2233, %v2237
  %v2239 = vshrl.u32 %v2128, 16
  %v2241 = vrot.slane %v2239, 4
  %v2242 = vor.u32 %v2241, %v2237
  %v2243 = vrot.slane %v2242, 4
  %v2245 = vshll.u32 %v2129, 16
  %v2247 = vrot.slane %v2245, 5
  %v2248 = vsel %vm235, %v2243, %v2247
  %v2249 = vshrl.u32 %v2129, 16
  %v2251 = vrot.slane %v2249, 4
  %v2252 = vor.u32 %v2251, %v2247
  %v2253 = vrot.slane %v2252, 4
  %v2255 = vshll.u32 %v2130, 16
  %v2257 = vrot.slane %v2255, 5
  %v2258 = vsel %vm235, %v2253, %v2257
  %v2259 = vshrl.u32 %v2130, 16
  %v2261 = vrot.slane %v2259, 4
  %v2262 = vor.u32 %v2261, %v2257
  %v2263 = vrot.slane %v2262, 4
  %v2265 = vshll.u32 %v2131, 16
  %v2267 = vrot.slane %v2265, 5
  %v2268 = vsel %vm235, %v2263, %v2267
  %v2269 = vshrl.u32 %v2131, 16
  %v2271 = vrot.slane %v2269, 4
  %v2272 = vor.u32 %v2271, %v2267
  %v2273 = vrot.slane %v2272, 4
  %v2275 = vshll.u32 %v2132, 16
  %v2277 = vrot.slane %v2275, 5
  %v2278 = vsel %vm235, %v2273, %v2277
  %v2279 = vshrl.u32 %v2132, 16
  %v2281 = vrot.slane %v2279, 4
  %v2282 = vor.u32 %v2281, %v2277
  %v2283 = vrot.slane %v2282, 4
  %v2285 = vshll.u32 %v2133, 16
  %v2287 = vrot.slane %v2285, 5
  %v2288 = vsel %vm235, %v2283, %v2287
  %v2289 = vshrl.u32 %v2133, 16
  %v2291 = vrot.slane %v2289, 4
  %v2292 = vor.u32 %v2291, %v2287
  %v2293 = vrot.slane %v2292, 4
  %v2295 = vshll.u32 %v2134, 16
  %v2297 = vrot.slane %v2295, 5
  %v2298 = vsel %vm235, %v2293, %v2297
  %v2299 = vshrl.u32 %v2134, 16
  %v2301 = vrot.slane %v2299, 4
  %v2302 = vor.u32 %v2301, %v2297
  %v2303 = vrot.slane %v2302, 4
  %v2305 = vshll.u32 %v2135, 16
  %v2307 = vrot.slane %v2305, 5
  %v2308 = vsel %vm235, %v2303, %v2307
  %v2309 = vshrl.u32 %v2135, 16
  %v2311 = vrot.slane %v2309, 4
  %v2312 = vor.u32 %v2311, %v2307
  %v2313 = vrot.slane %v2312, 4
  %v2315 = vshll.u32 %v2136, 16
  %v2317 = vrot.slane %v2315, 5
  %v2318 = vsel %vm235, %v2313, %v2317
  %v2319 = vshrl.u32 %v2136, 16
  %v2321 = vrot.slane %v2319, 4
  %v2322 = vor.u32 %v2321, %v2317
  %v2323 = vrot.slane %v2322, 4
  %v2325 = vshll.u32 %v2137, 16
  %v2327 = vrot.slane %v2325, 5
  %v2328 = vsel %vm235, %v2323, %v2327
  %v2329 = vshrl.u32 %v2137, 16
  %v2331 = vrot.slane %v2329, 4
  %v2332 = vor.u32 %v2331, %v2327
  %v2333 = vrot.slane %v2332, 4
  %v2335 = vshll.u32 %v2138, 16
  %v2337 = vrot.slane %v2335, 5
  %v2338 = vsel %vm235, %v2333, %v2337
  %v2339 = vshrl.u32 %v2138, 16
  %v2341 = vrot.slane %v2339, 4
  %v2342 = vor.u32 %v2341, %v2337
  %v2343 = vrot.slane %v2342, 4
  %v2345 = vshll.u32 %v2139, 16
  %v2347 = vrot.slane %v2345, 5
  %v2348 = vsel %vm235, %v2343, %v2347
  %v2349 = vshrl.u32 %v2139, 16
  %v2351 = vrot.slane %v2349, 4
  %v2352 = vor.u32 %v2351, %v2347
  %v2353 = vrot.slane %v2352, 4
  %v2355 = vshll.u32 %v2140, 16
  %v2357 = vrot.slane %v2355, 5
  %v2358 = vsel %vm235, %v2353, %v2357
  %v2359 = vshrl.u32 %v2140, 16
  %v2361 = vrot.slane %v2359, 4
  %v2362 = vor.u32 %v2361, %v2357
  %v2363 = vrot.slane %v2362, 4
  %v2365 = vshll.u32 %v2141, 16
  %v2367 = vrot.slane %v2365, 5
  %v2368 = vsel %vm235, %v2363, %v2367
  %v2369 = vshrl.u32 %v2141, 16
  %v2371 = vrot.slane %v2369, 4
  %v2372 = vor.u32 %v2371, %v2367
  %v2373 = vrot.slane %v2372, 4
  %v2375 = vshll.u32 %v2142, 16
  %v2377 = vrot.slane %v2375, 5
  %v2378 = vsel %vm235, %v2373, %v2377
  %v2379 = vshrl.u32 %v2142, 16
  %v2381 = vrot.slane %v2379, 4
  %v2382 = vor.u32 %v2381, %v2377
  %v2383 = vrot.slane %v2382, 4
  %v2385 = vshll.u32 %v2143, 16
  %v2387 = vrot.slane %v2385, 5
  %v2388 = vsel %vm235, %v2383, %v2387
  %v2389 = vshrl.u32 %v2143, 16
  %v2391 = vrot.slane %v2389, 4
  %v2392 = vor.u32 %v2391, %v2387
  %v2393 = vrot.slane %v2392, 4
  %v2395 = vshll.u32 %v2144, 16
  %v2397 = vrot.slane %v2395, 5
  %v2398 = vsel %vm235, %v2393, %v2397
  %v2399 = vshrl.u32 %v2144, 16
  %v2401 = vrot.slane %v2399, 4
  %v2402 = vor.u32 %v2401, %v2397
  %v2403 = vrot.slane %v2402, 4
  %v2405 = vshll.u32 %v2145, 16
  %v2407 = vrot.slane %v2405, 5
  %v2408 = vsel %vm235, %v2403, %v2407
  %v2409 = vshrl.u32 %v2145, 16
  %v2411 = vrot.slane %v2409, 4
  %v2412 = vor.u32 %v2411, %v2407
  %v2413 = vrot.slane %v2412, 4
  %v2415 = vshll.u32 %v2146, 16
  %v2417 = vrot.slane %v2415, 5
  %v2418 = vsel %vm235, %v2413, %v2417
  %v2419 = vshrl.u32 %v2146, 16
  %v2421 = vrot.slane %v2419, 4
  %v2422 = vor.u32 %v2421, %v2417
  %v2423 = vrot.slane %v2422, 4
  %v2425 = vshll.u32 %v2147, 16
  %v2427 = vrot.slane %v2425, 5
  %v2428 = vsel %vm235, %v2423, %v2427
  %v2429 = vshrl.u32 %v2147, 16
  %v2431 = vrot.slane %v2429, 4
  %v2432 = vor.u32 %v2431, %v2427
  %v2433 = vrot.slane %v2432, 4
  %v2435 = vshll.u32 %v2148, 16
  %v2437 = vrot.slane %v2435, 5
  %v2438 = vsel %vm235, %v2433, %v2437
  %v2439 = vshrl.u32 %v2148, 16
  %v2441 = vrot.slane %v2439, 4
  %v2442 = vor.u32 %v2441, %v2437
  %v2443 = vrot.slane %v2442, 4
  %v2445 = vshll.u32 %v2149, 16
  %v2447 = vrot.slane %v2445, 5
  %v2448 = vsel %vm235, %v2443, %v2447
  %v2449 = vshrl.u32 %v2149, 16
  %v2451 = vrot.slane %v2449, 4
  %v2452 = vor.u32 %v2451, %v2447
  %v2453 = vrot.slane %v2452, 4
  %v2455 = vshll.u32 %v2150, 16
  %v2457 = vrot.slane %v2455, 5
  %v2458 = vsel %vm235, %v2453, %v2457
  %v2459 = vshrl.u32 %v2150, 16
  %v2461 = vrot.slane %v2459, 4
  %v2462 = vor.u32 %v2461, %v2457
  %v2463 = vrot.slane %v2462, 4
  %v2465 = vshll.u32 %v2151, 16
  %v2467 = vrot.slane %v2465, 5
  %v2468 = vsel %vm235, %v2463, %v2467
  %v2469 = vshrl.u32 %v2151, 16
  %v2471 = vrot.slane %v2469, 4
  %v2472 = vor.u32 %v2471, %v2467
  %v2473 = vrot.slane %v2472, 4
  %v2475 = vshll.u32 %v2152, 16
  %v2477 = vrot.slane %v2475, 5
  %v2478 = vsel %vm235, %v2473, %v2477
  %v2479 = vshrl.u32 %v2152, 16
  %v2481 = vrot.slane %v2479, 4
  %v2482 = vor.u32 %v2481, %v2477
  %v2483 = vrot.slane %v2482, 4
  %v2485 = vshll.u32 %v2153, 16
  %v2487 = vrot.slane %v2485, 5
  %v2488 = vsel %vm235, %v2483, %v2487
  %v2489 = vshrl.u32 %v2153, 16
  %v2491 = vrot.slane %v2489, 4
  %v2492 = vor.u32 %v2491, %v2487
  %v2493 = vrot.slane %v2492, 4
  %v2495 = vshll.u32 %v2154, 16
  %v2497 = vrot.slane %v2495, 5
  %v2498 = vsel %vm235, %v2493, %v2497
  %v2499 = vshrl.u32 %v2154, 16
  %v2501 = vrot.slane %v2499, 4
  %v2502 = vor.u32 %v2501, %v2497
  %v2503 = vrot.slane %v2502, 4
  %v2505 = vshll.u32 %v2155, 16
  %v2507 = vrot.slane %v2505, 5
  %v2508 = vsel %vm235, %v2503, %v2507
  %v2509 = vshrl.u32 %v2155, 16
  %v2511 = vrot.slane %v2509, 4
  %v2512 = vor.u32 %v2511, %v2507
  %v2513 = vrot.slane %v2512, 4
  %v2515 = vshll.u32 %v2156, 16
  %v2517 = vrot.slane %v2515, 5
  %v2518 = vsel %vm235, %v2513, %v2517
  %v2519 = vshrl.u32 %v2156, 16
  %v2521 = vrot.slane %v2519, 4
  %v2522 = vor.u32 %v2521, %v2517
  %v2523 = vrot.slane %v2522, 4
  %v2525 = vshll.u32 %v2157, 16
  %v2527 = vrot.slane %v2525, 5
  %v2528 = vsel %vm235, %v2523, %v2527
  %v2529 = vshrl.u32 %v2157, 16
  %v2531 = vrot.slane %v2529, 4
  %v2532 = vor.u32 %v2531, %v2527
  %v2533 = vrot.slane %v2532, 4
  %v2535 = vshll.u32 %v2158, 16
  %v2537 = vrot.slane %v2535, 5
  %v2538 = vsel %vm235, %v2533, %v2537
  %v2539 = vshrl.u32 %v2158, 16
  %v2541 = vrot.slane %v2539, 4
  %v2542 = vor.u32 %v2541, %v2537
  %v2543 = vrot.slane %v2542, 4
  %v2545 = vshll.u32 %v2159, 16
  %v2547 = vrot.slane %v2545, 5
  %v2548 = vsel %vm235, %v2543, %v2547
  %v2549 = vshrl.u32 %v2159, 16
  %v2551 = vrot.slane %v2549, 4
  %v2552 = vor.u32 %v2551, %v2547
  %v2553 = vrot.slane %v2552, 4
  %v2555 = vshll.u32 %v2160, 16
  %v2557 = vrot.slane %v2555, 5
  %v2558 = vsel %vm235, %v2553, %v2557
  %v2559 = vshrl.u32 %v2160, 16
  %v2561 = vrot.slane %v2559, 4
  %v2562 = vor.u32 %v2561, %v2557
  %v2563 = vrot.slane %v2562, 4
  %v2565 = vshll.u32 %v2161, 16
  %v2567 = vrot.slane %v2565, 5
  %v2568 = vsel %vm235, %v2563, %v2567
  %v2569 = vshrl.u32 %v2161, 16
  %v2571 = vrot.slane %v2569, 4
  %v2572 = vor.u32 %v2571, %v2567
  %v2573 = vrot.slane %v2572, 4
  %v2575 = vshll.u32 %v2162, 16
  %v2577 = vrot.slane %v2575, 5
  %v2578 = vsel %vm235, %v2573, %v2577
  %v2579 = vshrl.u32 %v2162, 16
  %v2581 = vrot.slane %v2579, 4
  %v2582 = vor.u32 %v2581, %v2577
  %v2583 = vrot.slane %v2582, 4
  %v2585 = vshll.u32 %v2163, 16
  %v2587 = vrot.slane %v2585, 5
  %v2588 = vsel %vm235, %v2583, %v2587
  %v2589 = vshrl.u32 %v2163, 16
  %v2591 = vrot.slane %v2589, 4
  %v2592 = vor.u32 %v2591, %v2587
  %v2593 = vrot.slane %v2592, 4
  %v2595 = vshll.u32 %v2164, 16
  %v2597 = vrot.slane %v2595, 5
  %v2598 = vsel %vm235, %v2593, %v2597
  %v2599 = vshrl.u32 %v2164, 16
  %v2601 = vrot.slane %v2599, 4
  %v2602 = vor.u32 %v2601, %v2597
  %v2603 = vrot.slane %v2602, 4
  %v2605 = vshll.u32 %v2165, 16
  %v2607 = vrot.slane %v2605, 5
  %v2608 = vsel %vm235, %v2603, %v2607
  %v2609 = vshrl.u32 %v2165, 16
  %v2611 = vrot.slane %v2609, 4
  %v2612 = vor.u32 %v2611, %v2607
  %v2613 = vrot.slane %v2612, 4
  %v2615 = vshll.u32 %v2166, 16
  %v2617 = vrot.slane %v2615, 5
  %v2618 = vsel %vm235, %v2613, %v2617
  %v2619 = vshrl.u32 %v2166, 16
  %v2621 = vrot.slane %v2619, 4
  %v2622 = vor.u32 %v2621, %v2617
  %v2623 = vrot.slane %v2622, 4
  %v2625 = vshll.u32 %v2167, 16
  %v2627 = vrot.slane %v2625, 5
  %v2628 = vsel %vm235, %v2623, %v2627
  %v2629 = vshrl.u32 %v2167, 16
  %v2631 = vrot.slane %v2629, 4
  %v2632 = vor.u32 %v2631, %v2627
  %v2633 = vrot.slane %v2632, 4
  %v2635 = vshll.u32 %v2168, 16
  %v2637 = vrot.slane %v2635, 5
  %v2638 = vsel %vm235, %v2633, %v2637
  %v2639 = vshrl.u32 %v2168, 16
  %v2641 = vrot.slane %v2639, 4
  %v2642 = vor.u32 %v2641, %v2637
  %v2643 = vrot.slane %v2642, 4
  %v2645 = vshll.u32 %v2169, 16
  %v2647 = vrot.slane %v2645, 5
  %v2648 = vsel %vm235, %v2643, %v2647
  %v2649 = vshrl.u32 %v2169, 16
  %v2651 = vrot.slane %v2649, 4
  %v2652 = vor.u32 %v2651, %v2647
  %v2653 = vrot.slane %v2652, 4
  %v2655 = vshll.u32 %v2170, 16
  %v2657 = vrot.slane %v2655, 5
  %v2658 = vsel %vm235, %v2653, %v2657
  %v2659 = vshrl.u32 %v2170, 16
  %v2661 = vrot.slane %v2659, 4
  %v2662 = vor.u32 %v2661, %v2657
  %v2663 = vrot.slane %v2662, 4
  %v2665 = vshll.u32 %v2171, 16
  %v2667 = vrot.slane %v2665, 5
  %v2668 = vsel %vm235, %v2663, %v2667
  %v2669 = vshrl.u32 %v2171, 16
  %v2671 = vrot.slane %v2669, 4
  %v2672 = vor.u32 %v2671, %v2667
  %v2673 = vrot.slane %v2672, 4
  %v2675 = vshll.u32 %v2172, 16
  %v2677 = vrot.slane %v2675, 5
  %v2678 = vsel %vm235, %v2673, %v2677
  %v2679 = vshrl.u32 %v2172, 16
  %v2681 = vrot.slane %v2679, 4
  %v2682 = vor.u32 %v2681, %v2677
  %v2683 = vrot.slane %v2682, 4
  %v2685 = vshll.u32 %v2173, 16
  %v2687 = vrot.slane %v2685, 5
  %v2688 = vsel %vm235, %v2683, %v2687
  %v2689 = vshrl.u32 %v2173, 16
  %v2691 = vrot.slane %v2689, 4
  %v2692 = vor.u32 %v2691, %v2687
  %v2693 = vrot.slane %v2692, 4
  %v2695 = vshll.u32 %v2174, 16
  %v2697 = vrot.slane %v2695, 5
  %v2698 = vsel %vm235, %v2693, %v2697
  %v2699 = vshrl.u32 %v2174, 16
  %v2701 = vrot.slane %v2699, 4
  %v2702 = vor.u32 %v2701, %v2697
  %v2703 = vrot.slane %v2702, 4
  %v2705 = vshll.u32 %v2175, 16
  %v2707 = vrot.slane %v2705, 5
  %v2708 = vsel %vm235, %v2703, %v2707
  %v2709 = vshrl.u32 %v2175, 16
  %v2711 = vrot.slane %v2709, 4
  %v2712 = vor.u32 %v2711, %v2707
  %v2713 = vrot.slane %v2712, 4
  %v2715 = vshll.u32 %v2176, 16
  %v2717 = vrot.slane %v2715, 5
  %v2718 = vsel %vm235, %v2713, %v2717
  %v2719 = vshrl.u32 %v2176, 16
  %v2721 = vrot.slane %v2719, 4
  %v2722 = vor.u32 %v2721, %v2717
  %v2723 = vrot.slane %v2722, 4
  %v2725 = vshll.u32 %v2177, 16
  %v2727 = vrot.slane %v2725, 5
  %v2728 = vsel %vm235, %v2723, %v2727
  %v2729 = vshrl.u32 %v2177, 16
  %v2731 = vrot.slane %v2729, 4
  %v2732 = vor.u32 %v2731, %v2727
  %v2733 = vrot.slane %v2732, 4
  %v2735 = vshll.u32 %v2178, 16
  %v2737 = vrot.slane %v2735, 5
  %v2738 = vsel %vm235, %v2733, %v2737
  %v2739 = vshrl.u32 %v2178, 16
  %v2741 = vrot.slane %v2739, 4
  %v2742 = vor.u32 %v2741, %v2737
  %v2743 = vrot.slane %v2742, 4
  %v2745 = vshll.u32 %v2179, 16
  %v2747 = vrot.slane %v2745, 5
  %v2748 = vsel %vm235, %v2743, %v2747
  %v2749 = vshrl.u32 %v2179, 16
  %v2751 = vrot.slane %v2749, 4
  %v2752 = vor.u32 %v2751, %v2747
  %v2753 = vrot.slane %v2752, 4
  %v2755 = vshll.u32 %v2180, 16
  %v2757 = vrot.slane %v2755, 5
  %v2758 = vsel %vm235, %v2753, %v2757
  %v2759 = vshrl.u32 %v2180, 16
  %v2761 = vrot.slane %v2759, 4
  %v2762 = vor.u32 %v2761, %v2757
  %v2763 = vrot.slane %v2762, 4
  %v2765 = vshll.u32 %v2181, 16
  %v2767 = vrot.slane %v2765, 5
  %v2768 = vsel %vm235, %v2763, %v2767
  %v2769 = vshrl.u32 %v2181, 16
  %v2771 = vrot.slane %v2769, 4
  %v2772 = vor.u32 %v2771, %v2767
  %v2773 = vrot.slane %v2772, 4
  %v2775 = vshll.u32 %v2182, 16
  %v2777 = vrot.slane %v2775, 5
  %v2778 = vsel %vm235, %v2773, %v2777
  %v2779 = vshrl.u32 %v2182, 16
  %v2781 = vrot.slane %v2779, 4
  %v2782 = vor.u32 %v2781, %v2777
  %v2783 = vrot.slane %v2782, 4
  %v2785 = vshll.u32 %v2183, 16
  %v2787 = vrot.slane %v2785, 5
  %v2788 = vsel %vm235, %v2783, %v2787
  %v2789 = vshrl.u32 %v2183, 16
  %v2791 = vrot.slane %v2789, 4
  %v2792 = vor.u32 %v2791, %v2787
  %v2793 = vrot.slane %v2792, 4
  %v2795 = vshll.u32 %v2184, 16
  %v2797 = vrot.slane %v2795, 5
  %v2798 = vsel %vm235, %v2793, %v2797
  %v2799 = vshrl.u32 %v2184, 16
  %v2801 = vrot.slane %v2799, 4
  %v2802 = vor.u32 %v2801, %v2797
  %v2803 = vrot.slane %v2802, 4
  %2804 = vrot.lane.b32.xlu0 %v2198, 16
  %v2805 = vpop.permute.xlu0 %2804
  %2806 = vrot.lane.b32.xlu0 %v2208, 16
  %v2807 = vpop.permute.xlu0 %2806
  %2808 = vrot.lane.b32.xlu0 %v2218, 16
  %v2809 = vpop.permute.xlu0 %2808
  %2810 = vrot.lane.b32.xlu0 %v2228, 16
  %v2811 = vpop.permute.xlu0 %2810
  %2812 = vrot.lane.b32.xlu0 %v2238, 16
  %v2813 = vpop.permute.xlu0 %2812
  %2814 = vrot.lane.b32.xlu0 %v2248, 16
  %v2815 = vpop.permute.xlu0 %2814
  %2816 = vrot.lane.b32.xlu0 %v2258, 16
  %v2817 = vpop.permute.xlu0 %2816
  %2818 = vrot.lane.b32.xlu0 %v2268, 16
  %v2819 = vpop.permute.xlu0 %2818
  %2820 = vrot.lane.b32.xlu0 %v2278, 16
  %v2821 = vpop.permute.xlu0 %2820
  %2822 = vrot.lane.b32.xlu0 %v2288, 16
  %v2823 = vpop.permute.xlu0 %2822
  %2824 = vrot.lane.b32.xlu0 %v2298, 16
  %v2825 = vpop.permute.xlu0 %2824
  %2826 = vrot.lane.b32.xlu0 %v2308, 16
  %v2827 = vpop.permute.xlu0 %2826
  %2828 = vrot.lane.b32.xlu0 %v2318, 16
  %v2829 = vpop.permute.xlu0 %2828
  %2830 = vrot.lane.b32.xlu0 %v2328, 16
  %v2831 = vpop.permute.xlu0 %2830
  %2832 = vrot.lane.b32.xlu0 %v2338, 16
  %v2833 = vpop.permute.xlu0 %2832
  %2834 = vrot.lane.b32.xlu0 %v2348, 16
  %v2835 = vpop.permute.xlu0 %2834
  %2836 = vrot.lane.b32.xlu0 %v2358, 16
  %v2837 = vpop.permute.xlu0 %2836
  %2838 = vrot.lane.b32.xlu0 %v2368, 16
  %v2839 = vpop.permute.xlu0 %2838
  %2840 = vrot.lane.b32.xlu0 %v2378, 16
  %v2841 = vpop.permute.xlu0 %2840
  %2842 = vrot.lane.b32.xlu0 %v2388, 16
  %v2843 = vpop.permute.xlu0 %2842
  %2844 = vrot.lane.b32.xlu0 %v2398, 16
  %v2845 = vpop.permute.xlu0 %2844
  %2846 = vrot.lane.b32.xlu0 %v2408, 16
  %v2847 = vpop.permute.xlu0 %2846
  %2848 = vrot.lane.b32.xlu0 %v2418, 16
  %v2849 = vpop.permute.xlu0 %2848
  %2850 = vrot.lane.b32.xlu0 %v2428, 16
  %v2851 = vpop.permute.xlu0 %2850
  %2852 = vrot.lane.b32.xlu0 %v2438, 16
  %v2853 = vpop.permute.xlu0 %2852
  %2854 = vrot.lane.b32.xlu0 %v2448, 16
  %v2855 = vpop.permute.xlu0 %2854
  %2856 = vrot.lane.b32.xlu0 %v2458, 16
  %v2857 = vpop.permute.xlu0 %2856
  %2858 = vrot.lane.b32.xlu0 %v2468, 16
  %v2859 = vpop.permute.xlu0 %2858
  %2860 = vrot.lane.b32.xlu0 %v2478, 16
  %v2861 = vpop.permute.xlu0 %2860
  %2862 = vrot.lane.b32.xlu0 %v2488, 16
  %v2863 = vpop.permute.xlu0 %2862
  %2864 = vrot.lane.b32.xlu0 %v2498, 16
  %v2865 = vpop.permute.xlu0 %2864
  %2866 = vrot.lane.b32.xlu0 %v2508, 16
  %v2867 = vpop.permute.xlu0 %2866
  %2868 = vrot.lane.b32.xlu0 %v2518, 16
  %v2869 = vpop.permute.xlu0 %2868
  %2870 = vrot.lane.b32.xlu0 %v2528, 16
  %v2871 = vpop.permute.xlu0 %2870
  %2872 = vrot.lane.b32.xlu0 %v2538, 16
  %v2873 = vpop.permute.xlu0 %2872
  %2874 = vrot.lane.b32.xlu0 %v2548, 16
  %v2875 = vpop.permute.xlu0 %2874
  %2876 = vrot.lane.b32.xlu0 %v2558, 16
  %v2877 = vpop.permute.xlu0 %2876
  %2878 = vrot.lane.b32.xlu0 %v2568, 16
  %v2879 = vpop.permute.xlu0 %2878
  %2880 = vrot.lane.b32.xlu0 %v2578, 16
  %v2881 = vpop.permute.xlu0 %2880
  %2882 = vrot.lane.b32.xlu0 %v2588, 16
  %v2883 = vpop.permute.xlu0 %2882
  %2884 = vrot.lane.b32.xlu0 %v2598, 16
  %v2885 = vpop.permute.xlu0 %2884
  %2886 = vrot.lane.b32.xlu0 %v2608, 16
  %v2887 = vpop.permute.xlu0 %2886
  %2888 = vrot.lane.b32.xlu0 %v2618, 16
  %v2889 = vpop.permute.xlu0 %2888
  %2890 = vrot.lane.b32.xlu0 %v2628, 16
  %v2891 = vpop.permute.xlu0 %2890
  %2892 = vrot.lane.b32.xlu0 %v2638, 16
  %v2893 = vpop.permute.xlu0 %2892
  %2894 = vrot.lane.b32.xlu0 %v2648, 16
  %v2895 = vpop.permute.xlu0 %2894
  %2896 = vrot.lane.b32.xlu0 %v2658, 16
  %v2897 = vpop.permute.xlu0 %2896
  %2898 = vrot.lane.b32.xlu0 %v2668, 16
  %v2899 = vpop.permute.xlu0 %2898
  %2900 = vrot.lane.b32.xlu0 %v2678, 16
  %v2901 = vpop.permute.xlu0 %2900
  %2902 = vrot.lane.b32.xlu0 %v2688, 16
  %v2903 = vpop.permute.xlu0 %2902
  %2904 = vrot.lane.b32.xlu0 %v2698, 16
  %v2905 = vpop.permute.xlu0 %2904
  %2906 = vrot.lane.b32.xlu0 %v2708, 16
  %v2907 = vpop.permute.xlu0 %2906
  %2908 = vrot.lane.b32.xlu0 %v2718, 16
  %v2909 = vpop.permute.xlu0 %2908
  %2910 = vrot.lane.b32.xlu0 %v2728, 16
  %v2911 = vpop.permute.xlu0 %2910
  %2912 = vrot.lane.b32.xlu0 %v2738, 16
  %v2913 = vpop.permute.xlu0 %2912
  %2914 = vrot.lane.b32.xlu0 %v2748, 16
  %v2915 = vpop.permute.xlu0 %2914
  %2916 = vrot.lane.b32.xlu0 %v2758, 16
  %v2917 = vpop.permute.xlu0 %2916
  %2918 = vrot.lane.b32.xlu0 %v2768, 16
  %v2919 = vpop.permute.xlu0 %2918
  %2920 = vrot.lane.b32.xlu0 %v2778, 16
  %v2921 = vpop.permute.xlu0 %2920
  %2922 = vrot.lane.b32.xlu0 %v2788, 16
  %v2923 = vpop.permute.xlu0 %2922
  %2924 = vrot.lane.b32.xlu0 %v2798, 16
  %v2925 = vpop.permute.xlu0 %2924
  %2926 = vrot.lane.b32.xlu0 %v2803, 16
  %v2927 = vpop.permute.xlu0 %2926
  %vm2990 = vcmask 158848
  %2991 = vst.msk [vmem:[#allocation2] sm:$0xf] %vm2990, %v2805
  %2992 = vst.msk [vmem:[#allocation2 + $0x4] sm:$0xf] %vm2990, %v2807
  %2993 = vst.msk [vmem:[#allocation2 + $0x8] sm:$0xf] %vm2990, %v2809
  %2994 = vst.msk [vmem:[#allocation2 + $0xc] sm:$0xf] %vm2990, %v2811
  %2995 = vst.msk [vmem:[#allocation2 + $0x10] sm:$0xf] %vm2990, %v2813
  %2996 = vst.msk [vmem:[#allocation2 + $0x14] sm:$0xf] %vm2990, %v2815
  %2997 = vst.msk [vmem:[#allocation2 + $0x18] sm:$0xf] %vm2990, %v2817
  %2998 = vst.msk [vmem:[#allocation2 + $0x1c] sm:$0xf] %vm2990, %v2819
  %2999 = vst.msk [vmem:[#allocation2 + $0x20] sm:$0xf] %vm2990, %v2821
  %3000 = vst.msk [vmem:[#allocation2 + $0x24] sm:$0xf] %vm2990, %v2823
  %3001 = vst.msk [vmem:[#allocation2 + $0x28] sm:$0xf] %vm2990, %v2825
  %3002 = vst.msk [vmem:[#allocation2 + $0x2c] sm:$0xf] %vm2990, %v2827
  %3003 = vst.msk [vmem:[#allocation2 + $0x30] sm:$0xf] %vm2990, %v2829
  %3004 = vst.msk [vmem:[#allocation2 + $0x34] sm:$0xf] %vm2990, %v2831
  %3005 = vst.msk [vmem:[#allocation2 + $0x38] sm:$0xf] %vm2990, %v2833
  %3006 = vst.msk [vmem:[#allocation2 + $0x3c] sm:$0xf] %vm2990, %v2835
  %3007 = vst.msk [vmem:[#allocation2 + $0x40] sm:$0xf] %vm2990, %v2837
  %3008 = vst.msk [vmem:[#allocation2 + $0x44] sm:$0xf] %vm2990, %v2839
  %3009 = vst.msk [vmem:[#allocation2 + $0x48] sm:$0xf] %vm2990, %v2841
  %3010 = vst.msk [vmem:[#allocation2 + $0x4c] sm:$0xf] %vm2990, %v2843
  %3011 = vst.msk [vmem:[#allocation2 + $0x50] sm:$0xf] %vm2990, %v2845
  %3012 = vst.msk [vmem:[#allocation2 + $0x54] sm:$0xf] %vm2990, %v2847
  %3013 = vst.msk [vmem:[#allocation2 + $0x58] sm:$0xf] %vm2990, %v2849
  %3014 = vst.msk [vmem:[#allocation2 + $0x5c] sm:$0xf] %vm2990, %v2851
  %3015 = vst.msk [vmem:[#allocation2 + $0x60] sm:$0xf] %vm2990, %v2853
  %3016 = vst.msk [vmem:[#allocation2 + $0x64] sm:$0xf] %vm2990, %v2855
  %3017 = vst.msk [vmem:[#allocation2 + $0x68] sm:$0xf] %vm2990, %v2857
  %3018 = vst.msk [vmem:[#allocation2 + $0x6c] sm:$0xf] %vm2990, %v2859
  %3019 = vst.msk [vmem:[#allocation2 + $0x70] sm:$0xf] %vm2990, %v2861
  %3020 = vst.msk [vmem:[#allocation2 + $0x74] sm:$0xf] %vm2990, %v2863
  %3021 = vst.msk [vmem:[#allocation2 + $0x78] sm:$0xf] %vm2990, %v2865
  %3022 = vst.msk [vmem:[#allocation2 + $0x7c] sm:$0xf] %vm2990, %v2867
  %3023 = vst.msk [vmem:[#allocation2 + $0x80] sm:$0xf] %vm2990, %v2869
  %3024 = vst.msk [vmem:[#allocation2 + $0x84] sm:$0xf] %vm2990, %v2871
  %3025 = vst.msk [vmem:[#allocation2 + $0x88] sm:$0xf] %vm2990, %v2873
  %3026 = vst.msk [vmem:[#allocation2 + $0x8c] sm:$0xf] %vm2990, %v2875
  %3027 = vst.msk [vmem:[#allocation2 + $0x90] sm:$0xf] %vm2990, %v2877
  %3028 = vst.msk [vmem:[#allocation2 + $0x94] sm:$0xf] %vm2990, %v2879
  %3029 = vst.msk [vmem:[#allocation2 + $0x98] sm:$0xf] %vm2990, %v2881
  %3030 = vst.msk [vmem:[#allocation2 + $0x9c] sm:$0xf] %vm2990, %v2883
  %3031 = vst.msk [vmem:[#allocation2 + $0xa0] sm:$0xf] %vm2990, %v2885
  %3032 = vst.msk [vmem:[#allocation2 + $0xa4] sm:$0xf] %vm2990, %v2887
  %3033 = vst.msk [vmem:[#allocation2 + $0xa8] sm:$0xf] %vm2990, %v2889
  %3034 = vst.msk [vmem:[#allocation2 + $0xac] sm:$0xf] %vm2990, %v2891
  %3035 = vst.msk [vmem:[#allocation2 + $0xb0] sm:$0xf] %vm2990, %v2893
  %3036 = vst.msk [vmem:[#allocation2 + $0xb4] sm:$0xf] %vm2990, %v2895
  %3037 = vst.msk [vmem:[#allocation2 + $0xb8] sm:$0xf] %vm2990, %v2897
  %3038 = vst.msk [vmem:[#allocation2 + $0xbc] sm:$0xf] %vm2990, %v2899
  %3039 = vst.msk [vmem:[#allocation2 + $0xc0] sm:$0xf] %vm2990, %v2901
  %3040 = vst.msk [vmem:[#allocation2 + $0xc4] sm:$0xf] %vm2990, %v2903
  %3041 = vst.msk [vmem:[#allocation2 + $0xc8] sm:$0xf] %vm2990, %v2905
  %3042 = vst.msk [vmem:[#allocation2 + $0xcc] sm:$0xf] %vm2990, %v2907
  %3043 = vst.msk [vmem:[#allocation2 + $0xd0] sm:$0xf] %vm2990, %v2909
  %3044 = vst.msk [vmem:[#allocation2 + $0xd4] sm:$0xf] %vm2990, %v2911
  %3045 = vst.msk [vmem:[#allocation2 + $0xd8] sm:$0xf] %vm2990, %v2913
  %3046 = vst.msk [vmem:[#allocation2 + $0xdc] sm:$0xf] %vm2990, %v2915
  %3047 = vst.msk [vmem:[#allocation2 + $0xe0] sm:$0xf] %vm2990, %v2917
  %3048 = vst.msk [vmem:[#allocation2 + $0xe4] sm:$0xf] %vm2990, %v2919
  %3049 = vst.msk [vmem:[#allocation2 + $0xe8] sm:$0xf] %vm2990, %v2921
  %3050 = vst.msk [vmem:[#allocation2 + $0xec] sm:$0xf] %vm2990, %v2923
  %3051 = vst.msk [vmem:[#allocation2 + $0xf0] sm:$0xf] %vm2990, %v2925
  %vm3052 = vcmask 158848
  %vm3053 = vmand %vm3052, %vm233
  %v3054 = vld [vmem:[#allocation2 + $0xf4] sm:$0xf]
  %v3055 = vsel %vm3053, %v2927, %v3054
  %3056 = vst [vmem:[#allocation2 + $0xf4] sm:$0xf] %v3055
  %v3057 = vld [vmem:[%s36] sm:$0xf]
  %v3058 = vld [vmem:[%s36 + $0x4] sm:$0xf]
  %v3059 = vld [vmem:[%s36 + $0x8] sm:$0x1]
  %v3061 = vshll.u32 %v3057, 16
  %v3063 = vrot.slane %v3061, 5
  %v3064 = vshrl.u32 %v3057, 16
  %v3066 = vrot.slane %v3064, 4
  %v3067 = vor.u32 %v3066, %v3063
  %v3068 = vrot.slane %v3067, 4
  %v3070 = vshll.u32 %v3058, 16
  %v3072 = vrot.slane %v3070, 5
  %v3073 = vsel %vm235, %v3068, %v3072
  %v3074 = vshrl.u32 %v3058, 16
  %v3076 = vrot.slane %v3074, 4
  %v3077 = vor.u32 %v3076, %v3072
  %v3078 = vrot.slane %v3077, 4
  %v3080 = vshll.u32 %v3059, 16
  %v3082 = vrot.slane %v3080, 5
  %v3083 = vsel %vm235, %v3078, %v3082
  %3084 = vrot.lane.b32.xlu0 %v3063, 16
  %v3085 = vpop.permute.xlu0 %3084
  %3086 = vrot.lane.b32.xlu0 %v3073, 16
  %v3087 = vpop.permute.xlu0 %3086
  %3088 = vrot.lane.b32.xlu0 %v3083, 16
  %v3089 = vpop.permute.xlu0 %3088
  %vm3093 = vcmask 158851
  %vm3094 = vmand %vm3093, %vm1145
  %v3095 = vld [vmem:[#allocation2 + $0xf4] sm:$0x8]
  %v3096 = vsel %vm3094, %v3085, %v3095
  %3097 = vst [vmem:[#allocation2 + $0xf4] sm:$0x8] %v3096
  %3098 = vst.msk [vmem:[#allocation2 + $0xf8] sm:$0xf] %vm2990, %v3087
  %3099 = vst.msk [vmem:[#allocation2 + $0xfc] sm:$0xf] %vm2990, %v3089
  %v3100 = vld [vmem:[%s0 + $0x8] sm:$0xe]
  %v3101 = vld [vmem:[%s0 + $0xc] sm:$0xf]
  %v3102 = vld [vmem:[%s0 + $0x10] sm:$0xf]
  %v3103 = vld [vmem:[%s0 + $0x14] sm:$0xf]
  %v3104 = vld [vmem:[%s0 + $0x18] sm:$0xf]
  %v3105 = vld [vmem:[%s0 + $0x1c] sm:$0xf]
  %v3106 = vld [vmem:[%s0 + $0x20] sm:$0xf]
  %v3107 = vld [vmem:[%s0 + $0x24] sm:$0xf]
  %v3108 = vld [vmem:[%s0 + $0x28] sm:$0xf]
  %v3109 = vld [vmem:[%s0 + $0x2c] sm:$0xf]
  %v3110 = vld [vmem:[%s0 + $0x30] sm:$0xf]
  %v3111 = vld [vmem:[%s0 + $0x34] sm:$0xf]
  %v3112 = vld [vmem:[%s0 + $0x38] sm:$0xf]
  %v3113 = vld [vmem:[%s0 + $0x3c] sm:$0xf]
  %v3114 = vld [vmem:[%s0 + $0x40] sm:$0xf]
  %v3115 = vld [vmem:[%s0 + $0x44] sm:$0xf]
  %v3116 = vld [vmem:[%s0 + $0x48] sm:$0xf]
  %v3117 = vld [vmem:[%s0 + $0x4c] sm:$0xf]
  %v3118 = vld [vmem:[%s0 + $0x50] sm:$0xf]
  %v3119 = vld [vmem:[%s0 + $0x54] sm:$0xf]
  %v3120 = vld [vmem:[%s0 + $0x58] sm:$0xf]
  %v3121 = vld [vmem:[%s0 + $0x5c] sm:$0xf]
  %v3122 = vld [vmem:[%s0 + $0x60] sm:$0xf]
  %v3123 = vld [vmem:[%s0 + $0x64] sm:$0xf]
  %v3124 = vld [vmem:[%s0 + $0x68] sm:$0xf]
  %v3125 = vld [vmem:[%s0 + $0x6c] sm:$0xf]
  %v3126 = vld [vmem:[%s0 + $0x70] sm:$0xf]
  %v3127 = vld [vmem:[%s0 + $0x74] sm:$0xf]
  %v3128 = vld [vmem:[%s0 + $0x78] sm:$0xf]
  %v3129 = vld [vmem:[%s0 + $0x7c] sm:$0xf]
  %v3130 = vld [vmem:[%s0 + $0x80] sm:$0xf]
  %v3131 = vld [vmem:[%s0 + $0x84] sm:$0xf]
  %v3132 = vld [vmem:[%s0 + $0x88] sm:$0xf]
  %v3133 = vld [vmem:[%s0 + $0x8c] sm:$0xf]
  %v3134 = vld [vmem:[%s0 + $0x90] sm:$0xf]
  %v3135 = vld [vmem:[%s0 + $0x94] sm:$0xf]
  %v3136 = vld [vmem:[%s0 + $0x98] sm:$0xf]
  %v3137 = vld [vmem:[%s0 + $0x9c] sm:$0xf]
  %v3138 = vld [vmem:[%s0 + $0xa0] sm:$0xf]
  %v3139 = vld [vmem:[%s0 + $0xa4] sm:$0xf]
  %v3140 = vld [vmem:[%s0 + $0xa8] sm:$0xf]
  %v3141 = vld [vmem:[%s0 + $0xac] sm:$0xf]
  %v3142 = vld [vmem:[%s0 + $0xb0] sm:$0xf]
  %v3143 = vld [vmem:[%s0 + $0xb4] sm:$0xf]
  %v3144 = vld [vmem:[%s0 + $0xb8] sm:$0xf]
  %v3145 = vld [vmem:[%s0 + $0xbc] sm:$0xf]
  %v3146 = vld [vmem:[%s0 + $0xc0] sm:$0xf]
  %v3147 = vld [vmem:[%s0 + $0xc4] sm:$0xf]
  %v3148 = vld [vmem:[%s0 + $0xc8] sm:$0xf]
  %v3149 = vld [vmem:[%s0 + $0xcc] sm:$0xf]
  %v3150 = vld [vmem:[%s0 + $0xd0] sm:$0xf]
  %v3151 = vld [vmem:[%s0 + $0xd4] sm:$0xf]
  %v3152 = vld [vmem:[%s0 + $0xd8] sm:$0xf]
  %v3153 = vld [vmem:[%s0 + $0xdc] sm:$0xf]
  %v3154 = vld [vmem:[%s0 + $0xe0] sm:$0xf]
  %v3155 = vld [vmem:[%s0 + $0xe4] sm:$0xf]
  %v3156 = vld [vmem:[%s0 + $0xe8] sm:$0xf]
  %v3157 = vld [vmem:[%s0 + $0xec] sm:$0xf]
  %v3158 = vld [vmem:[%s0 + $0xf0] sm:$0xf]
  %v3159 = vld [vmem:[%s0 + $0xf4] sm:$0xf]
  %v3160 = vld [vmem:[%s0 + $0xf8] sm:$0xf]
  %v3161 = vld [vmem:[%s0 + $0xfc] sm:$0xf]
  %v3224 = vrot.slane %v3100, 5
  %v3225 = vrot.slane %v3224, 4
  %v3226 = vrot.slane %v3101, 5
  %v3227 = vsel %vm1280, %v3225, %v3226
  %v3228 = vrot.slane %v3226, 4
  %v3229 = vrot.slane %v3102, 5
  %v3230 = vsel %vm1280, %v3228, %v3229
  %v3231 = vrot.slane %v3229, 4
  %v3232 = vrot.slane %v3103, 5
  %v3233 = vsel %vm1280, %v3231, %v3232
  %v3234 = vrot.slane %v3232, 4
  %v3235 = vrot.slane %v3104, 5
  %v3236 = vsel %vm1280, %v3234, %v3235
  %v3237 = vrot.slane %v3235, 4
  %v3238 = vrot.slane %v3105, 5
  %v3239 = vsel %vm1280, %v3237, %v3238
  %v3240 = vrot.slane %v3238, 4
  %v3241 = vrot.slane %v3106, 5
  %v3242 = vsel %vm1280, %v3240, %v3241
  %v3243 = vrot.slane %v3241, 4
  %v3244 = vrot.slane %v3107, 5
  %v3245 = vsel %vm1280, %v3243, %v3244
  %v3246 = vrot.slane %v3244, 4
  %v3247 = vrot.slane %v3108, 5
  %v3248 = vsel %vm1280, %v3246, %v3247
  %v3249 = vrot.slane %v3247, 4
  %v3250 = vrot.slane %v3109, 5
  %v3251 = vsel %vm1280, %v3249, %v3250
  %v3252 = vrot.slane %v3250, 4
  %v3253 = vrot.slane %v3110, 5
  %v3254 = vsel %vm1280, %v3252, %v3253
  %v3255 = vrot.slane %v3253, 4
  %v3256 = vrot.slane %v3111, 5
  %v3257 = vsel %vm1280, %v3255, %v3256
  %v3258 = vrot.slane %v3256, 4
  %v3259 = vrot.slane %v3112, 5
  %v3260 = vsel %vm1280, %v3258, %v3259
  %v3261 = vrot.slane %v3259, 4
  %v3262 = vrot.slane %v3113, 5
  %v3263 = vsel %vm1280, %v3261, %v3262
  %v3264 = vrot.slane %v3262, 4
  %v3265 = vrot.slane %v3114, 5
  %v3266 = vsel %vm1280, %v3264, %v3265
  %v3267 = vrot.slane %v3265, 4
  %v3268 = vrot.slane %v3115, 5
  %v3269 = vsel %vm1280, %v3267, %v3268
  %v3270 = vrot.slane %v3268, 4
  %v3271 = vrot.slane %v3116, 5
  %v3272 = vsel %vm1280, %v3270, %v3271
  %v3273 = vrot.slane %v3271, 4
  %v3274 = vrot.slane %v3117, 5
  %v3275 = vsel %vm1280, %v3273, %v3274
  %v3276 = vrot.slane %v3274, 4
  %v3277 = vrot.slane %v3118, 5
  %v3278 = vsel %vm1280, %v3276, %v3277
  %v3279 = vrot.slane %v3277, 4
  %v3280 = vrot.slane %v3119, 5
  %v3281 = vsel %vm1280, %v3279, %v3280
  %v3282 = vrot.slane %v3280, 4
  %v3283 = vrot.slane %v3120, 5
  %v3284 = vsel %vm1280, %v3282, %v3283
  %v3285 = vrot.slane %v3283, 4
  %v3286 = vrot.slane %v3121, 5
  %v3287 = vsel %vm1280, %v3285, %v3286
  %v3288 = vrot.slane %v3286, 4
  %v3289 = vrot.slane %v3122, 5
  %v3290 = vsel %vm1280, %v3288, %v3289
  %v3291 = vrot.slane %v3289, 4
  %v3292 = vrot.slane %v3123, 5
  %v3293 = vsel %vm1280, %v3291, %v3292
  %v3294 = vrot.slane %v3292, 4
  %v3295 = vrot.slane %v3124, 5
  %v3296 = vsel %vm1280, %v3294, %v3295
  %v3297 = vrot.slane %v3295, 4
  %v3298 = vrot.slane %v3125, 5
  %v3299 = vsel %vm1280, %v3297, %v3298
  %v3300 = vrot.slane %v3298, 4
  %v3301 = vrot.slane %v3126, 5
  %v3302 = vsel %vm1280, %v3300, %v3301
  %v3303 = vrot.slane %v3301, 4
  %v3304 = vrot.slane %v3127, 5
  %v3305 = vsel %vm1280, %v3303, %v3304
  %v3306 = vrot.slane %v3304, 4
  %v3307 = vrot.slane %v3128, 5
  %v3308 = vsel %vm1280, %v3306, %v3307
  %v3309 = vrot.slane %v3307, 4
  %v3310 = vrot.slane %v3129, 5
  %v3311 = vsel %vm1280, %v3309, %v3310
  %v3312 = vrot.slane %v3310, 4
  %v3313 = vrot.slane %v3130, 5
  %v3314 = vsel %vm1280, %v3312, %v3313
  %v3315 = vrot.slane %v3313, 4
  %v3316 = vrot.slane %v3131, 5
  %v3317 = vsel %vm1280, %v3315, %v3316
  %v3318 = vrot.slane %v3316, 4
  %v3319 = vrot.slane %v3132, 5
  %v3320 = vsel %vm1280, %v3318, %v3319
  %v3321 = vrot.slane %v3319, 4
  %v3322 = vrot.slane %v3133, 5
  %v3323 = vsel %vm1280, %v3321, %v3322
  %v3324 = vrot.slane %v3322, 4
  %v3325 = vrot.slane %v3134, 5
  %v3326 = vsel %vm1280, %v3324, %v3325
  %v3327 = vrot.slane %v3325, 4
  %v3328 = vrot.slane %v3135, 5
  %v3329 = vsel %vm1280, %v3327, %v3328
  %v3330 = vrot.slane %v3328, 4
  %v3331 = vrot.slane %v3136, 5
  %v3332 = vsel %vm1280, %v3330, %v3331
  %v3333 = vrot.slane %v3331, 4
  %v3334 = vrot.slane %v3137, 5
  %v3335 = vsel %vm1280, %v3333, %v3334
  %v3336 = vrot.slane %v3334, 4
  %v3337 = vrot.slane %v3138, 5
  %v3338 = vsel %vm1280, %v3336, %v3337
  %v3339 = vrot.slane %v3337, 4
  %v3340 = vrot.slane %v3139, 5
  %v3341 = vsel %vm1280, %v3339, %v3340
  %v3342 = vrot.slane %v3340, 4
  %v3343 = vrot.slane %v3140, 5
  %v3344 = vsel %vm1280, %v3342, %v3343
  %v3345 = vrot.slane %v3343, 4
  %v3346 = vrot.slane %v3141, 5
  %v3347 = vsel %vm1280, %v3345, %v3346
  %v3348 = vrot.slane %v3346, 4
  %v3349 = vrot.slane %v3142, 5
  %v3350 = vsel %vm1280, %v3348, %v3349
  %v3351 = vrot.slane %v3349, 4
  %v3352 = vrot.slane %v3143, 5
  %v3353 = vsel %vm1280, %v3351, %v3352
  %v3354 = vrot.slane %v3352, 4
  %v3355 = vrot.slane %v3144, 5
  %v3356 = vsel %vm1280, %v3354, %v3355
  %v3357 = vrot.slane %v3355, 4
  %v3358 = vrot.slane %v3145, 5
  %v3359 = vsel %vm1280, %v3357, %v3358
  %v3360 = vrot.slane %v3358, 4
  %v3361 = vrot.slane %v3146, 5
  %v3362 = vsel %vm1280, %v3360, %v3361
  %v3363 = vrot.slane %v3361, 4
  %v3364 = vrot.slane %v3147, 5
  %v3365 = vsel %vm1280, %v3363, %v3364
  %v3366 = vrot.slane %v3364, 4
  %v3367 = vrot.slane %v3148, 5
  %v3368 = vsel %vm1280, %v3366, %v3367
  %v3369 = vrot.slane %v3367, 4
  %v3370 = vrot.slane %v3149, 5
  %v3371 = vsel %vm1280, %v3369, %v3370
  %v3372 = vrot.slane %v3370, 4
  %v3373 = vrot.slane %v3150, 5
  %v3374 = vsel %vm1280, %v3372, %v3373
  %v3375 = vrot.slane %v3373, 4
  %v3376 = vrot.slane %v3151, 5
  %v3377 = vsel %vm1280, %v3375, %v3376
  %v3378 = vrot.slane %v3376, 4
  %v3379 = vrot.slane %v3152, 5
  %v3380 = vsel %vm1280, %v3378, %v3379
  %v3381 = vrot.slane %v3379, 4
  %v3382 = vrot.slane %v3153, 5
  %v3383 = vsel %vm1280, %v3381, %v3382
  %v3384 = vrot.slane %v3382, 4
  %v3385 = vrot.slane %v3154, 5
  %v3386 = vsel %vm1280, %v3384, %v3385
  %v3387 = vrot.slane %v3385, 4
  %v3388 = vrot.slane %v3155, 5
  %v3389 = vsel %vm1280, %v3387, %v3388
  %v3390 = vrot.slane %v3388, 4
  %v3391 = vrot.slane %v3156, 5
  %v3392 = vsel %vm1280, %v3390, %v3391
  %v3393 = vrot.slane %v3391, 4
  %v3394 = vrot.slane %v3157, 5
  %v3395 = vsel %vm1280, %v3393, %v3394
  %v3396 = vrot.slane %v3394, 4
  %v3397 = vrot.slane %v3158, 5
  %v3398 = vsel %vm1280, %v3396, %v3397
  %v3399 = vrot.slane %v3397, 4
  %v3400 = vrot.slane %v3159, 5
  %v3401 = vsel %vm1280, %v3399, %v3400
  %v3402 = vrot.slane %v3400, 4
  %v3403 = vrot.slane %v3160, 5
  %v3404 = vsel %vm1280, %v3402, %v3403
  %v3405 = vrot.slane %v3403, 4
  %v3406 = vrot.slane %v3161, 5
  %v3407 = vsel %vm1280, %v3405, %v3406
  %v3408 = vrot.slane %v3406, 4
  %3409 = vrot.lane.b32.xlu0 %v3227, 20
  %v3410 = vpop.permute.xlu0 %3409
  %3411 = vrot.lane.b32.xlu0 %v3230, 20
  %v3412 = vpop.permute.xlu0 %3411
  %3413 = vrot.lane.b32.xlu0 %v3233, 20
  %v3414 = vpop.permute.xlu0 %3413
  %3415 = vrot.lane.b32.xlu0 %v3236, 20
  %v3416 = vpop.permute.xlu0 %3415
  %3417 = vrot.lane.b32.xlu0 %v3239, 20
  %v3418 = vpop.permute.xlu0 %3417
  %3419 = vrot.lane.b32.xlu0 %v3242, 20
  %v3420 = vpop.permute.xlu0 %3419
  %3421 = vrot.lane.b32.xlu0 %v3245, 20
  %v3422 = vpop.permute.xlu0 %3421
  %3423 = vrot.lane.b32.xlu0 %v3248, 20
  %v3424 = vpop.permute.xlu0 %3423
  %3425 = vrot.lane.b32.xlu0 %v3251, 20
  %v3426 = vpop.permute.xlu0 %3425
  %3427 = vrot.lane.b32.xlu0 %v3254, 20
  %v3428 = vpop.permute.xlu0 %3427
  %3429 = vrot.lane.b32.xlu0 %v3257, 20
  %v3430 = vpop.permute.xlu0 %3429
  %3431 = vrot.lane.b32.xlu0 %v3260, 20
  %v3432 = vpop.permute.xlu0 %3431
  %3433 = vrot.lane.b32.xlu0 %v3263, 20
  %v3434 = vpop.permute.xlu0 %3433
  %3435 = vrot.lane.b32.xlu0 %v3266, 20
  %v3436 = vpop.permute.xlu0 %3435
  %3437 = vrot.lane.b32.xlu0 %v3269, 20
  %v3438 = vpop.permute.xlu0 %3437
  %3439 = vrot.lane.b32.xlu0 %v3272, 20
  %v3440 = vpop.permute.xlu0 %3439
  %3441 = vrot.lane.b32.xlu0 %v3275, 20
  %v3442 = vpop.permute.xlu0 %3441
  %3443 = vrot.lane.b32.xlu0 %v3278, 20
  %v3444 = vpop.permute.xlu0 %3443
  %3445 = vrot.lane.b32.xlu0 %v3281, 20
  %v3446 = vpop.permute.xlu0 %3445
  %3447 = vrot.lane.b32.xlu0 %v3284, 20
  %v3448 = vpop.permute.xlu0 %3447
  %3449 = vrot.lane.b32.xlu0 %v3287, 20
  %v3450 = vpop.permute.xlu0 %3449
  %3451 = vrot.lane.b32.xlu0 %v3290, 20
  %v3452 = vpop.permute.xlu0 %3451
  %3453 = vrot.lane.b32.xlu0 %v3293, 20
  %v3454 = vpop.permute.xlu0 %3453
  %3455 = vrot.lane.b32.xlu0 %v3296, 20
  %v3456 = vpop.permute.xlu0 %3455
  %3457 = vrot.lane.b32.xlu0 %v3299, 20
  %v3458 = vpop.permute.xlu0 %3457
  %3459 = vrot.lane.b32.xlu0 %v3302, 20
  %v3460 = vpop.permute.xlu0 %3459
  %3461 = vrot.lane.b32.xlu0 %v3305, 20
  %v3462 = vpop.permute.xlu0 %3461
  %3463 = vrot.lane.b32.xlu0 %v3308, 20
  %v3464 = vpop.permute.xlu0 %3463
  %3465 = vrot.lane.b32.xlu0 %v3311, 20
  %v3466 = vpop.permute.xlu0 %3465
  %3467 = vrot.lane.b32.xlu0 %v3314, 20
  %v3468 = vpop.permute.xlu0 %3467
  %3469 = vrot.lane.b32.xlu0 %v3317, 20
  %v3470 = vpop.permute.xlu0 %3469
  %3471 = vrot.lane.b32.xlu0 %v3320, 20
  %v3472 = vpop.permute.xlu0 %3471
  %3473 = vrot.lane.b32.xlu0 %v3323, 20
  %v3474 = vpop.permute.xlu0 %3473
  %3475 = vrot.lane.b32.xlu0 %v3326, 20
  %v3476 = vpop.permute.xlu0 %3475
  %3477 = vrot.lane.b32.xlu0 %v3329, 20
  %v3478 = vpop.permute.xlu0 %3477
  %3479 = vrot.lane.b32.xlu0 %v3332, 20
  %v3480 = vpop.permute.xlu0 %3479
  %3481 = vrot.lane.b32.xlu0 %v3335, 20
  %v3482 = vpop.permute.xlu0 %3481
  %3483 = vrot.lane.b32.xlu0 %v3338, 20
  %v3484 = vpop.permute.xlu0 %3483
  %3485 = vrot.lane.b32.xlu0 %v3341, 20
  %v3486 = vpop.permute.xlu0 %3485
  %3487 = vrot.lane.b32.xlu0 %v3344, 20
  %v3488 = vpop.permute.xlu0 %3487
  %3489 = vrot.lane.b32.xlu0 %v3347, 20
  %v3490 = vpop.permute.xlu0 %3489
  %3491 = vrot.lane.b32.xlu0 %v3350, 20
  %v3492 = vpop.permute.xlu0 %3491
  %3493 = vrot.lane.b32.xlu0 %v3353, 20
  %v3494 = vpop.permute.xlu0 %3493
  %3495 = vrot.lane.b32.xlu0 %v3356, 20
  %v3496 = vpop.permute.xlu0 %3495
  %3497 = vrot.lane.b32.xlu0 %v3359, 20
  %v3498 = vpop.permute.xlu0 %3497
  %3499 = vrot.lane.b32.xlu0 %v3362, 20
  %v3500 = vpop.permute.xlu0 %3499
  %3501 = vrot.lane.b32.xlu0 %v3365, 20
  %v3502 = vpop.permute.xlu0 %3501
  %3503 = vrot.lane.b32.xlu0 %v3368, 20
  %v3504 = vpop.permute.xlu0 %3503
  %3505 = vrot.lane.b32.xlu0 %v3371, 20
  %v3506 = vpop.permute.xlu0 %3505
  %3507 = vrot.lane.b32.xlu0 %v3374, 20
  %v3508 = vpop.permute.xlu0 %3507
  %3509 = vrot.lane.b32.xlu0 %v3377, 20
  %v3510 = vpop.permute.xlu0 %3509
  %3511 = vrot.lane.b32.xlu0 %v3380, 20
  %v3512 = vpop.permute.xlu0 %3511
  %3513 = vrot.lane.b32.xlu0 %v3383, 20
  %v3514 = vpop.permute.xlu0 %3513
  %3515 = vrot.lane.b32.xlu0 %v3386, 20
  %v3516 = vpop.permute.xlu0 %3515
  %3517 = vrot.lane.b32.xlu0 %v3389, 20
  %v3518 = vpop.permute.xlu0 %3517
  %3519 = vrot.lane.b32.xlu0 %v3392, 20
  %v3520 = vpop.permute.xlu0 %3519
  %3521 = vrot.lane.b32.xlu0 %v3395, 20
  %v3522 = vpop.permute.xlu0 %3521
  %3523 = vrot.lane.b32.xlu0 %v3398, 20
  %v3524 = vpop.permute.xlu0 %3523
  %3525 = vrot.lane.b32.xlu0 %v3401, 20
  %v3526 = vpop.permute.xlu0 %3525
  %3527 = vrot.lane.b32.xlu0 %v3404, 20
  %v3528 = vpop.permute.xlu0 %3527
  %3529 = vrot.lane.b32.xlu0 %v3407, 20
  %v3530 = vpop.permute.xlu0 %3529
  %3531 = vrot.lane.b32.xlu0 %v3408, 20
  %v3532 = vpop.permute.xlu0 %3531
  %vm3595 = vcmask 191648
  %3596 = vst.msk [vmem:[#allocation2] sm:$0xf] %vm3595, %v3410
  %3597 = vst.msk [vmem:[#allocation2 + $0x4] sm:$0xf] %vm3595, %v3412
  %3598 = vst.msk [vmem:[#allocation2 + $0x8] sm:$0xf] %vm3595, %v3414
  %3599 = vst.msk [vmem:[#allocation2 + $0xc] sm:$0xf] %vm3595, %v3416
  %3600 = vst.msk [vmem:[#allocation2 + $0x10] sm:$0xf] %vm3595, %v3418
  %3601 = vst.msk [vmem:[#allocation2 + $0x14] sm:$0xf] %vm3595, %v3420
  %3602 = vst.msk [vmem:[#allocation2 + $0x18] sm:$0xf] %vm3595, %v3422
  %3603 = vst.msk [vmem:[#allocation2 + $0x1c] sm:$0xf] %vm3595, %v3424
  %3604 = vst.msk [vmem:[#allocation2 + $0x20] sm:$0xf] %vm3595, %v3426
  %3605 = vst.msk [vmem:[#allocation2 + $0x24] sm:$0xf] %vm3595, %v3428
  %3606 = vst.msk [vmem:[#allocation2 + $0x28] sm:$0xf] %vm3595, %v3430
  %3607 = vst.msk [vmem:[#allocation2 + $0x2c] sm:$0xf] %vm3595, %v3432
  %3608 = vst.msk [vmem:[#allocation2 + $0x30] sm:$0xf] %vm3595, %v3434
  %3609 = vst.msk [vmem:[#allocation2 + $0x34] sm:$0xf] %vm3595, %v3436
  %3610 = vst.msk [vmem:[#allocation2 + $0x38] sm:$0xf] %vm3595, %v3438
  %3611 = vst.msk [vmem:[#allocation2 + $0x3c] sm:$0xf] %vm3595, %v3440
  %3612 = vst.msk [vmem:[#allocation2 + $0x40] sm:$0xf] %vm3595, %v3442
  %3613 = vst.msk [vmem:[#allocation2 + $0x44] sm:$0xf] %vm3595, %v3444
  %3614 = vst.msk [vmem:[#allocation2 + $0x48] sm:$0xf] %vm3595, %v3446
  %3615 = vst.msk [vmem:[#allocation2 + $0x4c] sm:$0xf] %vm3595, %v3448
  %3616 = vst.msk [vmem:[#allocation2 + $0x50] sm:$0xf] %vm3595, %v3450
  %3617 = vst.msk [vmem:[#allocation2 + $0x54] sm:$0xf] %vm3595, %v3452
  %3618 = vst.msk [vmem:[#allocation2 + $0x58] sm:$0xf] %vm3595, %v3454
  %3619 = vst.msk [vmem:[#allocation2 + $0x5c] sm:$0xf] %vm3595, %v3456
  %3620 = vst.msk [vmem:[#allocation2 + $0x60] sm:$0xf] %vm3595, %v3458
  %3621 = vst.msk [vmem:[#allocation2 + $0x64] sm:$0xf] %vm3595, %v3460
  %3622 = vst.msk [vmem:[#allocation2 + $0x68] sm:$0xf] %vm3595, %v3462
  %3623 = vst.msk [vmem:[#allocation2 + $0x6c] sm:$0xf] %vm3595, %v3464
  %3624 = vst.msk [vmem:[#allocation2 + $0x70] sm:$0xf] %vm3595, %v3466
  %3625 = vst.msk [vmem:[#allocation2 + $0x74] sm:$0xf] %vm3595, %v3468
  %3626 = vst.msk [vmem:[#allocation2 + $0x78] sm:$0xf] %vm3595, %v3470
  %3627 = vst.msk [vmem:[#allocation2 + $0x7c] sm:$0xf] %vm3595, %v3472
  %3628 = vst.msk [vmem:[#allocation2 + $0x80] sm:$0xf] %vm3595, %v3474
  %3629 = vst.msk [vmem:[#allocation2 + $0x84] sm:$0xf] %vm3595, %v3476
  %3630 = vst.msk [vmem:[#allocation2 + $0x88] sm:$0xf] %vm3595, %v3478
  %3631 = vst.msk [vmem:[#allocation2 + $0x8c] sm:$0xf] %vm3595, %v3480
  %3632 = vst.msk [vmem:[#allocation2 + $0x90] sm:$0xf] %vm3595, %v3482
  %3633 = vst.msk [vmem:[#allocation2 + $0x94] sm:$0xf] %vm3595, %v3484
  %3634 = vst.msk [vmem:[#allocation2 + $0x98] sm:$0xf] %vm3595, %v3486
  %3635 = vst.msk [vmem:[#allocation2 + $0x9c] sm:$0xf] %vm3595, %v3488
  %3636 = vst.msk [vmem:[#allocation2 + $0xa0] sm:$0xf] %vm3595, %v3490
  %3637 = vst.msk [vmem:[#allocation2 + $0xa4] sm:$0xf] %vm3595, %v3492
  %3638 = vst.msk [vmem:[#allocation2 + $0xa8] sm:$0xf] %vm3595, %v3494
  %3639 = vst.msk [vmem:[#allocation2 + $0xac] sm:$0xf] %vm3595, %v3496
  %3640 = vst.msk [vmem:[#allocation2 + $0xb0] sm:$0xf] %vm3595, %v3498
  %3641 = vst.msk [vmem:[#allocation2 + $0xb4] sm:$0xf] %vm3595, %v3500
  %3642 = vst.msk [vmem:[#allocation2 + $0xb8] sm:$0xf] %vm3595, %v3502
  %3643 = vst.msk [vmem:[#allocation2 + $0xbc] sm:$0xf] %vm3595, %v3504
  %3644 = vst.msk [vmem:[#allocation2 + $0xc0] sm:$0xf] %vm3595, %v3506
  %3645 = vst.msk [vmem:[#allocation2 + $0xc4] sm:$0xf] %vm3595, %v3508
  %3646 = vst.msk [vmem:[#allocation2 + $0xc8] sm:$0xf] %vm3595, %v3510
  %3647 = vst.msk [vmem:[#allocation2 + $0xcc] sm:$0xf] %vm3595, %v3512
  %3648 = vst.msk [vmem:[#allocation2 + $0xd0] sm:$0xf] %vm3595, %v3514
  %3649 = vst.msk [vmem:[#allocation2 + $0xd4] sm:$0xf] %vm3595, %v3516
  %3650 = vst.msk [vmem:[#allocation2 + $0xd8] sm:$0xf] %vm3595, %v3518
  %3651 = vst.msk [vmem:[#allocation2 + $0xdc] sm:$0xf] %vm3595, %v3520
  %3652 = vst.msk [vmem:[#allocation2 + $0xe0] sm:$0xf] %vm3595, %v3522
  %3653 = vst.msk [vmem:[#allocation2 + $0xe4] sm:$0xf] %vm3595, %v3524
  %3654 = vst.msk [vmem:[#allocation2 + $0xe8] sm:$0xf] %vm3595, %v3526
  %3655 = vst.msk [vmem:[#allocation2 + $0xec] sm:$0xf] %vm3595, %v3528
  %3656 = vst.msk [vmem:[#allocation2 + $0xf0] sm:$0xf] %vm3595, %v3530
  %vm3657 = vcmask 190624
  %3658 = vst.msk [vmem:[#allocation2 + $0xf4] sm:$0x7] %vm3657, %v3532
  %v3659 = vld [vmem:[%s36] sm:$0xf]
  %v3660 = vld [vmem:[%s36 + $0x4] sm:$0xf]
  %v3661 = vld [vmem:[%s36 + $0x8] sm:$0x1]
  %v3665 = vrot.slane %v3659, 5
  %v3666 = vrot.slane %v3665, 4
  %v3667 = vrot.slane %v3660, 5
  %v3668 = vsel %vm1280, %v3666, %v3667
  %v3669 = vrot.slane %v3667, 4
  %v3670 = vrot.slane %v3661, 5
  %v3671 = vsel %vm1280, %v3669, %v3670
  %3672 = vrot.lane.b32.xlu0 %v3665, 20
  %v3673 = vpop.permute.xlu0 %3672
  %3674 = vrot.lane.b32.xlu0 %v3668, 20
  %v3675 = vpop.permute.xlu0 %3674
  %3676 = vrot.lane.b32.xlu0 %v3671, 20
  %v3677 = vpop.permute.xlu0 %3676
  %vm3681 = vcmask 191651
  %3682 = vst.msk [vmem:[#allocation2 + $0xf4] sm:$0x8] %vm3681, %v3673
  %3683 = vst.msk [vmem:[#allocation2 + $0xf8] sm:$0xf] %vm3595, %v3675
  %3684 = vst.msk [vmem:[#allocation2 + $0xfc] sm:$0xf] %vm3595, %v3677
  %v3685 = vld [vmem:[%s0 + $0x10] sm:$0xf]
  %v3686 = vld [vmem:[%s0 + $0x14] sm:$0xf]
  %v3687 = vld [vmem:[%s0 + $0x18] sm:$0xf]
  %v3688 = vld [vmem:[%s0 + $0x1c] sm:$0xf]
  %v3689 = vld [vmem:[%s0 + $0x20] sm:$0xf]
  %v3690 = vld [vmem:[%s0 + $0x24] sm:$0xf]
  %v3691 = vld [vmem:[%s0 + $0x28] sm:$0xf]
  %v3692 = vld [vmem:[%s0 + $0x2c] sm:$0xf]
  %v3693 = vld [vmem:[%s0 + $0x30] sm:$0xf]
  %v3694 = vld [vmem:[%s0 + $0x34] sm:$0xf]
  %v3695 = vld [vmem:[%s0 + $0x38] sm:$0xf]
  %v3696 = vld [vmem:[%s0 + $0x3c] sm:$0xf]
  %v3697 = vld [vmem:[%s0 + $0x40] sm:$0xf]
  %v3698 = vld [vmem:[%s0 + $0x44] sm:$0xf]
  %v3699 = vld [vmem:[%s0 + $0x48] sm:$0xf]
  %v3700 = vld [vmem:[%s0 + $0x4c] sm:$0xf]
  %v3701 = vld [vmem:[%s0 + $0x50] sm:$0xf]
  %v3702 = vld [vmem:[%s0 + $0x54] sm:$0xf]
  %v3703 = vld [vmem:[%s0 + $0x58] sm:$0xf]
  %v3704 = vld [vmem:[%s0 + $0x5c] sm:$0xf]
  %v3705 = vld [vmem:[%s0 + $0x60] sm:$0xf]
  %v3706 = vld [vmem:[%s0 + $0x64] sm:$0xf]
  %v3707 = vld [vmem:[%s0 + $0x68] sm:$0xf]
  %v3708 = vld [vmem:[%s0 + $0x6c] sm:$0xf]
  %v3709 = vld [vmem:[%s0 + $0x70] sm:$0xf]
  %v3710 = vld [vmem:[%s0 + $0x74] sm:$0xf]
  %v3711 = vld [vmem:[%s0 + $0x78] sm:$0xf]
  %v3712 = vld [vmem:[%s0 + $0x7c] sm:$0xf]
  %v3713 = vld [vmem:[%s0 + $0x80] sm:$0xf]
  %v3714 = vld [vmem:[%s0 + $0x84] sm:$0xf]
  %v3715 = vld [vmem:[%s0 + $0x88] sm:$0xf]
  %v3716 = vld [vmem:[%s0 + $0x8c] sm:$0xf]
  %v3717 = vld [vmem:[%s0 + $0x90] sm:$0xf]
  %v3718 = vld [vmem:[%s0 + $0x94] sm:$0xf]
  %v3719 = vld [vmem:[%s0 + $0x98] sm:$0xf]
  %v3720 = vld [vmem:[%s0 + $0x9c] sm:$0xf]
  %v3721 = vld [vmem:[%s0 + $0xa0] sm:$0xf]
  %v3722 = vld [vmem:[%s0 + $0xa4] sm:$0xf]
  %v3723 = vld [vmem:[%s0 + $0xa8] sm:$0xf]
  %v3724 = vld [vmem:[%s0 + $0xac] sm:$0xf]
  %v3725 = vld [vmem:[%s0 + $0xb0] sm:$0xf]
  %v3726 = vld [vmem:[%s0 + $0xb4] sm:$0xf]
  %v3727 = vld [vmem:[%s0 + $0xb8] sm:$0xf]
  %v3728 = vld [vmem:[%s0 + $0xbc] sm:$0xf]
  %v3729 = vld [vmem:[%s0 + $0xc0] sm:$0xf]
  %v3730 = vld [vmem:[%s0 + $0xc4] sm:$0xf]
  %v3731 = vld [vmem:[%s0 + $0xc8] sm:$0xf]
  %v3732 = vld [vmem:[%s0 + $0xcc] sm:$0xf]
  %v3733 = vld [vmem:[%s0 + $0xd0] sm:$0xf]
  %v3734 = vld [vmem:[%s0 + $0xd4] sm:$0xf]
  %v3735 = vld [vmem:[%s0 + $0xd8] sm:$0xf]
  %v3736 = vld [vmem:[%s0 + $0xdc] sm:$0xf]
  %v3737 = vld [vmem:[%s0 + $0xe0] sm:$0xf]
  %v3738 = vld [vmem:[%s0 + $0xe4] sm:$0xf]
  %v3739 = vld [vmem:[%s0 + $0xe8] sm:$0xf]
  %v3740 = vld [vmem:[%s0 + $0xec] sm:$0xf]
  %v3741 = vld [vmem:[%s0 + $0xf0] sm:$0xf]
  %v3742 = vld [vmem:[%s0 + $0xf4] sm:$0xf]
  %v3743 = vld [vmem:[%s0 + $0xf8] sm:$0xf]
  %v3744 = vld [vmem:[%s0 + $0xfc] sm:$0xf]
  %3805 = vrot.lane.b32.xlu0 %v3685, 24
  %v3806 = vpop.permute.xlu0 %3805
  %3807 = vrot.lane.b32.xlu0 %v3686, 24
  %v3808 = vpop.permute.xlu0 %3807
  %3809 = vrot.lane.b32.xlu0 %v3687, 24
  %v3810 = vpop.permute.xlu0 %3809
  %3811 = vrot.lane.b32.xlu0 %v3688, 24
  %v3812 = vpop.permute.xlu0 %3811
  %3813 = vrot.lane.b32.xlu0 %v3689, 24
  %v3814 = vpop.permute.xlu0 %3813
  %3815 = vrot.lane.b32.xlu0 %v3690, 24
  %v3816 = vpop.permute.xlu0 %3815
  %3817 = vrot.lane.b32.xlu0 %v3691, 24
  %v3818 = vpop.permute.xlu0 %3817
  %3819 = vrot.lane.b32.xlu0 %v3692, 24
  %v3820 = vpop.permute.xlu0 %3819
  %3821 = vrot.lane.b32.xlu0 %v3693, 24
  %v3822 = vpop.permute.xlu0 %3821
  %3823 = vrot.lane.b32.xlu0 %v3694, 24
  %v3824 = vpop.permute.xlu0 %3823
  %3825 = vrot.lane.b32.xlu0 %v3695, 24
  %v3826 = vpop.permute.xlu0 %3825
  %3827 = vrot.lane.b32.xlu0 %v3696, 24
  %v3828 = vpop.permute.xlu0 %3827
  %3829 = vrot.lane.b32.xlu0 %v3697, 24
  %v3830 = vpop.permute.xlu0 %3829
  %3831 = vrot.lane.b32.xlu0 %v3698, 24
  %v3832 = vpop.permute.xlu0 %3831
  %3833 = vrot.lane.b32.xlu0 %v3699, 24
  %v3834 = vpop.permute.xlu0 %3833
  %3835 = vrot.lane.b32.xlu0 %v3700, 24
  %v3836 = vpop.permute.xlu0 %3835
  %3837 = vrot.lane.b32.xlu0 %v3701, 24
  %v3838 = vpop.permute.xlu0 %3837
  %3839 = vrot.lane.b32.xlu0 %v3702, 24
  %v3840 = vpop.permute.xlu0 %3839
  %3841 = vrot.lane.b32.xlu0 %v3703, 24
  %v3842 = vpop.permute.xlu0 %3841
  %3843 = vrot.lane.b32.xlu0 %v3704, 24
  %v3844 = vpop.permute.xlu0 %3843
  %3845 = vrot.lane.b32.xlu0 %v3705, 24
  %v3846 = vpop.permute.xlu0 %3845
  %3847 = vrot.lane.b32.xlu0 %v3706, 24
  %v3848 = vpop.permute.xlu0 %3847
  %3849 = vrot.lane.b32.xlu0 %v3707, 24
  %v3850 = vpop.permute.xlu0 %3849
  %3851 = vrot.lane.b32.xlu0 %v3708, 24
  %v3852 = vpop.permute.xlu0 %3851
  %3853 = vrot.lane.b32.xlu0 %v3709, 24
  %v3854 = vpop.permute.xlu0 %3853
  %3855 = vrot.lane.b32.xlu0 %v3710, 24
  %v3856 = vpop.permute.xlu0 %3855
  %3857 = vrot.lane.b32.xlu0 %v3711, 24
  %v3858 = vpop.permute.xlu0 %3857
  %3859 = vrot.lane.b32.xlu0 %v3712, 24
  %v3860 = vpop.permute.xlu0 %3859
  %3861 = vrot.lane.b32.xlu0 %v3713, 24
  %v3862 = vpop.permute.xlu0 %3861
  %3863 = vrot.lane.b32.xlu0 %v3714, 24
  %v3864 = vpop.permute.xlu0 %3863
  %3865 = vrot.lane.b32.xlu0 %v3715, 24
  %v3866 = vpop.permute.xlu0 %3865
  %3867 = vrot.lane.b32.xlu0 %v3716, 24
  %v3868 = vpop.permute.xlu0 %3867
  %3869 = vrot.lane.b32.xlu0 %v3717, 24
  %v3870 = vpop.permute.xlu0 %3869
  %3871 = vrot.lane.b32.xlu0 %v3718, 24
  %v3872 = vpop.permute.xlu0 %3871
  %3873 = vrot.lane.b32.xlu0 %v3719, 24
  %v3874 = vpop.permute.xlu0 %3873
  %3875 = vrot.lane.b32.xlu0 %v3720, 24
  %v3876 = vpop.permute.xlu0 %3875
  %3877 = vrot.lane.b32.xlu0 %v3721, 24
  %v3878 = vpop.permute.xlu0 %3877
  %3879 = vrot.lane.b32.xlu0 %v3722, 24
  %v3880 = vpop.permute.xlu0 %3879
  %3881 = vrot.lane.b32.xlu0 %v3723, 24
  %v3882 = vpop.permute.xlu0 %3881
  %3883 = vrot.lane.b32.xlu0 %v3724, 24
  %v3884 = vpop.permute.xlu0 %3883
  %3885 = vrot.lane.b32.xlu0 %v3725, 24
  %v3886 = vpop.permute.xlu0 %3885
  %3887 = vrot.lane.b32.xlu0 %v3726, 24
  %v3888 = vpop.permute.xlu0 %3887
  %3889 = vrot.lane.b32.xlu0 %v3727, 24
  %v3890 = vpop.permute.xlu0 %3889
  %3891 = vrot.lane.b32.xlu0 %v3728, 24
  %v3892 = vpop.permute.xlu0 %3891
  %3893 = vrot.lane.b32.xlu0 %v3729, 24
  %v3894 = vpop.permute.xlu0 %3893
  %3895 = vrot.lane.b32.xlu0 %v3730, 24
  %v3896 = vpop.permute.xlu0 %3895
  %3897 = vrot.lane.b32.xlu0 %v3731, 24
  %v3898 = vpop.permute.xlu0 %3897
  %3899 = vrot.lane.b32.xlu0 %v3732, 24
  %v3900 = vpop.permute.xlu0 %3899
  %3901 = vrot.lane.b32.xlu0 %v3733, 24
  %v3902 = vpop.permute.xlu0 %3901
  %3903 = vrot.lane.b32.xlu0 %v3734, 24
  %v3904 = vpop.permute.xlu0 %3903
  %3905 = vrot.lane.b32.xlu0 %v3735, 24
  %v3906 = vpop.permute.xlu0 %3905
  %3907 = vrot.lane.b32.xlu0 %v3736, 24
  %v3908 = vpop.permute.xlu0 %3907
  %3909 = vrot.lane.b32.xlu0 %v3737, 24
  %v3910 = vpop.permute.xlu0 %3909
  %3911 = vrot.lane.b32.xlu0 %v3738, 24
  %v3912 = vpop.permute.xlu0 %3911
  %3913 = vrot.lane.b32.xlu0 %v3739, 24
  %v3914 = vpop.permute.xlu0 %3913
  %3915 = vrot.lane.b32.xlu0 %v3740, 24
  %v3916 = vpop.permute.xlu0 %3915
  %3917 = vrot.lane.b32.xlu0 %v3741, 24
  %v3918 = vpop.permute.xlu0 %3917
  %3919 = vrot.lane.b32.xlu0 %v3742, 24
  %v3920 = vpop.permute.xlu0 %3919
  %3921 = vrot.lane.b32.xlu0 %v3743, 24
  %v3922 = vpop.permute.xlu0 %3921
  %3923 = vrot.lane.b32.xlu0 %v3744, 24
  %v3924 = vpop.permute.xlu0 %3923
  %vm3985 = vcmask 224448
  %3986 = vst.msk [vmem:[#allocation2] sm:$0xf] %vm3985, %v3806
  %3987 = vst.msk [vmem:[#allocation2 + $0x4] sm:$0xf] %vm3985, %v3808
  %3988 = vst.msk [vmem:[#allocation2 + $0x8] sm:$0xf] %vm3985, %v3810
  %3989 = vst.msk [vmem:[#allocation2 + $0xc] sm:$0xf] %vm3985, %v3812
  %3990 = vst.msk [vmem:[#allocation2 + $0x10] sm:$0xf] %vm3985, %v3814
  %3991 = vst.msk [vmem:[#allocation2 + $0x14] sm:$0xf] %vm3985, %v3816
  %3992 = vst.msk [vmem:[#allocation2 + $0x18] sm:$0xf] %vm3985, %v3818
  %3993 = vst.msk [vmem:[#allocation2 + $0x1c] sm:$0xf] %vm3985, %v3820
  %3994 = vst.msk [vmem:[#allocation2 + $0x20] sm:$0xf] %vm3985, %v3822
  %3995 = vst.msk [vmem:[#allocation2 + $0x24] sm:$0xf] %vm3985, %v3824
  %3996 = vst.msk [vmem:[#allocation2 + $0x28] sm:$0xf] %vm3985, %v3826
  %3997 = vst.msk [vmem:[#allocation2 + $0x2c] sm:$0xf] %vm3985, %v3828
  %3998 = vst.msk [vmem:[#allocation2 + $0x30] sm:$0xf] %vm3985, %v3830
  %3999 = vst.msk [vmem:[#allocation2 + $0x34] sm:$0xf] %vm3985, %v3832
  %4000 = vst.msk [vmem:[#allocation2 + $0x38] sm:$0xf] %vm3985, %v3834
  %4001 = vst.msk [vmem:[#allocation2 + $0x3c] sm:$0xf] %vm3985, %v3836
  %4002 = vst.msk [vmem:[#allocation2 + $0x40] sm:$0xf] %vm3985, %v3838
  %4003 = vst.msk [vmem:[#allocation2 + $0x44] sm:$0xf] %vm3985, %v3840
  %4004 = vst.msk [vmem:[#allocation2 + $0x48] sm:$0xf] %vm3985, %v3842
  %4005 = vst.msk [vmem:[#allocation2 + $0x4c] sm:$0xf] %vm3985, %v3844
  %4006 = vst.msk [vmem:[#allocation2 + $0x50] sm:$0xf] %vm3985, %v3846
  %4007 = vst.msk [vmem:[#allocation2 + $0x54] sm:$0xf] %vm3985, %v3848
  %4008 = vst.msk [vmem:[#allocation2 + $0x58] sm:$0xf] %vm3985, %v3850
  %4009 = vst.msk [vmem:[#allocation2 + $0x5c] sm:$0xf] %vm3985, %v3852
  %4010 = vst.msk [vmem:[#allocation2 + $0x60] sm:$0xf] %vm3985, %v3854
  %4011 = vst.msk [vmem:[#allocation2 + $0x64] sm:$0xf] %vm3985, %v3856
  %4012 = vst.msk [vmem:[#allocation2 + $0x68] sm:$0xf] %vm3985, %v3858
  %4013 = vst.msk [vmem:[#allocation2 + $0x6c] sm:$0xf] %vm3985, %v3860
  %4014 = vst.msk [vmem:[#allocation2 + $0x70] sm:$0xf] %vm3985, %v3862
  %4015 = vst.msk [vmem:[#allocation2 + $0x74] sm:$0xf] %vm3985, %v3864
  %4016 = vst.msk [vmem:[#allocation2 + $0x78] sm:$0xf] %vm3985, %v3866
  %4017 = vst.msk [vmem:[#allocation2 + $0x7c] sm:$0xf] %vm3985, %v3868
  %4018 = vst.msk [vmem:[#allocation2 + $0x80] sm:$0xf] %vm3985, %v3870
  %4019 = vst.msk [vmem:[#allocation2 + $0x84] sm:$0xf] %vm3985, %v3872
  %4020 = vst.msk [vmem:[#allocation2 + $0x88] sm:$0xf] %vm3985, %v3874
  %4021 = vst.msk [vmem:[#allocation2 + $0x8c] sm:$0xf] %vm3985, %v3876
  %4022 = vst.msk [vmem:[#allocation2 + $0x90] sm:$0xf] %vm3985, %v3878
  %4023 = vst.msk [vmem:[#allocation2 + $0x94] sm:$0xf] %vm3985, %v3880
  %4024 = vst.msk [vmem:[#allocation2 + $0x98] sm:$0xf] %vm3985, %v3882
  %4025 = vst.msk [vmem:[#allocation2 + $0x9c] sm:$0xf] %vm3985, %v3884
  %4026 = vst.msk [vmem:[#allocation2 + $0xa0] sm:$0xf] %vm3985, %v3886
  %4027 = vst.msk [vmem:[#allocation2 + $0xa4] sm:$0xf] %vm3985, %v3888
  %4028 = vst.msk [vmem:[#allocation2 + $0xa8] sm:$0xf] %vm3985, %v3890
  %4029 = vst.msk [vmem:[#allocation2 + $0xac] sm:$0xf] %vm3985, %v3892
  %4030 = vst.msk [vmem:[#allocation2 + $0xb0] sm:$0xf] %vm3985, %v3894
  %4031 = vst.msk [vmem:[#allocation2 + $0xb4] sm:$0xf] %vm3985, %v3896
  %4032 = vst.msk [vmem:[#allocation2 + $0xb8] sm:$0xf] %vm3985, %v3898
  %4033 = vst.msk [vmem:[#allocation2 + $0xbc] sm:$0xf] %vm3985, %v3900
  %4034 = vst.msk [vmem:[#allocation2 + $0xc0] sm:$0xf] %vm3985, %v3902
  %4035 = vst.msk [vmem:[#allocation2 + $0xc4] sm:$0xf] %vm3985, %v3904
  %4036 = vst.msk [vmem:[#allocation2 + $0xc8] sm:$0xf] %vm3985, %v3906
  %4037 = vst.msk [vmem:[#allocation2 + $0xcc] sm:$0xf] %vm3985, %v3908
  %4038 = vst.msk [vmem:[#allocation2 + $0xd0] sm:$0xf] %vm3985, %v3910
  %4039 = vst.msk [vmem:[#allocation2 + $0xd4] sm:$0xf] %vm3985, %v3912
  %4040 = vst.msk [vmem:[#allocation2 + $0xd8] sm:$0xf] %vm3985, %v3914
  %4041 = vst.msk [vmem:[#allocation2 + $0xdc] sm:$0xf] %vm3985, %v3916
  %4042 = vst.msk [vmem:[#allocation2 + $0xe0] sm:$0xf] %vm3985, %v3918
  %4043 = vst.msk [vmem:[#allocation2 + $0xe4] sm:$0xf] %vm3985, %v3920
  %4044 = vst.msk [vmem:[#allocation2 + $0xe8] sm:$0xf] %vm3985, %v3922
  %4045 = vst.msk [vmem:[#allocation2 + $0xec] sm:$0xf] %vm3985, %v3924
  %v4046 = vld [vmem:[%s36] sm:$0xf]
  %v4047 = vld [vmem:[%s36 + $0x4] sm:$0xf]
  %v4048 = vld [vmem:[%s36 + $0x8] sm:$0xf]
  %v4049 = vld [vmem:[%s36 + $0xc] sm:$0xf]
  %4054 = vrot.lane.b32.xlu0 %v4046, 24
  %v4055 = vpop.permute.xlu0 %4054
  %4056 = vrot.lane.b32.xlu0 %v4047, 24
  %v4057 = vpop.permute.xlu0 %4056
  %4058 = vrot.lane.b32.xlu0 %v4048, 24
  %v4059 = vpop.permute.xlu0 %4058
  %4060 = vrot.lane.b32.xlu0 %v4049, 24
  %v4061 = vpop.permute.xlu0 %4060
  %4066 = vst.msk [vmem:[#allocation2 + $0xf0] sm:$0xf] %vm3985, %v4055
  %4067 = vst.msk [vmem:[#allocation2 + $0xf4] sm:$0xf] %vm3985, %v4057
  %4068 = vst.msk [vmem:[#allocation2 + $0xf8] sm:$0xf] %vm3985, %v4059
  %4069 = vst.msk [vmem:[#allocation2 + $0xfc] sm:$0xf] %vm3985, %v4061
  %v4070 = vld [vmem:[%s0 + $0x10] sm:$0xf]
  %v4071 = vld [vmem:[%s0 + $0x14] sm:$0xf]
  %v4072 = vld [vmem:[%s0 + $0x18] sm:$0xf]
  %v4073 = vld [vmem:[%s0 + $0x1c] sm:$0xf]
  %v4074 = vld [vmem:[%s0 + $0x20] sm:$0xf]
  %v4075 = vld [vmem:[%s0 + $0x24] sm:$0xf]
  %v4076 = vld [vmem:[%s0 + $0x28] sm:$0xf]
  %v4077 = vld [vmem:[%s0 + $0x2c] sm:$0xf]
  %v4078 = vld [vmem:[%s0 + $0x30] sm:$0xf]
  %v4079 = vld [vmem:[%s0 + $0x34] sm:$0xf]
  %v4080 = vld [vmem:[%s0 + $0x38] sm:$0xf]
  %v4081 = vld [vmem:[%s0 + $0x3c] sm:$0xf]
  %v4082 = vld [vmem:[%s0 + $0x40] sm:$0xf]
  %v4083 = vld [vmem:[%s0 + $0x44] sm:$0xf]
  %v4084 = vld [vmem:[%s0 + $0x48] sm:$0xf]
  %v4085 = vld [vmem:[%s0 + $0x4c] sm:$0xf]
  %v4086 = vld [vmem:[%s0 + $0x50] sm:$0xf]
  %v4087 = vld [vmem:[%s0 + $0x54] sm:$0xf]
  %v4088 = vld [vmem:[%s0 + $0x58] sm:$0xf]
  %v4089 = vld [vmem:[%s0 + $0x5c] sm:$0xf]
  %v4090 = vld [vmem:[%s0 + $0x60] sm:$0xf]
  %v4091 = vld [vmem:[%s0 + $0x64] sm:$0xf]
  %v4092 = vld [vmem:[%s0 + $0x68] sm:$0xf]
  %v4093 = vld [vmem:[%s0 + $0x6c] sm:$0xf]
  %v4094 = vld [vmem:[%s0 + $0x70] sm:$0xf]
  %v4095 = vld [vmem:[%s0 + $0x74] sm:$0xf]
  %v4096 = vld [vmem:[%s0 + $0x78] sm:$0xf]
  %v4097 = vld [vmem:[%s0 + $0x7c] sm:$0xf]
  %v4098 = vld [vmem:[%s0 + $0x80] sm:$0xf]
  %v4099 = vld [vmem:[%s0 + $0x84] sm:$0xf]
  %v4100 = vld [vmem:[%s0 + $0x88] sm:$0xf]
  %v4101 = vld [vmem:[%s0 + $0x8c] sm:$0xf]
  %v4102 = vld [vmem:[%s0 + $0x90] sm:$0xf]
  %v4103 = vld [vmem:[%s0 + $0x94] sm:$0xf]
  %v4104 = vld [vmem:[%s0 + $0x98] sm:$0xf]
  %v4105 = vld [vmem:[%s0 + $0x9c] sm:$0xf]
  %v4106 = vld [vmem:[%s0 + $0xa0] sm:$0xf]
  %v4107 = vld [vmem:[%s0 + $0xa4] sm:$0xf]
  %v4108 = vld [vmem:[%s0 + $0xa8] sm:$0xf]
  %v4109 = vld [vmem:[%s0 + $0xac] sm:$0xf]
  %v4110 = vld [vmem:[%s0 + $0xb0] sm:$0xf]
  %v4111 = vld [vmem:[%s0 + $0xb4] sm:$0xf]
  %v4112 = vld [vmem:[%s0 + $0xb8] sm:$0xf]
  %v4113 = vld [vmem:[%s0 + $0xbc] sm:$0xf]
  %v4114 = vld [vmem:[%s0 + $0xc0] sm:$0xf]
  %v4115 = vld [vmem:[%s0 + $0xc4] sm:$0xf]
  %v4116 = vld [vmem:[%s0 + $0xc8] sm:$0xf]
  %v4117 = vld [vmem:[%s0 + $0xcc] sm:$0xf]
  %v4118 = vld [vmem:[%s0 + $0xd0] sm:$0xf]
  %v4119 = vld [vmem:[%s0 + $0xd4] sm:$0xf]
  %v4120 = vld [vmem:[%s0 + $0xd8] sm:$0xf]
  %v4121 = vld [vmem:[%s0 + $0xdc] sm:$0xf]
  %v4122 = vld [vmem:[%s0 + $0xe0] sm:$0xf]
  %v4123 = vld [vmem:[%s0 + $0xe4] sm:$0xf]
  %v4124 = vld [vmem:[%s0 + $0xe8] sm:$0xf]
  %v4125 = vld [vmem:[%s0 + $0xec] sm:$0xf]
  %v4126 = vld [vmem:[%s0 + $0xf0] sm:$0xf]
  %v4127 = vld [vmem:[%s0 + $0xf4] sm:$0xf]
  %v4128 = vld [vmem:[%s0 + $0xf8] sm:$0xf]
  %v4129 = vld [vmem:[%s0 + $0xfc] sm:$0xf]
  %v4131 = vshrl.u32 %v4070, 16
  %v4133 = vrot.slane %v4131, 4
  %v4134 = vshll.u32 %v4070, 16
  %v4136 = vrot.slane %v4134, 5
  %v4137 = vor.u32 %v4133, %v4136
  %v4138 = vrot.slane %v4137, 4
  %v4140 = vshll.u32 %v4071, 16
  %v4142 = vrot.slane %v4140, 5
  %v4143 = vsel %vm235, %v4138, %v4142
  %v4144 = vshrl.u32 %v4071, 16
  %v4146 = vrot.slane %v4144, 4
  %v4147 = vor.u32 %v4146, %v4142
  %v4148 = vrot.slane %v4147, 4
  %v4150 = vshll.u32 %v4072, 16
  %v4152 = vrot.slane %v4150, 5
  %v4153 = vsel %vm235, %v4148, %v4152
  %v4154 = vshrl.u32 %v4072, 16
  %v4156 = vrot.slane %v4154, 4
  %v4157 = vor.u32 %v4156, %v4152
  %v4158 = vrot.slane %v4157, 4
  %v4160 = vshll.u32 %v4073, 16
  %v4162 = vrot.slane %v4160, 5
  %v4163 = vsel %vm235, %v4158, %v4162
  %v4164 = vshrl.u32 %v4073, 16
  %v4166 = vrot.slane %v4164, 4
  %v4167 = vor.u32 %v4166, %v4162
  %v4168 = vrot.slane %v4167, 4
  %v4170 = vshll.u32 %v4074, 16
  %v4172 = vrot.slane %v4170, 5
  %v4173 = vsel %vm235, %v4168, %v4172
  %v4174 = vshrl.u32 %v4074, 16
  %v4176 = vrot.slane %v4174, 4
  %v4177 = vor.u32 %v4176, %v4172
  %v4178 = vrot.slane %v4177, 4
  %v4180 = vshll.u32 %v4075, 16
  %v4182 = vrot.slane %v4180, 5
  %v4183 = vsel %vm235, %v4178, %v4182
  %v4184 = vshrl.u32 %v4075, 16
  %v4186 = vrot.slane %v4184, 4
  %v4187 = vor.u32 %v4186, %v4182
  %v4188 = vrot.slane %v4187, 4
  %v4190 = vshll.u32 %v4076, 16
  %v4192 = vrot.slane %v4190, 5
  %v4193 = vsel %vm235, %v4188, %v4192
  %v4194 = vshrl.u32 %v4076, 16
  %v4196 = vrot.slane %v4194, 4
  %v4197 = vor.u32 %v4196, %v4192
  %v4198 = vrot.slane %v4197, 4
  %v4200 = vshll.u32 %v4077, 16
  %v4202 = vrot.slane %v4200, 5
  %v4203 = vsel %vm235, %v4198, %v4202
  %v4204 = vshrl.u32 %v4077, 16
  %v4206 = vrot.slane %v4204, 4
  %v4207 = vor.u32 %v4206, %v4202
  %v4208 = vrot.slane %v4207, 4
  %v4210 = vshll.u32 %v4078, 16
  %v4212 = vrot.slane %v4210, 5
  %v4213 = vsel %vm235, %v4208, %v4212
  %v4214 = vshrl.u32 %v4078, 16
  %v4216 = vrot.slane %v4214, 4
  %v4217 = vor.u32 %v4216, %v4212
  %v4218 = vrot.slane %v4217, 4
  %v4220 = vshll.u32 %v4079, 16
  %v4222 = vrot.slane %v4220, 5
  %v4223 = vsel %vm235, %v4218, %v4222
  %v4224 = vshrl.u32 %v4079, 16
  %v4226 = vrot.slane %v4224, 4
  %v4227 = vor.u32 %v4226, %v4222
  %v4228 = vrot.slane %v4227, 4
  %v4230 = vshll.u32 %v4080, 16
  %v4232 = vrot.slane %v4230, 5
  %v4233 = vsel %vm235, %v4228, %v4232
  %v4234 = vshrl.u32 %v4080, 16
  %v4236 = vrot.slane %v4234, 4
  %v4237 = vor.u32 %v4236, %v4232
  %v4238 = vrot.slane %v4237, 4
  %v4240 = vshll.u32 %v4081, 16
  %v4242 = vrot.slane %v4240, 5
  %v4243 = vsel %vm235, %v4238, %v4242
  %v4244 = vshrl.u32 %v4081, 16
  %v4246 = vrot.slane %v4244, 4
  %v4247 = vor.u32 %v4246, %v4242
  %v4248 = vrot.slane %v4247, 4
  %v4250 = vshll.u32 %v4082, 16
  %v4252 = vrot.slane %v4250, 5
  %v4253 = vsel %vm235, %v4248, %v4252
  %v4254 = vshrl.u32 %v4082, 16
  %v4256 = vrot.slane %v4254, 4
  %v4257 = vor.u32 %v4256, %v4252
  %v4258 = vrot.slane %v4257, 4
  %v4260 = vshll.u32 %v4083, 16
  %v4262 = vrot.slane %v4260, 5
  %v4263 = vsel %vm235, %v4258, %v4262
  %v4264 = vshrl.u32 %v4083, 16
  %v4266 = vrot.slane %v4264, 4
  %v4267 = vor.u32 %v4266, %v4262
  %v4268 = vrot.slane %v4267, 4
  %v4270 = vshll.u32 %v4084, 16
  %v4272 = vrot.slane %v4270, 5
  %v4273 = vsel %vm235, %v4268, %v4272
  %v4274 = vshrl.u32 %v4084, 16
  %v4276 = vrot.slane %v4274, 4
  %v4277 = vor.u32 %v4276, %v4272
  %v4278 = vrot.slane %v4277, 4
  %v4280 = vshll.u32 %v4085, 16
  %v4282 = vrot.slane %v4280, 5
  %v4283 = vsel %vm235, %v4278, %v4282
  %v4284 = vshrl.u32 %v4085, 16
  %v4286 = vrot.slane %v4284, 4
  %v4287 = vor.u32 %v4286, %v4282
  %v4288 = vrot.slane %v4287, 4
  %v4290 = vshll.u32 %v4086, 16
  %v4292 = vrot.slane %v4290, 5
  %v4293 = vsel %vm235, %v4288, %v4292
  %v4294 = vshrl.u32 %v4086, 16
  %v4296 = vrot.slane %v4294, 4
  %v4297 = vor.u32 %v4296, %v4292
  %v4298 = vrot.slane %v4297, 4
  %v4300 = vshll.u32 %v4087, 16
  %v4302 = vrot.slane %v4300, 5
  %v4303 = vsel %vm235, %v4298, %v4302
  %v4304 = vshrl.u32 %v4087, 16
  %v4306 = vrot.slane %v4304, 4
  %v4307 = vor.u32 %v4306, %v4302
  %v4308 = vrot.slane %v4307, 4
  %v4310 = vshll.u32 %v4088, 16
  %v4312 = vrot.slane %v4310, 5
  %v4313 = vsel %vm235, %v4308, %v4312
  %v4314 = vshrl.u32 %v4088, 16
  %v4316 = vrot.slane %v4314, 4
  %v4317 = vor.u32 %v4316, %v4312
  %v4318 = vrot.slane %v4317, 4
  %v4320 = vshll.u32 %v4089, 16
  %v4322 = vrot.slane %v4320, 5
  %v4323 = vsel %vm235, %v4318, %v4322
  %v4324 = vshrl.u32 %v4089, 16
  %v4326 = vrot.slane %v4324, 4
  %v4327 = vor.u32 %v4326, %v4322
  %v4328 = vrot.slane %v4327, 4
  %v4330 = vshll.u32 %v4090, 16
  %v4332 = vrot.slane %v4330, 5
  %v4333 = vsel %vm235, %v4328, %v4332
  %v4334 = vshrl.u32 %v4090, 16
  %v4336 = vrot.slane %v4334, 4
  %v4337 = vor.u32 %v4336, %v4332
  %v4338 = vrot.slane %v4337, 4
  %v4340 = vshll.u32 %v4091, 16
  %v4342 = vrot.slane %v4340, 5
  %v4343 = vsel %vm235, %v4338, %v4342
  %v4344 = vshrl.u32 %v4091, 16
  %v4346 = vrot.slane %v4344, 4
  %v4347 = vor.u32 %v4346, %v4342
  %v4348 = vrot.slane %v4347, 4
  %v4350 = vshll.u32 %v4092, 16
  %v4352 = vrot.slane %v4350, 5
  %v4353 = vsel %vm235, %v4348, %v4352
  %v4354 = vshrl.u32 %v4092, 16
  %v4356 = vrot.slane %v4354, 4
  %v4357 = vor.u32 %v4356, %v4352
  %v4358 = vrot.slane %v4357, 4
  %v4360 = vshll.u32 %v4093, 16
  %v4362 = vrot.slane %v4360, 5
  %v4363 = vsel %vm235, %v4358, %v4362
  %v4364 = vshrl.u32 %v4093, 16
  %v4366 = vrot.slane %v4364, 4
  %v4367 = vor.u32 %v4366, %v4362
  %v4368 = vrot.slane %v4367, 4
  %v4370 = vshll.u32 %v4094, 16
  %v4372 = vrot.slane %v4370, 5
  %v4373 = vsel %vm235, %v4368, %v4372
  %v4374 = vshrl.u32 %v4094, 16
  %v4376 = vrot.slane %v4374, 4
  %v4377 = vor.u32 %v4376, %v4372
  %v4378 = vrot.slane %v4377, 4
  %v4380 = vshll.u32 %v4095, 16
  %v4382 = vrot.slane %v4380, 5
  %v4383 = vsel %vm235, %v4378, %v4382
  %v4384 = vshrl.u32 %v4095, 16
  %v4386 = vrot.slane %v4384, 4
  %v4387 = vor.u32 %v4386, %v4382
  %v4388 = vrot.slane %v4387, 4
  %v4390 = vshll.u32 %v4096, 16
  %v4392 = vrot.slane %v4390, 5
  %v4393 = vsel %vm235, %v4388, %v4392
  %v4394 = vshrl.u32 %v4096, 16
  %v4396 = vrot.slane %v4394, 4
  %v4397 = vor.u32 %v4396, %v4392
  %v4398 = vrot.slane %v4397, 4
  %v4400 = vshll.u32 %v4097, 16
  %v4402 = vrot.slane %v4400, 5
  %v4403 = vsel %vm235, %v4398, %v4402
  %v4404 = vshrl.u32 %v4097, 16
  %v4406 = vrot.slane %v4404, 4
  %v4407 = vor.u32 %v4406, %v4402
  %v4408 = vrot.slane %v4407, 4
  %v4410 = vshll.u32 %v4098, 16
  %v4412 = vrot.slane %v4410, 5
  %v4413 = vsel %vm235, %v4408, %v4412
  %v4414 = vshrl.u32 %v4098, 16
  %v4416 = vrot.slane %v4414, 4
  %v4417 = vor.u32 %v4416, %v4412
  %v4418 = vrot.slane %v4417, 4
  %v4420 = vshll.u32 %v4099, 16
  %v4422 = vrot.slane %v4420, 5
  %v4423 = vsel %vm235, %v4418, %v4422
  %v4424 = vshrl.u32 %v4099, 16
  %v4426 = vrot.slane %v4424, 4
  %v4427 = vor.u32 %v4426, %v4422
  %v4428 = vrot.slane %v4427, 4
  %v4430 = vshll.u32 %v4100, 16
  %v4432 = vrot.slane %v4430, 5
  %v4433 = vsel %vm235, %v4428, %v4432
  %v4434 = vshrl.u32 %v4100, 16
  %v4436 = vrot.slane %v4434, 4
  %v4437 = vor.u32 %v4436, %v4432
  %v4438 = vrot.slane %v4437, 4
  %v4440 = vshll.u32 %v4101, 16
  %v4442 = vrot.slane %v4440, 5
  %v4443 = vsel %vm235, %v4438, %v4442
  %v4444 = vshrl.u32 %v4101, 16
  %v4446 = vrot.slane %v4444, 4
  %v4447 = vor.u32 %v4446, %v4442
  %v4448 = vrot.slane %v4447, 4
  %v4450 = vshll.u32 %v4102, 16
  %v4452 = vrot.slane %v4450, 5
  %v4453 = vsel %vm235, %v4448, %v4452
  %v4454 = vshrl.u32 %v4102, 16
  %v4456 = vrot.slane %v4454, 4
  %v4457 = vor.u32 %v4456, %v4452
  %v4458 = vrot.slane %v4457, 4
  %v4460 = vshll.u32 %v4103, 16
  %v4462 = vrot.slane %v4460, 5
  %v4463 = vsel %vm235, %v4458, %v4462
  %v4464 = vshrl.u32 %v4103, 16
  %v4466 = vrot.slane %v4464, 4
  %v4467 = vor.u32 %v4466, %v4462
  %v4468 = vrot.slane %v4467, 4
  %v4470 = vshll.u32 %v4104, 16
  %v4472 = vrot.slane %v4470, 5
  %v4473 = vsel %vm235, %v4468, %v4472
  %v4474 = vshrl.u32 %v4104, 16
  %v4476 = vrot.slane %v4474, 4
  %v4477 = vor.u32 %v4476, %v4472
  %v4478 = vrot.slane %v4477, 4
  %v4480 = vshll.u32 %v4105, 16
  %v4482 = vrot.slane %v4480, 5
  %v4483 = vsel %vm235, %v4478, %v4482
  %v4484 = vshrl.u32 %v4105, 16
  %v4486 = vrot.slane %v4484, 4
  %v4487 = vor.u32 %v4486, %v4482
  %v4488 = vrot.slane %v4487, 4
  %v4490 = vshll.u32 %v4106, 16
  %v4492 = vrot.slane %v4490, 5
  %v4493 = vsel %vm235, %v4488, %v4492
  %v4494 = vshrl.u32 %v4106, 16
  %v4496 = vrot.slane %v4494, 4
  %v4497 = vor.u32 %v4496, %v4492
  %v4498 = vrot.slane %v4497, 4
  %v4500 = vshll.u32 %v4107, 16
  %v4502 = vrot.slane %v4500, 5
  %v4503 = vsel %vm235, %v4498, %v4502
  %v4504 = vshrl.u32 %v4107, 16
  %v4506 = vrot.slane %v4504, 4
  %v4507 = vor.u32 %v4506, %v4502
  %v4508 = vrot.slane %v4507, 4
  %v4510 = vshll.u32 %v4108, 16
  %v4512 = vrot.slane %v4510, 5
  %v4513 = vsel %vm235, %v4508, %v4512
  %v4514 = vshrl.u32 %v4108, 16
  %v4516 = vrot.slane %v4514, 4
  %v4517 = vor.u32 %v4516, %v4512
  %v4518 = vrot.slane %v4517, 4
  %v4520 = vshll.u32 %v4109, 16
  %v4522 = vrot.slane %v4520, 5
  %v4523 = vsel %vm235, %v4518, %v4522
  %v4524 = vshrl.u32 %v4109, 16
  %v4526 = vrot.slane %v4524, 4
  %v4527 = vor.u32 %v4526, %v4522
  %v4528 = vrot.slane %v4527, 4
  %v4530 = vshll.u32 %v4110, 16
  %v4532 = vrot.slane %v4530, 5
  %v4533 = vsel %vm235, %v4528, %v4532
  %v4534 = vshrl.u32 %v4110, 16
  %v4536 = vrot.slane %v4534, 4
  %v4537 = vor.u32 %v4536, %v4532
  %v4538 = vrot.slane %v4537, 4
  %v4540 = vshll.u32 %v4111, 16
  %v4542 = vrot.slane %v4540, 5
  %v4543 = vsel %vm235, %v4538, %v4542
  %v4544 = vshrl.u32 %v4111, 16
  %v4546 = vrot.slane %v4544, 4
  %v4547 = vor.u32 %v4546, %v4542
  %v4548 = vrot.slane %v4547, 4
  %v4550 = vshll.u32 %v4112, 16
  %v4552 = vrot.slane %v4550, 5
  %v4553 = vsel %vm235, %v4548, %v4552
  %v4554 = vshrl.u32 %v4112, 16
  %v4556 = vrot.slane %v4554, 4
  %v4557 = vor.u32 %v4556, %v4552
  %v4558 = vrot.slane %v4557, 4
  %v4560 = vshll.u32 %v4113, 16
  %v4562 = vrot.slane %v4560, 5
  %v4563 = vsel %vm235, %v4558, %v4562
  %v4564 = vshrl.u32 %v4113, 16
  %v4566 = vrot.slane %v4564, 4
  %v4567 = vor.u32 %v4566, %v4562
  %v4568 = vrot.slane %v4567, 4
  %v4570 = vshll.u32 %v4114, 16
  %v4572 = vrot.slane %v4570, 5
  %v4573 = vsel %vm235, %v4568, %v4572
  %v4574 = vshrl.u32 %v4114, 16
  %v4576 = vrot.slane %v4574, 4
  %v4577 = vor.u32 %v4576, %v4572
  %v4578 = vrot.slane %v4577, 4
  %v4580 = vshll.u32 %v4115, 16
  %v4582 = vrot.slane %v4580, 5
  %v4583 = vsel %vm235, %v4578, %v4582
  %v4584 = vshrl.u32 %v4115, 16
  %v4586 = vrot.slane %v4584, 4
  %v4587 = vor.u32 %v4586, %v4582
  %v4588 = vrot.slane %v4587, 4
  %v4590 = vshll.u32 %v4116, 16
  %v4592 = vrot.slane %v4590, 5
  %v4593 = vsel %vm235, %v4588, %v4592
  %v4594 = vshrl.u32 %v4116, 16
  %v4596 = vrot.slane %v4594, 4
  %v4597 = vor.u32 %v4596, %v4592
  %v4598 = vrot.slane %v4597, 4
  %v4600 = vshll.u32 %v4117, 16
  %v4602 = vrot.slane %v4600, 5
  %v4603 = vsel %vm235, %v4598, %v4602
  %v4604 = vshrl.u32 %v4117, 16
  %v4606 = vrot.slane %v4604, 4
  %v4607 = vor.u32 %v4606, %v4602
  %v4608 = vrot.slane %v4607, 4
  %v4610 = vshll.u32 %v4118, 16
  %v4612 = vrot.slane %v4610, 5
  %v4613 = vsel %vm235, %v4608, %v4612
  %v4614 = vshrl.u32 %v4118, 16
  %v4616 = vrot.slane %v4614, 4
  %v4617 = vor.u32 %v4616, %v4612
  %v4618 = vrot.slane %v4617, 4
  %v4620 = vshll.u32 %v4119, 16
  %v4622 = vrot.slane %v4620, 5
  %v4623 = vsel %vm235, %v4618, %v4622
  %v4624 = vshrl.u32 %v4119, 16
  %v4626 = vrot.slane %v4624, 4
  %v4627 = vor.u32 %v4626, %v4622
  %v4628 = vrot.slane %v4627, 4
  %v4630 = vshll.u32 %v4120, 16
  %v4632 = vrot.slane %v4630, 5
  %v4633 = vsel %vm235, %v4628, %v4632
  %v4634 = vshrl.u32 %v4120, 16
  %v4636 = vrot.slane %v4634, 4
  %v4637 = vor.u32 %v4636, %v4632
  %v4638 = vrot.slane %v4637, 4
  %v4640 = vshll.u32 %v4121, 16
  %v4642 = vrot.slane %v4640, 5
  %v4643 = vsel %vm235, %v4638, %v4642
  %v4644 = vshrl.u32 %v4121, 16
  %v4646 = vrot.slane %v4644, 4
  %v4647 = vor.u32 %v4646, %v4642
  %v4648 = vrot.slane %v4647, 4
  %v4650 = vshll.u32 %v4122, 16
  %v4652 = vrot.slane %v4650, 5
  %v4653 = vsel %vm235, %v4648, %v4652
  %v4654 = vshrl.u32 %v4122, 16
  %v4656 = vrot.slane %v4654, 4
  %v4657 = vor.u32 %v4656, %v4652
  %v4658 = vrot.slane %v4657, 4
  %v4660 = vshll.u32 %v4123, 16
  %v4662 = vrot.slane %v4660, 5
  %v4663 = vsel %vm235, %v4658, %v4662
  %v4664 = vshrl.u32 %v4123, 16
  %v4666 = vrot.slane %v4664, 4
  %v4667 = vor.u32 %v4666, %v4662
  %v4668 = vrot.slane %v4667, 4
  %v4670 = vshll.u32 %v4124, 16
  %v4672 = vrot.slane %v4670, 5
  %v4673 = vsel %vm235, %v4668, %v4672
  %v4674 = vshrl.u32 %v4124, 16
  %v4676 = vrot.slane %v4674, 4
  %v4677 = vor.u32 %v4676, %v4672
  %v4678 = vrot.slane %v4677, 4
  %v4680 = vshll.u32 %v4125, 16
  %v4682 = vrot.slane %v4680, 5
  %v4683 = vsel %vm235, %v4678, %v4682
  %v4684 = vshrl.u32 %v4125, 16
  %v4686 = vrot.slane %v4684, 4
  %v4687 = vor.u32 %v4686, %v4682
  %v4688 = vrot.slane %v4687, 4
  %v4690 = vshll.u32 %v4126, 16
  %v4692 = vrot.slane %v4690, 5
  %v4693 = vsel %vm235, %v4688, %v4692
  %v4694 = vshrl.u32 %v4126, 16
  %v4696 = vrot.slane %v4694, 4
  %v4697 = vor.u32 %v4696, %v4692
  %v4698 = vrot.slane %v4697, 4
  %v4700 = vshll.u32 %v4127, 16
  %v4702 = vrot.slane %v4700, 5
  %v4703 = vsel %vm235, %v4698, %v4702
  %v4704 = vshrl.u32 %v4127, 16
  %v4706 = vrot.slane %v4704, 4
  %v4707 = vor.u32 %v4706, %v4702
  %v4708 = vrot.slane %v4707, 4
  %v4710 = vshll.u32 %v4128, 16
  %v4712 = vrot.slane %v4710, 5
  %v4713 = vsel %vm235, %v4708, %v4712
  %v4714 = vshrl.u32 %v4128, 16
  %v4716 = vrot.slane %v4714, 4
  %v4717 = vor.u32 %v4716, %v4712
  %v4718 = vrot.slane %v4717, 4
  %v4720 = vshll.u32 %v4129, 16
  %v4722 = vrot.slane %v4720, 5
  %v4723 = vsel %vm235, %v4718, %v4722
  %v4724 = vshrl.u32 %v4129, 16
  %v4726 = vrot.slane %v4724, 4
  %v4727 = vor.u32 %v4726, %v4722
  %v4728 = vrot.slane %v4727, 4
  %4729 = vrot.lane.b32.xlu0 %v4143, 28
  %v4730 = vpop.permute.xlu0 %4729
  %4731 = vrot.lane.b32.xlu0 %v4153, 28
  %v4732 = vpop.permute.xlu0 %4731
  %4733 = vrot.lane.b32.xlu0 %v4163, 28
  %v4734 = vpop.permute.xlu0 %4733
  %4735 = vrot.lane.b32.xlu0 %v4173, 28
  %v4736 = vpop.permute.xlu0 %4735
  %4737 = vrot.lane.b32.xlu0 %v4183, 28
  %v4738 = vpop.permute.xlu0 %4737
  %4739 = vrot.lane.b32.xlu0 %v4193, 28
  %v4740 = vpop.permute.xlu0 %4739
  %4741 = vrot.lane.b32.xlu0 %v4203, 28
  %v4742 = vpop.permute.xlu0 %4741
  %4743 = vrot.lane.b32.xlu0 %v4213, 28
  %v4744 = vpop.permute.xlu0 %4743
  %4745 = vrot.lane.b32.xlu0 %v4223, 28
  %v4746 = vpop.permute.xlu0 %4745
  %4747 = vrot.lane.b32.xlu0 %v4233, 28
  %v4748 = vpop.permute.xlu0 %4747
  %4749 = vrot.lane.b32.xlu0 %v4243, 28
  %v4750 = vpop.permute.xlu0 %4749
  %4751 = vrot.lane.b32.xlu0 %v4253, 28
  %v4752 = vpop.permute.xlu0 %4751
  %4753 = vrot.lane.b32.xlu0 %v4263, 28
  %v4754 = vpop.permute.xlu0 %4753
  %4755 = vrot.lane.b32.xlu0 %v4273, 28
  %v4756 = vpop.permute.xlu0 %4755
  %4757 = vrot.lane.b32.xlu0 %v4283, 28
  %v4758 = vpop.permute.xlu0 %4757
  %4759 = vrot.lane.b32.xlu0 %v4293, 28
  %v4760 = vpop.permute.xlu0 %4759
  %4761 = vrot.lane.b32.xlu0 %v4303, 28
  %v4762 = vpop.permute.xlu0 %4761
  %4763 = vrot.lane.b32.xlu0 %v4313, 28
  %v4764 = vpop.permute.xlu0 %4763
  %4765 = vrot.lane.b32.xlu0 %v4323, 28
  %v4766 = vpop.permute.xlu0 %4765
  %4767 = vrot.lane.b32.xlu0 %v4333, 28
  %v4768 = vpop.permute.xlu0 %4767
  %4769 = vrot.lane.b32.xlu0 %v4343, 28
  %v4770 = vpop.permute.xlu0 %4769
  %4771 = vrot.lane.b32.xlu0 %v4353, 28
  %v4772 = vpop.permute.xlu0 %4771
  %4773 = vrot.lane.b32.xlu0 %v4363, 28
  %v4774 = vpop.permute.xlu0 %4773
  %4775 = vrot.lane.b32.xlu0 %v4373, 28
  %v4776 = vpop.permute.xlu0 %4775
  %4777 = vrot.lane.b32.xlu0 %v4383, 28
  %v4778 = vpop.permute.xlu0 %4777
  %4779 = vrot.lane.b32.xlu0 %v4393, 28
  %v4780 = vpop.permute.xlu0 %4779
  %4781 = vrot.lane.b32.xlu0 %v4403, 28
  %v4782 = vpop.permute.xlu0 %4781
  %4783 = vrot.lane.b32.xlu0 %v4413, 28
  %v4784 = vpop.permute.xlu0 %4783
  %4785 = vrot.lane.b32.xlu0 %v4423, 28
  %v4786 = vpop.permute.xlu0 %4785
  %4787 = vrot.lane.b32.xlu0 %v4433, 28
  %v4788 = vpop.permute.xlu0 %4787
  %4789 = vrot.lane.b32.xlu0 %v4443, 28
  %v4790 = vpop.permute.xlu0 %4789
  %4791 = vrot.lane.b32.xlu0 %v4453, 28
  %v4792 = vpop.permute.xlu0 %4791
  %4793 = vrot.lane.b32.xlu0 %v4463, 28
  %v4794 = vpop.permute.xlu0 %4793
  %4795 = vrot.lane.b32.xlu0 %v4473, 28
  %v4796 = vpop.permute.xlu0 %4795
  %4797 = vrot.lane.b32.xlu0 %v4483, 28
  %v4798 = vpop.permute.xlu0 %4797
  %4799 = vrot.lane.b32.xlu0 %v4493, 28
  %v4800 = vpop.permute.xlu0 %4799
  %4801 = vrot.lane.b32.xlu0 %v4503, 28
  %v4802 = vpop.permute.xlu0 %4801
  %4803 = vrot.lane.b32.xlu0 %v4513, 28
  %v4804 = vpop.permute.xlu0 %4803
  %4805 = vrot.lane.b32.xlu0 %v4523, 28
  %v4806 = vpop.permute.xlu0 %4805
  %4807 = vrot.lane.b32.xlu0 %v4533, 28
  %v4808 = vpop.permute.xlu0 %4807
  %4809 = vrot.lane.b32.xlu0 %v4543, 28
  %v4810 = vpop.permute.xlu0 %4809
  %4811 = vrot.lane.b32.xlu0 %v4553, 28
  %v4812 = vpop.permute.xlu0 %4811
  %4813 = vrot.lane.b32.xlu0 %v4563, 28
  %v4814 = vpop.permute.xlu0 %4813
  %4815 = vrot.lane.b32.xlu0 %v4573, 28
  %v4816 = vpop.permute.xlu0 %4815
  %4817 = vrot.lane.b32.xlu0 %v4583, 28
  %v4818 = vpop.permute.xlu0 %4817
  %4819 = vrot.lane.b32.xlu0 %v4593, 28
  %v4820 = vpop.permute.xlu0 %4819
  %4821 = vrot.lane.b32.xlu0 %v4603, 28
  %v4822 = vpop.permute.xlu0 %4821
  %4823 = vrot.lane.b32.xlu0 %v4613, 28
  %v4824 = vpop.permute.xlu0 %4823
  %4825 = vrot.lane.b32.xlu0 %v4623, 28
  %v4826 = vpop.permute.xlu0 %4825
  %4827 = vrot.lane.b32.xlu0 %v4633, 28
  %v4828 = vpop.permute.xlu0 %4827
  %4829 = vrot.lane.b32.xlu0 %v4643, 28
  %v4830 = vpop.permute.xlu0 %4829
  %4831 = vrot.lane.b32.xlu0 %v4653, 28
  %v4832 = vpop.permute.xlu0 %4831
  %4833 = vrot.lane.b32.xlu0 %v4663, 28
  %v4834 = vpop.permute.xlu0 %4833
  %4835 = vrot.lane.b32.xlu0 %v4673, 28
  %v4836 = vpop.permute.xlu0 %4835
  %4837 = vrot.lane.b32.xlu0 %v4683, 28
  %v4838 = vpop.permute.xlu0 %4837
  %4839 = vrot.lane.b32.xlu0 %v4693, 28
  %v4840 = vpop.permute.xlu0 %4839
  %4841 = vrot.lane.b32.xlu0 %v4703, 28
  %v4842 = vpop.permute.xlu0 %4841
  %4843 = vrot.lane.b32.xlu0 %v4713, 28
  %v4844 = vpop.permute.xlu0 %4843
  %4845 = vrot.lane.b32.xlu0 %v4723, 28
  %v4846 = vpop.permute.xlu0 %4845
  %4847 = vrot.lane.b32.xlu0 %v4728, 28
  %v4848 = vpop.permute.xlu0 %4847
  %vm4909 = vcmask 257248
  %4910 = vst.msk [vmem:[#allocation2] sm:$0xf] %vm4909, %v4730
  %4911 = vst.msk [vmem:[#allocation2 + $0x4] sm:$0xf] %vm4909, %v4732
  %4912 = vst.msk [vmem:[#allocation2 + $0x8] sm:$0xf] %vm4909, %v4734
  %4913 = vst.msk [vmem:[#allocation2 + $0xc] sm:$0xf] %vm4909, %v4736
  %4914 = vst.msk [vmem:[#allocation2 + $0x10] sm:$0xf] %vm4909, %v4738
  %4915 = vst.msk [vmem:[#allocation2 + $0x14] sm:$0xf] %vm4909, %v4740
  %4916 = vst.msk [vmem:[#allocation2 + $0x18] sm:$0xf] %vm4909, %v4742
  %4917 = vst.msk [vmem:[#allocation2 + $0x1c] sm:$0xf] %vm4909, %v4744
  %4918 = vst.msk [vmem:[#allocation2 + $0x20] sm:$0xf] %vm4909, %v4746
  %4919 = vst.msk [vmem:[#allocation2 + $0x24] sm:$0xf] %vm4909, %v4748
  %4920 = vst.msk [vmem:[#allocation2 + $0x28] sm:$0xf] %vm4909, %v4750
  %4921 = vst.msk [vmem:[#allocation2 + $0x2c] sm:$0xf] %vm4909, %v4752
  %4922 = vst.msk [vmem:[#allocation2 + $0x30] sm:$0xf] %vm4909, %v4754
  %4923 = vst.msk [vmem:[#allocation2 + $0x34] sm:$0xf] %vm4909, %v4756
  %4924 = vst.msk [vmem:[#allocation2 + $0x38] sm:$0xf] %vm4909, %v4758
  %4925 = vst.msk [vmem:[#allocation2 + $0x3c] sm:$0xf] %vm4909, %v4760
  %4926 = vst.msk [vmem:[#allocation2 + $0x40] sm:$0xf] %vm4909, %v4762
  %4927 = vst.msk [vmem:[#allocation2 + $0x44] sm:$0xf] %vm4909, %v4764
  %4928 = vst.msk [vmem:[#allocation2 + $0x48] sm:$0xf] %vm4909, %v4766
  %4929 = vst.msk [vmem:[#allocation2 + $0x4c] sm:$0xf] %vm4909, %v4768
  %4930 = vst.msk [vmem:[#allocation2 + $0x50] sm:$0xf] %vm4909, %v4770
  %4931 = vst.msk [vmem:[#allocation2 + $0x54] sm:$0xf] %vm4909, %v4772
  %4932 = vst.msk [vmem:[#allocation2 + $0x58] sm:$0xf] %vm4909, %v4774
  %4933 = vst.msk [vmem:[#allocation2 + $0x5c] sm:$0xf] %vm4909, %v4776
  %4934 = vst.msk [vmem:[#allocation2 + $0x60] sm:$0xf] %vm4909, %v4778
  %4935 = vst.msk [vmem:[#allocation2 + $0x64] sm:$0xf] %vm4909, %v4780
  %4936 = vst.msk [vmem:[#allocation2 + $0x68] sm:$0xf] %vm4909, %v4782
  %4937 = vst.msk [vmem:[#allocation2 + $0x6c] sm:$0xf] %vm4909, %v4784
  %4938 = vst.msk [vmem:[#allocation2 + $0x70] sm:$0xf] %vm4909, %v4786
  %4939 = vst.msk [vmem:[#allocation2 + $0x74] sm:$0xf] %vm4909, %v4788
  %4940 = vst.msk [vmem:[#allocation2 + $0x78] sm:$0xf] %vm4909, %v4790
  %4941 = vst.msk [vmem:[#allocation2 + $0x7c] sm:$0xf] %vm4909, %v4792
  %4942 = vst.msk [vmem:[#allocation2 + $0x80] sm:$0xf] %vm4909, %v4794
  %4943 = vst.msk [vmem:[#allocation2 + $0x84] sm:$0xf] %vm4909, %v4796
  %4944 = vst.msk [vmem:[#allocation2 + $0x88] sm:$0xf] %vm4909, %v4798
  %4945 = vst.msk [vmem:[#allocation2 + $0x8c] sm:$0xf] %vm4909, %v4800
  %4946 = vst.msk [vmem:[#allocation2 + $0x90] sm:$0xf] %vm4909, %v4802
  %4947 = vst.msk [vmem:[#allocation2 + $0x94] sm:$0xf] %vm4909, %v4804
  %4948 = vst.msk [vmem:[#allocation2 + $0x98] sm:$0xf] %vm4909, %v4806
  %4949 = vst.msk [vmem:[#allocation2 + $0x9c] sm:$0xf] %vm4909, %v4808
  %4950 = vst.msk [vmem:[#allocation2 + $0xa0] sm:$0xf] %vm4909, %v4810
  %4951 = vst.msk [vmem:[#allocation2 + $0xa4] sm:$0xf] %vm4909, %v4812
  %4952 = vst.msk [vmem:[#allocation2 + $0xa8] sm:$0xf] %vm4909, %v4814
  %4953 = vst.msk [vmem:[#allocation2 + $0xac] sm:$0xf] %vm4909, %v4816
  %4954 = vst.msk [vmem:[#allocation2 + $0xb0] sm:$0xf] %vm4909, %v4818
  %4955 = vst.msk [vmem:[#allocation2 + $0xb4] sm:$0xf] %vm4909, %v4820
  %4956 = vst.msk [vmem:[#allocation2 + $0xb8] sm:$0xf] %vm4909, %v4822
  %4957 = vst.msk [vmem:[#allocation2 + $0xbc] sm:$0xf] %vm4909, %v4824
  %4958 = vst.msk [vmem:[#allocation2 + $0xc0] sm:$0xf] %vm4909, %v4826
  %4959 = vst.msk [vmem:[#allocation2 + $0xc4] sm:$0xf] %vm4909, %v4828
  %4960 = vst.msk [vmem:[#allocation2 + $0xc8] sm:$0xf] %vm4909, %v4830
  %4961 = vst.msk [vmem:[#allocation2 + $0xcc] sm:$0xf] %vm4909, %v4832
  %4962 = vst.msk [vmem:[#allocation2 + $0xd0] sm:$0xf] %vm4909, %v4834
  %4963 = vst.msk [vmem:[#allocation2 + $0xd4] sm:$0xf] %vm4909, %v4836
  %4964 = vst.msk [vmem:[#allocation2 + $0xd8] sm:$0xf] %vm4909, %v4838
  %4965 = vst.msk [vmem:[#allocation2 + $0xdc] sm:$0xf] %vm4909, %v4840
  %4966 = vst.msk [vmem:[#allocation2 + $0xe0] sm:$0xf] %vm4909, %v4842
  %4967 = vst.msk [vmem:[#allocation2 + $0xe4] sm:$0xf] %vm4909, %v4844
  %4968 = vst.msk [vmem:[#allocation2 + $0xe8] sm:$0xf] %vm4909, %v4846
  %vm4969 = vcmask 257248
  %vm4970 = vmand %vm4969, %vm233
  %v4971 = vld [vmem:[#allocation2 + $0xec] sm:$0xf]
  %v4972 = vsel %vm4970, %v4848, %v4971
  %4973 = vst [vmem:[#allocation2 + $0xec] sm:$0xf] %v4972
  %v4974 = vld [vmem:[%s36] sm:$0xf]
  %v4975 = vld [vmem:[%s36 + $0x4] sm:$0xf]
  %v4976 = vld [vmem:[%s36 + $0x8] sm:$0xf]
  %v4977 = vld [vmem:[%s36 + $0xc] sm:$0xf]
  %v4978 = vld [vmem:[%s36 + $0x10] sm:$0x1]
  %v4980 = vshll.u32 %v4974, 16
  %v4982 = vrot.slane %v4980, 5
  %v4983 = vshrl.u32 %v4974, 16
  %v4985 = vrot.slane %v4983, 4
  %v4986 = vor.u32 %v4985, %v4982
  %v4987 = vrot.slane %v4986, 4
  %v4989 = vshll.u32 %v4975, 16
  %v4991 = vrot.slane %v4989, 5
  %v4992 = vsel %vm235, %v4987, %v4991
  %v4993 = vshrl.u32 %v4975, 16
  %v4995 = vrot.slane %v4993, 4
  %v4996 = vor.u32 %v4995, %v4991
  %v4997 = vrot.slane %v4996, 4
  %v4999 = vshll.u32 %v4976, 16
  %v5001 = vrot.slane %v4999, 5
  %v5002 = vsel %vm235, %v4997, %v5001
  %v5003 = vshrl.u32 %v4976, 16
  %v5005 = vrot.slane %v5003, 4
  %v5006 = vor.u32 %v5005, %v5001
  %v5007 = vrot.slane %v5006, 4
  %v5009 = vshll.u32 %v4977, 16
  %v5011 = vrot.slane %v5009, 5
  %v5012 = vsel %vm235, %v5007, %v5011
  %v5013 = vshrl.u32 %v4977, 16
  %v5015 = vrot.slane %v5013, 4
  %v5016 = vor.u32 %v5015, %v5011
  %v5017 = vrot.slane %v5016, 4
  %v5019 = vshll.u32 %v4978, 16
  %v5021 = vrot.slane %v5019, 5
  %v5022 = vsel %vm235, %v5017, %v5021
  %5023 = vrot.lane.b32.xlu0 %v4982, 28
  %v5024 = vpop.permute.xlu0 %5023
  %5025 = vrot.lane.b32.xlu0 %v4992, 28
  %v5026 = vpop.permute.xlu0 %5025
  %5027 = vrot.lane.b32.xlu0 %v5002, 28
  %v5028 = vpop.permute.xlu0 %5027
  %5029 = vrot.lane.b32.xlu0 %v5012, 28
  %v5030 = vpop.permute.xlu0 %5029
  %5031 = vrot.lane.b32.xlu0 %v5022, 28
  %v5032 = vpop.permute.xlu0 %5031
  %vm5038 = vcmask 257251
  %vm5039 = vmand %vm5038, %vm1145
  %v5040 = vld [vmem:[#allocation2 + $0xec] sm:$0x8]
  %v5041 = vsel %vm5039, %v5024, %v5040
  %5042 = vst [vmem:[#allocation2 + $0xec] sm:$0x8] %v5041
  %5043 = vst.msk [vmem:[#allocation2 + $0xf0] sm:$0xf] %vm4909, %v5026
  %5044 = vst.msk [vmem:[#allocation2 + $0xf4] sm:$0xf] %vm4909, %v5028
  %5045 = vst.msk [vmem:[#allocation2 + $0xf8] sm:$0xf] %vm4909, %v5030
  %5046 = vst.msk [vmem:[#allocation2 + $0xfc] sm:$0xf] %vm4909, %v5032
  %v5047 = vld [vmem:[%s0 + $0x10] sm:$0xe]
  %v5048 = vld [vmem:[%s0 + $0x14] sm:$0xf]
  %v5049 = vld [vmem:[%s0 + $0x18] sm:$0xf]
  %v5050 = vld [vmem:[%s0 + $0x1c] sm:$0xf]
  %v5051 = vld [vmem:[%s0 + $0x20] sm:$0xf]
  %v5052 = vld [vmem:[%s0 + $0x24] sm:$0xf]
  %v5053 = vld [vmem:[%s0 + $0x28] sm:$0xf]
  %v5054 = vld [vmem:[%s0 + $0x2c] sm:$0xf]
  %v5055 = vld [vmem:[%s0 + $0x30] sm:$0xf]
  %v5056 = vld [vmem:[%s0 + $0x34] sm:$0xf]
  %v5057 = vld [vmem:[%s0 + $0x38] sm:$0xf]
  %v5058 = vld [vmem:[%s0 + $0x3c] sm:$0xf]
  %v5059 = vld [vmem:[%s0 + $0x40] sm:$0xf]
  %v5060 = vld [vmem:[%s0 + $0x44] sm:$0xf]
  %v5061 = vld [vmem:[%s0 + $0x48] sm:$0xf]
  %v5062 = vld [vmem:[%s0 + $0x4c] sm:$0xf]
  %v5063 = vld [vmem:[%s0 + $0x50] sm:$0xf]
  %v5064 = vld [vmem:[%s0 + $0x54] sm:$0xf]
  %v5065 = vld [vmem:[%s0 + $0x58] sm:$0xf]
  %v5066 = vld [vmem:[%s0 + $0x5c] sm:$0xf]
  %v5067 = vld [vmem:[%s0 + $0x60] sm:$0xf]
  %v5068 = vld [vmem:[%s0 + $0x64] sm:$0xf]
  %v5069 = vld [vmem:[%s0 + $0x68] sm:$0xf]
  %v5070 = vld [vmem:[%s0 + $0x6c] sm:$0xf]
  %v5071 = vld [vmem:[%s0 + $0x70] sm:$0xf]
  %v5072 = vld [vmem:[%s0 + $0x74] sm:$0xf]
  %v5073 = vld [vmem:[%s0 + $0x78] sm:$0xf]
  %v5074 = vld [vmem:[%s0 + $0x7c] sm:$0xf]
  %v5075 = vld [vmem:[%s0 + $0x80] sm:$0xf]
  %v5076 = vld [vmem:[%s0 + $0x84] sm:$0xf]
  %v5077 = vld [vmem:[%s0 + $0x88] sm:$0xf]
  %v5078 = vld [vmem:[%s0 + $0x8c] sm:$0xf]
  %v5079 = vld [vmem:[%s0 + $0x90] sm:$0xf]
  %v5080 = vld [vmem:[%s0 + $0x94] sm:$0xf]
  %v5081 = vld [vmem:[%s0 + $0x98] sm:$0xf]
  %v5082 = vld [vmem:[%s0 + $0x9c] sm:$0xf]
  %v5083 = vld [vmem:[%s0 + $0xa0] sm:$0xf]
  %v5084 = vld [vmem:[%s0 + $0xa4] sm:$0xf]
  %v5085 = vld [vmem:[%s0 + $0xa8] sm:$0xf]
  %v5086 = vld [vmem:[%s0 + $0xac] sm:$0xf]
  %v5087 = vld [vmem:[%s0 + $0xb0] sm:$0xf]
  %v5088 = vld [vmem:[%s0 + $0xb4] sm:$0xf]
  %v5089 = vld [vmem:[%s0 + $0xb8] sm:$0xf]
  %v5090 = vld [vmem:[%s0 + $0xbc] sm:$0xf]
  %v5091 = vld [vmem:[%s0 + $0xc0] sm:$0xf]
  %v5092 = vld [vmem:[%s0 + $0xc4] sm:$0xf]
  %v5093 = vld [vmem:[%s0 + $0xc8] sm:$0xf]
  %v5094 = vld [vmem:[%s0 + $0xcc] sm:$0xf]
  %v5095 = vld [vmem:[%s0 + $0xd0] sm:$0xf]
  %v5096 = vld [vmem:[%s0 + $0xd4] sm:$0xf]
  %v5097 = vld [vmem:[%s0 + $0xd8] sm:$0xf]
  %v5098 = vld [vmem:[%s0 + $0xdc] sm:$0xf]
  %v5099 = vld [vmem:[%s0 + $0xe0] sm:$0xf]
  %v5100 = vld [vmem:[%s0 + $0xe4] sm:$0xf]
  %v5101 = vld [vmem:[%s0 + $0xe8] sm:$0xf]
  %v5102 = vld [vmem:[%s0 + $0xec] sm:$0xf]
  %v5103 = vld [vmem:[%s0 + $0xf0] sm:$0xf]
  %v5104 = vld [vmem:[%s0 + $0xf4] sm:$0xf]
  %v5105 = vld [vmem:[%s0 + $0xf8] sm:$0xf]
  %v5106 = vld [vmem:[%s0 + $0xfc] sm:$0xf]
  %v5167 = vrot.slane %v5047, 5
  %v5168 = vrot.slane %v5167, 4
  %v5169 = vrot.slane %v5048, 5
  %v5170 = vsel %vm1280, %v5168, %v5169
  %v5171 = vrot.slane %v5169, 4
  %v5172 = vrot.slane %v5049, 5
  %v5173 = vsel %vm1280, %v5171, %v5172
  %v5174 = vrot.slane %v5172, 4
  %v5175 = vrot.slane %v5050, 5
  %v5176 = vsel %vm1280, %v5174, %v5175
  %v5177 = vrot.slane %v5175, 4
  %v5178 = vrot.slane %v5051, 5
  %v5179 = vsel %vm1280, %v5177, %v5178
  %v5180 = vrot.slane %v5178, 4
  %v5181 = vrot.slane %v5052, 5
  %v5182 = vsel %vm1280, %v5180, %v5181
  %v5183 = vrot.slane %v5181, 4
  %v5184 = vrot.slane %v5053, 5
  %v5185 = vsel %vm1280, %v5183, %v5184
  %v5186 = vrot.slane %v5184, 4
  %v5187 = vrot.slane %v5054, 5
  %v5188 = vsel %vm1280, %v5186, %v5187
  %v5189 = vrot.slane %v5187, 4
  %v5190 = vrot.slane %v5055, 5
  %v5191 = vsel %vm1280, %v5189, %v5190
  %v5192 = vrot.slane %v5190, 4
  %v5193 = vrot.slane %v5056, 5
  %v5194 = vsel %vm1280, %v5192, %v5193
  %v5195 = vrot.slane %v5193, 4
  %v5196 = vrot.slane %v5057, 5
  %v5197 = vsel %vm1280, %v5195, %v5196
  %v5198 = vrot.slane %v5196, 4
  %v5199 = vrot.slane %v5058, 5
  %v5200 = vsel %vm1280, %v5198, %v5199
  %v5201 = vrot.slane %v5199, 4
  %v5202 = vrot.slane %v5059, 5
  %v5203 = vsel %vm1280, %v5201, %v5202
  %v5204 = vrot.slane %v5202, 4
  %v5205 = vrot.slane %v5060, 5
  %v5206 = vsel %vm1280, %v5204, %v5205
  %v5207 = vrot.slane %v5205, 4
  %v5208 = vrot.slane %v5061, 5
  %v5209 = vsel %vm1280, %v5207, %v5208
  %v5210 = vrot.slane %v5208, 4
  %v5211 = vrot.slane %v5062, 5
  %v5212 = vsel %vm1280, %v5210, %v5211
  %v5213 = vrot.slane %v5211, 4
  %v5214 = vrot.slane %v5063, 5
  %v5215 = vsel %vm1280, %v5213, %v5214
  %v5216 = vrot.slane %v5214, 4
  %v5217 = vrot.slane %v5064, 5
  %v5218 = vsel %vm1280, %v5216, %v5217
  %v5219 = vrot.slane %v5217, 4
  %v5220 = vrot.slane %v5065, 5
  %v5221 = vsel %vm1280, %v5219, %v5220
  %v5222 = vrot.slane %v5220, 4
  %v5223 = vrot.slane %v5066, 5
  %v5224 = vsel %vm1280, %v5222, %v5223
  %v5225 = vrot.slane %v5223, 4
  %v5226 = vrot.slane %v5067, 5
  %v5227 = vsel %vm1280, %v5225, %v5226
  %v5228 = vrot.slane %v5226, 4
  %v5229 = vrot.slane %v5068, 5
  %v5230 = vsel %vm1280, %v5228, %v5229
  %v5231 = vrot.slane %v5229, 4
  %v5232 = vrot.slane %v5069, 5
  %v5233 = vsel %vm1280, %v5231, %v5232
  %v5234 = vrot.slane %v5232, 4
  %v5235 = vrot.slane %v5070, 5
  %v5236 = vsel %vm1280, %v5234, %v5235
  %v5237 = vrot.slane %v5235, 4
  %v5238 = vrot.slane %v5071, 5
  %v5239 = vsel %vm1280, %v5237, %v5238
  %v5240 = vrot.slane %v5238, 4
  %v5241 = vrot.slane %v5072, 5
  %v5242 = vsel %vm1280, %v5240, %v5241
  %v5243 = vrot.slane %v5241, 4
  %v5244 = vrot.slane %v5073, 5
  %v5245 = vsel %vm1280, %v5243, %v5244
  %v5246 = vrot.slane %v5244, 4
  %v5247 = vrot.slane %v5074, 5
  %v5248 = vsel %vm1280, %v5246, %v5247
  %v5249 = vrot.slane %v5247, 4
  %v5250 = vrot.slane %v5075, 5
  %v5251 = vsel %vm1280, %v5249, %v5250
  %v5252 = vrot.slane %v5250, 4
  %v5253 = vrot.slane %v5076, 5
  %v5254 = vsel %vm1280, %v5252, %v5253
  %v5255 = vrot.slane %v5253, 4
  %v5256 = vrot.slane %v5077, 5
  %v5257 = vsel %vm1280, %v5255, %v5256
  %v5258 = vrot.slane %v5256, 4
  %v5259 = vrot.slane %v5078, 5
  %v5260 = vsel %vm1280, %v5258, %v5259
  %v5261 = vrot.slane %v5259, 4
  %v5262 = vrot.slane %v5079, 5
  %v5263 = vsel %vm1280, %v5261, %v5262
  %v5264 = vrot.slane %v5262, 4
  %v5265 = vrot.slane %v5080, 5
  %v5266 = vsel %vm1280, %v5264, %v5265
  %v5267 = vrot.slane %v5265, 4
  %v5268 = vrot.slane %v5081, 5
  %v5269 = vsel %vm1280, %v5267, %v5268
  %v5270 = vrot.slane %v5268, 4
  %v5271 = vrot.slane %v5082, 5
  %v5272 = vsel %vm1280, %v5270, %v5271
  %v5273 = vrot.slane %v5271, 4
  %v5274 = vrot.slane %v5083, 5
  %v5275 = vsel %vm1280, %v5273, %v5274
  %v5276 = vrot.slane %v5274, 4
  %v5277 = vrot.slane %v5084, 5
  %v5278 = vsel %vm1280, %v5276, %v5277
  %v5279 = vrot.slane %v5277, 4
  %v5280 = vrot.slane %v5085, 5
  %v5281 = vsel %vm1280, %v5279, %v5280
  %v5282 = vrot.slane %v5280, 4
  %v5283 = vrot.slane %v5086, 5
  %v5284 = vsel %vm1280, %v5282, %v5283
  %v5285 = vrot.slane %v5283, 4
  %v5286 = vrot.slane %v5087, 5
  %v5287 = vsel %vm1280, %v5285, %v5286
  %v5288 = vrot.slane %v5286, 4
  %v5289 = vrot.slane %v5088, 5
  %v5290 = vsel %vm1280, %v5288, %v5289
  %v5291 = vrot.slane %v5289, 4
  %v5292 = vrot.slane %v5089, 5
  %v5293 = vsel %vm1280, %v5291, %v5292
  %v5294 = vrot.slane %v5292, 4
  %v5295 = vrot.slane %v5090, 5
  %v5296 = vsel %vm1280, %v5294, %v5295
  %v5297 = vrot.slane %v5295, 4
  %v5298 = vrot.slane %v5091, 5
  %v5299 = vsel %vm1280, %v5297, %v5298
  %v5300 = vrot.slane %v5298, 4
  %v5301 = vrot.slane %v5092, 5
  %v5302 = vsel %vm1280, %v5300, %v5301
  %v5303 = vrot.slane %v5301, 4
  %v5304 = vrot.slane %v5093, 5
  %v5305 = vsel %vm1280, %v5303, %v5304
  %v5306 = vrot.slane %v5304, 4
  %v5307 = vrot.slane %v5094, 5
  %v5308 = vsel %vm1280, %v5306, %v5307
  %v5309 = vrot.slane %v5307, 4
  %v5310 = vrot.slane %v5095, 5
  %v5311 = vsel %vm1280, %v5309, %v5310
  %v5312 = vrot.slane %v5310, 4
  %v5313 = vrot.slane %v5096, 5
  %v5314 = vsel %vm1280, %v5312, %v5313
  %v5315 = vrot.slane %v5313, 4
  %v5316 = vrot.slane %v5097, 5
  %v5317 = vsel %vm1280, %v5315, %v5316
  %v5318 = vrot.slane %v5316, 4
  %v5319 = vrot.slane %v5098, 5
  %v5320 = vsel %vm1280, %v5318, %v5319
  %v5321 = vrot.slane %v5319, 4
  %v5322 = vrot.slane %v5099, 5
  %v5323 = vsel %vm1280, %v5321, %v5322
  %v5324 = vrot.slane %v5322, 4
  %v5325 = vrot.slane %v5100, 5
  %v5326 = vsel %vm1280, %v5324, %v5325
  %v5327 = vrot.slane %v5325, 4
  %v5328 = vrot.slane %v5101, 5
  %v5329 = vsel %vm1280, %v5327, %v5328
  %v5330 = vrot.slane %v5328, 4
  %v5331 = vrot.slane %v5102, 5
  %v5332 = vsel %vm1280, %v5330, %v5331
  %v5333 = vrot.slane %v5331, 4
  %v5334 = vrot.slane %v5103, 5
  %v5335 = vsel %vm1280, %v5333, %v5334
  %v5336 = vrot.slane %v5334, 4
  %v5337 = vrot.slane %v5104, 5
  %v5338 = vsel %vm1280, %v5336, %v5337
  %v5339 = vrot.slane %v5337, 4
  %v5340 = vrot.slane %v5105, 5
  %v5341 = vsel %vm1280, %v5339, %v5340
  %v5342 = vrot.slane %v5340, 4
  %v5343 = vrot.slane %v5106, 5
  %v5344 = vsel %vm1280, %v5342, %v5343
  %v5345 = vrot.slane %v5343, 4
  %5346 = vrot.lane.b32.xlu0 %v5170, 32
  %v5347 = vpop.permute.xlu0 %5346
  %5348 = vrot.lane.b32.xlu0 %v5173, 32
  %v5349 = vpop.permute.xlu0 %5348
  %5350 = vrot.lane.b32.xlu0 %v5176, 32
  %v5351 = vpop.permute.xlu0 %5350
  %5352 = vrot.lane.b32.xlu0 %v5179, 32
  %v5353 = vpop.permute.xlu0 %5352
  %5354 = vrot.lane.b32.xlu0 %v5182, 32
  %v5355 = vpop.permute.xlu0 %5354
  %5356 = vrot.lane.b32.xlu0 %v5185, 32
  %v5357 = vpop.permute.xlu0 %5356
  %5358 = vrot.lane.b32.xlu0 %v5188, 32
  %v5359 = vpop.permute.xlu0 %5358
  %5360 = vrot.lane.b32.xlu0 %v5191, 32
  %v5361 = vpop.permute.xlu0 %5360
  %5362 = vrot.lane.b32.xlu0 %v5194, 32
  %v5363 = vpop.permute.xlu0 %5362
  %5364 = vrot.lane.b32.xlu0 %v5197, 32
  %v5365 = vpop.permute.xlu0 %5364
  %5366 = vrot.lane.b32.xlu0 %v5200, 32
  %v5367 = vpop.permute.xlu0 %5366
  %5368 = vrot.lane.b32.xlu0 %v5203, 32
  %v5369 = vpop.permute.xlu0 %5368
  %5370 = vrot.lane.b32.xlu0 %v5206, 32
  %v5371 = vpop.permute.xlu0 %5370
  %5372 = vrot.lane.b32.xlu0 %v5209, 32
  %v5373 = vpop.permute.xlu0 %5372
  %5374 = vrot.lane.b32.xlu0 %v5212, 32
  %v5375 = vpop.permute.xlu0 %5374
  %5376 = vrot.lane.b32.xlu0 %v5215, 32
  %v5377 = vpop.permute.xlu0 %5376
  %5378 = vrot.lane.b32.xlu0 %v5218, 32
  %v5379 = vpop.permute.xlu0 %5378
  %5380 = vrot.lane.b32.xlu0 %v5221, 32
  %v5381 = vpop.permute.xlu0 %5380
  %5382 = vrot.lane.b32.xlu0 %v5224, 32
  %v5383 = vpop.permute.xlu0 %5382
  %5384 = vrot.lane.b32.xlu0 %v5227, 32
  %v5385 = vpop.permute.xlu0 %5384
  %5386 = vrot.lane.b32.xlu0 %v5230, 32
  %v5387 = vpop.permute.xlu0 %5386
  %5388 = vrot.lane.b32.xlu0 %v5233, 32
  %v5389 = vpop.permute.xlu0 %5388
  %5390 = vrot.lane.b32.xlu0 %v5236, 32
  %v5391 = vpop.permute.xlu0 %5390
  %5392 = vrot.lane.b32.xlu0 %v5239, 32
  %v5393 = vpop.permute.xlu0 %5392
  %5394 = vrot.lane.b32.xlu0 %v5242, 32
  %v5395 = vpop.permute.xlu0 %5394
  %5396 = vrot.lane.b32.xlu0 %v5245, 32
  %v5397 = vpop.permute.xlu0 %5396
  %5398 = vrot.lane.b32.xlu0 %v5248, 32
  %v5399 = vpop.permute.xlu0 %5398
  %5400 = vrot.lane.b32.xlu0 %v5251, 32
  %v5401 = vpop.permute.xlu0 %5400
  %5402 = vrot.lane.b32.xlu0 %v5254, 32
  %v5403 = vpop.permute.xlu0 %5402
  %5404 = vrot.lane.b32.xlu0 %v5257, 32
  %v5405 = vpop.permute.xlu0 %5404
  %5406 = vrot.lane.b32.xlu0 %v5260, 32
  %v5407 = vpop.permute.xlu0 %5406
  %5408 = vrot.lane.b32.xlu0 %v5263, 32
  %v5409 = vpop.permute.xlu0 %5408
  %5410 = vrot.lane.b32.xlu0 %v5266, 32
  %v5411 = vpop.permute.xlu0 %5410
  %5412 = vrot.lane.b32.xlu0 %v5269, 32
  %v5413 = vpop.permute.xlu0 %5412
  %5414 = vrot.lane.b32.xlu0 %v5272, 32
  %v5415 = vpop.permute.xlu0 %5414
  %5416 = vrot.lane.b32.xlu0 %v5275, 32
  %v5417 = vpop.permute.xlu0 %5416
  %5418 = vrot.lane.b32.xlu0 %v5278, 32
  %v5419 = vpop.permute.xlu0 %5418
  %5420 = vrot.lane.b32.xlu0 %v5281, 32
  %v5421 = vpop.permute.xlu0 %5420
  %5422 = vrot.lane.b32.xlu0 %v5284, 32
  %v5423 = vpop.permute.xlu0 %5422
  %5424 = vrot.lane.b32.xlu0 %v5287, 32
  %v5425 = vpop.permute.xlu0 %5424
  %5426 = vrot.lane.b32.xlu0 %v5290, 32
  %v5427 = vpop.permute.xlu0 %5426
  %5428 = vrot.lane.b32.xlu0 %v5293, 32
  %v5429 = vpop.permute.xlu0 %5428
  %5430 = vrot.lane.b32.xlu0 %v5296, 32
  %v5431 = vpop.permute.xlu0 %5430
  %5432 = vrot.lane.b32.xlu0 %v5299, 32
  %v5433 = vpop.permute.xlu0 %5432
  %5434 = vrot.lane.b32.xlu0 %v5302, 32
  %v5435 = vpop.permute.xlu0 %5434
  %5436 = vrot.lane.b32.xlu0 %v5305, 32
  %v5437 = vpop.permute.xlu0 %5436
  %5438 = vrot.lane.b32.xlu0 %v5308, 32
  %v5439 = vpop.permute.xlu0 %5438
  %5440 = vrot.lane.b32.xlu0 %v5311, 32
  %v5441 = vpop.permute.xlu0 %5440
  %5442 = vrot.lane.b32.xlu0 %v5314, 32
  %v5443 = vpop.permute.xlu0 %5442
  %5444 = vrot.lane.b32.xlu0 %v5317, 32
  %v5445 = vpop.permute.xlu0 %5444
  %5446 = vrot.lane.b32.xlu0 %v5320, 32
  %v5447 = vpop.permute.xlu0 %5446
  %5448 = vrot.lane.b32.xlu0 %v5323, 32
  %v5449 = vpop.permute.xlu0 %5448
  %5450 = vrot.lane.b32.xlu0 %v5326, 32
  %v5451 = vpop.permute.xlu0 %5450
  %5452 = vrot.lane.b32.xlu0 %v5329, 32
  %v5453 = vpop.permute.xlu0 %5452
  %5454 = vrot.lane.b32.xlu0 %v5332, 32
  %v5455 = vpop.permute.xlu0 %5454
  %5456 = vrot.lane.b32.xlu0 %v5335, 32
  %v5457 = vpop.permute.xlu0 %5456
  %5458 = vrot.lane.b32.xlu0 %v5338, 32
  %v5459 = vpop.permute.xlu0 %5458
  %5460 = vrot.lane.b32.xlu0 %v5341, 32
  %v5461 = vpop.permute.xlu0 %5460
  %5462 = vrot.lane.b32.xlu0 %v5344, 32
  %v5463 = vpop.permute.xlu0 %5462
  %5464 = vrot.lane.b32.xlu0 %v5345, 32
  %v5465 = vpop.permute.xlu0 %5464
  %vm5526 = vcmask 290048
  %5527 = vst.msk [vmem:[#allocation2] sm:$0xf] %vm5526, %v5347
  %5528 = vst.msk [vmem:[#allocation2 + $0x4] sm:$0xf] %vm5526, %v5349
  %5529 = vst.msk [vmem:[#allocation2 + $0x8] sm:$0xf] %vm5526, %v5351
  %5530 = vst.msk [vmem:[#allocation2 + $0xc] sm:$0xf] %vm5526, %v5353
  %5531 = vst.msk [vmem:[#allocation2 + $0x10] sm:$0xf] %vm5526, %v5355
  %5532 = vst.msk [vmem:[#allocation2 + $0x14] sm:$0xf] %vm5526, %v5357
  %5533 = vst.msk [vmem:[#allocation2 + $0x18] sm:$0xf] %vm5526, %v5359
  %5534 = vst.msk [vmem:[#allocation2 + $0x1c] sm:$0xf] %vm5526, %v5361
  %5535 = vst.msk [vmem:[#allocation2 + $0x20] sm:$0xf] %vm5526, %v5363
  %5536 = vst.msk [vmem:[#allocation2 + $0x24] sm:$0xf] %vm5526, %v5365
  %5537 = vst.msk [vmem:[#allocation2 + $0x28] sm:$0xf] %vm5526, %v5367
  %5538 = vst.msk [vmem:[#allocation2 + $0x2c] sm:$0xf] %vm5526, %v5369
  %5539 = vst.msk [vmem:[#allocation2 + $0x30] sm:$0xf] %vm5526, %v5371
  %5540 = vst.msk [vmem:[#allocation2 + $0x34] sm:$0xf] %vm5526, %v5373
  %5541 = vst.msk [vmem:[#allocation2 + $0x38] sm:$0xf] %vm5526, %v5375
  %5542 = vst.msk [vmem:[#allocation2 + $0x3c] sm:$0xf] %vm5526, %v5377
  %5543 = vst.msk [vmem:[#allocation2 + $0x40] sm:$0xf] %vm5526, %v5379
  %5544 = vst.msk [vmem:[#allocation2 + $0x44] sm:$0xf] %vm5526, %v5381
  %5545 = vst.msk [vmem:[#allocation2 + $0x48] sm:$0xf] %vm5526, %v5383
  %5546 = vst.msk [vmem:[#allocation2 + $0x4c] sm:$0xf] %vm5526, %v5385
  %5547 = vst.msk [vmem:[#allocation2 + $0x50] sm:$0xf] %vm5526, %v5387
  %5548 = vst.msk [vmem:[#allocation2 + $0x54] sm:$0xf] %vm5526, %v5389
  %5549 = vst.msk [vmem:[#allocation2 + $0x58] sm:$0xf] %vm5526, %v5391
  %5550 = vst.msk [vmem:[#allocation2 + $0x5c] sm:$0xf] %vm5526, %v5393
  %5551 = vst.msk [vmem:[#allocation2 + $0x60] sm:$0xf] %vm5526, %v5395
  %5552 = vst.msk [vmem:[#allocation2 + $0x64] sm:$0xf] %vm5526, %v5397
  %5553 = vst.msk [vmem:[#allocation2 + $0x68] sm:$0xf] %vm5526, %v5399
  %5554 = vst.msk [vmem:[#allocation2 + $0x6c] sm:$0xf] %vm5526, %v5401
  %5555 = vst.msk [vmem:[#allocation2 + $0x70] sm:$0xf] %vm5526, %v5403
  %5556 = vst.msk [vmem:[#allocation2 + $0x74] sm:$0xf] %vm5526, %v5405
  %5557 = vst.msk [vmem:[#allocation2 + $0x78] sm:$0xf] %vm5526, %v5407
  %5558 = vst.msk [vmem:[#allocation2 + $0x7c] sm:$0xf] %vm5526, %v5409
  %5559 = vst.msk [vmem:[#allocation2 + $0x80] sm:$0xf] %vm5526, %v5411
  %5560 = vst.msk [vmem:[#allocation2 + $0x84] sm:$0xf] %vm5526, %v5413
  %5561 = vst.msk [vmem:[#allocation2 + $0x88] sm:$0xf] %vm5526, %v5415
  %5562 = vst.msk [vmem:[#allocation2 + $0x8c] sm:$0xf] %vm5526, %v5417
  %5563 = vst.msk [vmem:[#allocation2 + $0x90] sm:$0xf] %vm5526, %v5419
  %5564 = vst.msk [vmem:[#allocation2 + $0x94] sm:$0xf] %vm5526, %v5421
  %5565 = vst.msk [vmem:[#allocation2 + $0x98] sm:$0xf] %vm5526, %v5423
  %5566 = vst.msk [vmem:[#allocation2 + $0x9c] sm:$0xf] %vm5526, %v5425
  %5567 = vst.msk [vmem:[#allocation2 + $0xa0] sm:$0xf] %vm5526, %v5427
  %5568 = vst.msk [vmem:[#allocation2 + $0xa4] sm:$0xf] %vm5526, %v5429
  %5569 = vst.msk [vmem:[#allocation2 + $0xa8] sm:$0xf] %vm5526, %v5431
  %5570 = vst.msk [vmem:[#allocation2 + $0xac] sm:$0xf] %vm5526, %v5433
  %5571 = vst.msk [vmem:[#allocation2 + $0xb0] sm:$0xf] %vm5526, %v5435
  %5572 = vst.msk [vmem:[#allocation2 + $0xb4] sm:$0xf] %vm5526, %v5437
  %5573 = vst.msk [vmem:[#allocation2 + $0xb8] sm:$0xf] %vm5526, %v5439
  %5574 = vst.msk [vmem:[#allocation2 + $0xbc] sm:$0xf] %vm5526, %v5441
  %5575 = vst.msk [vmem:[#allocation2 + $0xc0] sm:$0xf] %vm5526, %v5443
  %5576 = vst.msk [vmem:[#allocation2 + $0xc4] sm:$0xf] %vm5526, %v5445
  %5577 = vst.msk [vmem:[#allocation2 + $0xc8] sm:$0xf] %vm5526, %v5447
  %5578 = vst.msk [vmem:[#allocation2 + $0xcc] sm:$0xf] %vm5526, %v5449
  %5579 = vst.msk [vmem:[#allocation2 + $0xd0] sm:$0xf] %vm5526, %v5451
  %5580 = vst.msk [vmem:[#allocation2 + $0xd4] sm:$0xf] %vm5526, %v5453
  %5581 = vst.msk [vmem:[#allocation2 + $0xd8] sm:$0xf] %vm5526, %v5455
  %5582 = vst.msk [vmem:[#allocation2 + $0xdc] sm:$0xf] %vm5526, %v5457
  %5583 = vst.msk [vmem:[#allocation2 + $0xe0] sm:$0xf] %vm5526, %v5459
  %5584 = vst.msk [vmem:[#allocation2 + $0xe4] sm:$0xf] %vm5526, %v5461
  %5585 = vst.msk [vmem:[#allocation2 + $0xe8] sm:$0xf] %vm5526, %v5463
  %vm5586 = vcmask 289024
  %5587 = vst.msk [vmem:[#allocation2 + $0xec] sm:$0x7] %vm5586, %v5465
  %v5588 = vld [vmem:[%s36] sm:$0xf]
  %v5589 = vld [vmem:[%s36 + $0x4] sm:$0xf]
  %v5590 = vld [vmem:[%s36 + $0x8] sm:$0xf]
  %v5591 = vld [vmem:[%s36 + $0xc] sm:$0xf]
  %v5592 = vld [vmem:[%s36 + $0x10] sm:$0x1]
  %v5598 = vrot.slane %v5588, 5
  %v5599 = vrot.slane %v5598, 4
  %v5600 = vrot.slane %v5589, 5
  %v5601 = vsel %vm1280, %v5599, %v5600
  %v5602 = vrot.slane %v5600, 4
  %v5603 = vrot.slane %v5590, 5
  %v5604 = vsel %vm1280, %v5602, %v5603
  %v5605 = vrot.slane %v5603, 4
  %v5606 = vrot.slane %v5591, 5
  %v5607 = vsel %vm1280, %v5605, %v5606
  %v5608 = vrot.slane %v5606, 4
  %v5609 = vrot.slane %v5592, 5
  %v5610 = vsel %vm1280, %v5608, %v5609
  %5611 = vrot.lane.b32.xlu0 %v5598, 32
  %v5612 = vpop.permute.xlu0 %5611
  %5613 = vrot.lane.b32.xlu0 %v5601, 32
  %v5614 = vpop.permute.xlu0 %5613
  %5615 = vrot.lane.b32.xlu0 %v5604, 32
  %v5616 = vpop.permute.xlu0 %5615
  %5617 = vrot.lane.b32.xlu0 %v5607, 32
  %v5618 = vpop.permute.xlu0 %5617
  %5619 = vrot.lane.b32.xlu0 %v5610, 32
  %v5620 = vpop.permute.xlu0 %5619
  %vm5626 = vcmask 290051
  %5627 = vst.msk [vmem:[#allocation2 + $0xec] sm:$0x8] %vm5626, %v5612
  %5628 = vst.msk [vmem:[#allocation2 + $0xf0] sm:$0xf] %vm5526, %v5614
  %5629 = vst.msk [vmem:[#allocation2 + $0xf4] sm:$0xf] %vm5526, %v5616
  %5630 = vst.msk [vmem:[#allocation2 + $0xf8] sm:$0xf] %vm5526, %v5618
  %5631 = vst.msk [vmem:[#allocation2 + $0xfc] sm:$0xf] %vm5526, %v5620
  %v5632 = vld [vmem:[#allocation2] sm:$0xf]
  %v5633 = vld [vmem:[#allocation2 + $0x4] sm:$0xf]
  %v5634 = vld [vmem:[#allocation2 + $0x8] sm:$0xf]
  %v5635 = vld [vmem:[#allocation2 + $0xc] sm:$0xf]
  %v5636 = vld [vmem:[#allocation2 + $0x10] sm:$0xf]
  %v5637 = vld [vmem:[#allocation2 + $0x14] sm:$0xf]
  %v5638 = vld [vmem:[#allocation2 + $0x18] sm:$0xf]
  %v5639 = vld [vmem:[#allocation2 + $0x1c] sm:$0xf]
  %v5640 = vld [vmem:[#allocation2 + $0x20] sm:$0xf]
  %v5641 = vld [vmem:[#allocation2 + $0x24] sm:$0xf]
  %v5642 = vld [vmem:[#allocation2 + $0x28] sm:$0xf]
  %v5643 = vld [vmem:[#allocation2 + $0x2c] sm:$0xf]
  %v5644 = vld [vmem:[#allocation2 + $0x30] sm:$0xf]
  %v5645 = vld [vmem:[#allocation2 + $0x34] sm:$0xf]
  %v5646 = vld [vmem:[#allocation2 + $0x38] sm:$0xf]
  %v5647 = vld [vmem:[#allocation2 + $0x3c] sm:$0xf]
  %v5648 = vld [vmem:[#allocation2 + $0x40] sm:$0xf]
  %v5649 = vld [vmem:[#allocation2 + $0x44] sm:$0xf]
  %v5650 = vld [vmem:[#allocation2 + $0x48] sm:$0xf]
  %v5651 = vld [vmem:[#allocation2 + $0x4c] sm:$0xf]
  %v5652 = vld [vmem:[#allocation2 + $0x50] sm:$0xf]
  %v5653 = vld [vmem:[#allocation2 + $0x54] sm:$0xf]
  %v5654 = vld [vmem:[#allocation2 + $0x58] sm:$0xf]
  %v5655 = vld [vmem:[#allocation2 + $0x5c] sm:$0xf]
  %v5656 = vld [vmem:[#allocation2 + $0x60] sm:$0xf]
  %v5657 = vld [vmem:[#allocation2 + $0x64] sm:$0xf]
  %v5658 = vld [vmem:[#allocation2 + $0x68] sm:$0xf]
  %v5659 = vld [vmem:[#allocation2 + $0x6c] sm:$0xf]
  %v5660 = vld [vmem:[#allocation2 + $0x70] sm:$0xf]
  %v5661 = vld [vmem:[#allocation2 + $0x74] sm:$0xf]
  %v5662 = vld [vmem:[#allocation2 + $0x78] sm:$0xf]
  %v5663 = vld [vmem:[#allocation2 + $0x7c] sm:$0xf]
  %v5664 = vld [vmem:[#allocation2 + $0x80] sm:$0xf]
  %v5665 = vld [vmem:[#allocation2 + $0x84] sm:$0xf]
  %v5666 = vld [vmem:[#allocation2 + $0x88] sm:$0xf]
  %v5667 = vld [vmem:[#allocation2 + $0x8c] sm:$0xf]
  %v5668 = vld [vmem:[#allocation2 + $0x90] sm:$0xf]
  %v5669 = vld [vmem:[#allocation2 + $0x94] sm:$0xf]
  %v5670 = vld [vmem:[#allocation2 + $0x98] sm:$0xf]
  %v5671 = vld [vmem:[#allocation2 + $0x9c] sm:$0xf]
  %v5672 = vld [vmem:[#allocation2 + $0xa0] sm:$0xf]
  %v5673 = vld [vmem:[#allocation2 + $0xa4] sm:$0xf]
  %v5674 = vld [vmem:[#allocation2 + $0xa8] sm:$0xf]
  %v5675 = vld [vmem:[#allocation2 + $0xac] sm:$0xf]
  %v5676 = vld [vmem:[#allocation2 + $0xb0] sm:$0xf]
  %v5677 = vld [vmem:[#allocation2 + $0xb4] sm:$0xf]
  %v5678 = vld [vmem:[#allocation2 + $0xb8] sm:$0xf]
  %v5679 = vld [vmem:[#allocation2 + $0xbc] sm:$0xf]
  %v5680 = vld [vmem:[#allocation2 + $0xc0] sm:$0xf]
  %v5681 = vld [vmem:[#allocation2 + $0xc4] sm:$0xf]
  %v5682 = vld [vmem:[#allocation2 + $0xc8] sm:$0xf]
  %v5683 = vld [vmem:[#allocation2 + $0xcc] sm:$0xf]
  %v5684 = vld [vmem:[#allocation2 + $0xd0] sm:$0xf]
  %v5685 = vld [vmem:[#allocation2 + $0xd4] sm:$0xf]
  %v5686 = vld [vmem:[#allocation2 + $0xd8] sm:$0xf]
  %v5687 = vld [vmem:[#allocation2 + $0xdc] sm:$0xf]
  %v5688 = vld [vmem:[#allocation2 + $0xe0] sm:$0xf]
  %v5689 = vld [vmem:[#allocation2 + $0xe4] sm:$0xf]
  %v5690 = vld [vmem:[#allocation2 + $0xe8] sm:$0xf]
  %v5691 = vld [vmem:[#allocation2 + $0xec] sm:$0xf]
  %v5692 = vld [vmem:[#allocation2 + $0xf0] sm:$0xf]
  %v5693 = vld [vmem:[#allocation2 + $0xf4] sm:$0xf]
  %v5694 = vld [vmem:[#allocation2 + $0xf8] sm:$0xf]
  %v5695 = vld [vmem:[#allocation2 + $0xfc] sm:$0xf]
  %v5696 = vld [vmem:[%s2] sm:$0xf]
  %v5697 = vld [vmem:[%s2 + $0x4] sm:$0xf]
  %v5698 = vld [vmem:[%s2 + $0x8] sm:$0xf]
  %v5699 = vld [vmem:[%s2 + $0xc] sm:$0xf]
  %v5700 = vld [vmem:[%s2 + $0x10] sm:$0x3]
  %v5701 = vld [vmem:[%s3] sm:$0x1]
  %v5703 = vlaneseq
  %v5704 = vshrl.u32 %v5703, 7
  %v5705 = vsub.s32 0, %v5704
  %v5706 = vrot.slane %v5701, %v5705
  %v5772 = vunpack.c.l.b16 %v5632
  %v5773 = vunpack.c.l.b16 %v5633
  %v5774 = vunpack.c.l.b16 %v5634
  %v5775 = vunpack.c.l.b16 %v5635
  %v5776 = vunpack.c.l.b16 %v5636
  %v5777 = vunpack.c.l.b16 %v5637
  %v5778 = vunpack.c.l.b16 %v5638
  %v5779 = vunpack.c.l.b16 %v5639
  %v5780 = vunpack.c.l.b16 %v5640
  %v5781 = vunpack.c.l.b16 %v5641
  %v5782 = vunpack.c.l.b16 %v5642
  %v5783 = vunpack.c.l.b16 %v5643
  %v5784 = vunpack.c.l.b16 %v5644
  %v5785 = vunpack.c.l.b16 %v5645
  %v5786 = vunpack.c.l.b16 %v5646
  %v5787 = vunpack.c.l.b16 %v5647
  %v5788 = vunpack.c.l.b16 %v5648
  %v5789 = vunpack.c.l.b16 %v5649
  %v5790 = vunpack.c.l.b16 %v5650
  %v5791 = vunpack.c.l.b16 %v5651
  %v5792 = vunpack.c.l.b16 %v5652
  %v5793 = vunpack.c.l.b16 %v5653
  %v5794 = vunpack.c.l.b16 %v5654
  %v5795 = vunpack.c.l.b16 %v5655
  %v5796 = vunpack.c.l.b16 %v5656
  %v5797 = vunpack.c.l.b16 %v5657
  %v5798 = vunpack.c.l.b16 %v5658
  %v5799 = vunpack.c.l.b16 %v5659
  %v5800 = vunpack.c.l.b16 %v5660
  %v5801 = vunpack.c.l.b16 %v5661
  %v5802 = vunpack.c.l.b16 %v5662
  %v5803 = vunpack.c.l.b16 %v5663
  %v5804 = vunpack.c.l.b16 %v5664
  %v5805 = vunpack.c.l.b16 %v5665
  %v5806 = vunpack.c.l.b16 %v5666
  %v5807 = vunpack.c.l.b16 %v5667
  %v5808 = vunpack.c.l.b16 %v5668
  %v5809 = vunpack.c.l.b16 %v5669
  %v5810 = vunpack.c.l.b16 %v5670
  %v5811 = vunpack.c.l.b16 %v5671
  %v5812 = vunpack.c.l.b16 %v5672
  %v5813 = vunpack.c.l.b16 %v5673
  %v5814 = vunpack.c.l.b16 %v5674
  %v5815 = vunpack.c.l.b16 %v5675
  %v5816 = vunpack.c.l.b16 %v5676
  %v5817 = vunpack.c.l.b16 %v5677
  %v5818 = vunpack.c.l.b16 %v5678
  %v5819 = vunpack.c.l.b16 %v5679
  %v5820 = vunpack.c.l.b16 %v5680
  %v5821 = vunpack.c.l.b16 %v5681
  %v5822 = vunpack.c.l.b16 %v5682
  %v5823 = vunpack.c.l.b16 %v5683
  %v5824 = vunpack.c.l.b16 %v5684
  %v5825 = vunpack.c.l.b16 %v5685
  %v5826 = vunpack.c.l.b16 %v5686
  %v5827 = vunpack.c.l.b16 %v5687
  %v5828 = vunpack.c.l.b16 %v5688
  %v5829 = vunpack.c.l.b16 %v5689
  %v5830 = vunpack.c.l.b16 %v5690
  %v5831 = vunpack.c.l.b16 %v5691
  %v5832 = vunpack.c.l.b16 %v5692
  %v5833 = vunpack.c.l.b16 %v5693
  %v5834 = vunpack.c.l.b16 %v5694
  %v5835 = vunpack.c.l.b16 %v5695
  %v5836 = vpack.c.b16 %v5773, %v5772
  %v5837 = vpack.c.b16 %v5775, %v5774
  %v5838 = vpack.c.b16 %v5777, %v5776
  %v5839 = vpack.c.b16 %v5779, %v5778
  %v5840 = vpack.c.b16 %v5781, %v5780
  %v5841 = vpack.c.b16 %v5783, %v5782
  %v5842 = vpack.c.b16 %v5785, %v5784
  %v5843 = vpack.c.b16 %v5787, %v5786
  %v5844 = vpack.c.b16 %v5789, %v5788
  %v5845 = vpack.c.b16 %v5791, %v5790
  %v5846 = vpack.c.b16 %v5793, %v5792
  %v5847 = vpack.c.b16 %v5795, %v5794
  %v5848 = vpack.c.b16 %v5797, %v5796
  %v5849 = vpack.c.b16 %v5799, %v5798
  %v5850 = vpack.c.b16 %v5801, %v5800
  %v5851 = vpack.c.b16 %v5803, %v5802
  %v5852 = vpack.c.b16 %v5805, %v5804
  %v5853 = vpack.c.b16 %v5807, %v5806
  %v5854 = vpack.c.b16 %v5809, %v5808
  %v5855 = vpack.c.b16 %v5811, %v5810
  %v5856 = vpack.c.b16 %v5813, %v5812
  %v5857 = vpack.c.b16 %v5815, %v5814
  %v5858 = vpack.c.b16 %v5817, %v5816
  %v5859 = vpack.c.b16 %v5819, %v5818
  %v5860 = vpack.c.b16 %v5821, %v5820
  %v5861 = vpack.c.b16 %v5823, %v5822
  %v5862 = vpack.c.b16 %v5825, %v5824
  %v5863 = vpack.c.b16 %v5827, %v5826
  %v5864 = vpack.c.b16 %v5829, %v5828
  %v5865 = vpack.c.b16 %v5831, %v5830
  %v5866 = vpack.c.b16 %v5833, %v5832
  %v5867 = vpack.c.b16 %v5835, %v5834
  %v5873 = vunpack.c.l.b16 %v5696
  %v5874 = vunpack.c.l.b16 %v5697
  %v5875 = vunpack.c.l.b16 %v5698
  %v5876 = vunpack.c.l.b16 %v5699
  %v5877 = vunpack.c.l.b16 %v5700
  %v5878 = vpack.c.b16 %v5874, %v5873
  %v5879 = vpack.c.b16 %v5876, %v5875
  %v5880 = vpack.c.b16 %v5877, %v5877
  %vm5883 = vcmask 293888
  %v5885 = vsel %vm5883, %v5836, 0
  %v5888 = vsel %vm5883, %v5837, 0
  %v5891 = vsel %vm5883, %v5838, 0
  %v5894 = vsel %vm5883, %v5839, 0
  %v5897 = vsel %vm5883, %v5840, 0
  %v5900 = vsel %vm5883, %v5841, 0
  %v5903 = vsel %vm5883, %v5842, 0
  %v5906 = vsel %vm5883, %v5843, 0
  %v5909 = vsel %vm5883, %v5844, 0
  %v5912 = vsel %vm5883, %v5845, 0
  %v5915 = vsel %vm5883, %v5846, 0
  %v5918 = vsel %vm5883, %v5847, 0
  %v5921 = vsel %vm5883, %v5848, 0
  %v5924 = vsel %vm5883, %v5849, 0
  %v5927 = vsel %vm5883, %v5850, 0
  %v5930 = vsel %vm5883, %v5851, 0
  %v5933 = vsel %vm5883, %v5852, 0
  %v5936 = vsel %vm5883, %v5853, 0
  %v5939 = vsel %vm5883, %v5854, 0
  %v5942 = vsel %vm5883, %v5855, 0
  %v5945 = vsel %vm5883, %v5856, 0
  %v5948 = vsel %vm5883, %v5857, 0
  %v5951 = vsel %vm5883, %v5858, 0
  %v5954 = vsel %vm5883, %v5859, 0
  %v5957 = vsel %vm5883, %v5860, 0
  %v5960 = vsel %vm5883, %v5861, 0
  %v5963 = vsel %vm5883, %v5862, 0
  %v5966 = vsel %vm5883, %v5863, 0
  %v5969 = vsel %vm5883, %v5864, 0
  %v5972 = vsel %vm5883, %v5865, 0
  %v5975 = vsel %vm5883, %v5866, 0
  %v5978 = vsel %vm5883, %v5867, 0
  %vm5980 = vcmask 1041408
  %v5982 = vsel %vm5980, %v5880, 0
  %5984 = vmatprep.subr.bf16.mxu0 0
  %5985 = vmatpush1.bf16.msra.mxu0 0
  %5986 = vmatprep.subr.bf16.mxu0 0
  %5987 = vmatpush1.bf16.msra.mxu0 0
  %5988 = vmatprep.subr.bf16.mxu0 0
  %5989 = vmatpush1.bf16.msra.mxu0 0
  %5990 = vmatprep.subr.bf16.mxu0 0
  %5991 = vmatpush1.bf16.msra.mxu0 0
  %5992 = vmatprep.subr.bf16.mxu0 0
  %5993 = vmatpush1.bf16.msra.mxu0 0
  %5994 = vmatprep.subr.bf16.mxu0 0
  %5995 = vmatpush1.bf16.msra.mxu0 %v5982
  %5996 = vmatprep.subr.bf16.mxu0 0
  %5997 = vmatpush1.bf16.msra.mxu0 %v5879
  %5998 = vmatprep.subr.bf16.mxu0 0
  %5999 = vmatpush1.bf16.msra.mxu0 %v5878
  %6000 = vmatprep.subr.bf16.mxu0 0
  %6001 = vmatpush2.bf16.msra.mxu0 0
  %6002 = vmatprep.subr.bf16.mxu0 0
  %6003 = vmatpush2.bf16.msra.mxu0 0
  %6004 = vmatprep.subr.bf16.mxu0 0
  %6005 = vmatpush2.bf16.msra.mxu0 0
  %6006 = vmatprep.subr.bf16.mxu0 0
  %6007 = vmatpush2.bf16.msra.mxu0 0
  %6008 = vmatprep.subr.bf16.mxu0 0
  %6009 = vmatpush2.bf16.msra.mxu0 0
  %6010 = vmatprep.subr.bf16.mxu0 0
  %6011 = vmatpush2.bf16.msra.mxu0 0
  %6012 = vmatprep.subr.bf16.mxu0 0
  %6013 = vmatpush2.bf16.msra.mxu0 0
  %6014 = vmatprep.subr.bf16.mxu0 0
  %6015 = vmatpush2.bf16.msra.mxu0 0
  %6016 = vmatprep.mubr.bf16.mxu0 0
  %6017 = vmatmul.mubr.bf16.gmra.mxu0 %v5885
  %v6018 = vpop.f32.mrf.mxu0
  %v6019 = vadd.f32 %v5706, %v6018
  %v6020 = vpop.f32.mrf.mxu0
  %v6021 = vpop.f32.mrf.mxu0
  %v6022 = vadd.f32 %v5706, %v6021
  %v6023 = vpop.f32.mrf.mxu0
  %6024 = vmatprep.mubr.bf16.mxu0 0
  %6025 = vmatmul.mubr.bf16.gmra.mxu0 %v5888
  %v6026 = vpop.f32.mrf.mxu0
  %v6027 = vadd.f32 %v5706, %v6026
  %v6028 = vpop.f32.mrf.mxu0
  %v6029 = vpop.f32.mrf.mxu0
  %v6030 = vadd.f32 %v5706, %v6029
  %v6031 = vpop.f32.mrf.mxu0
  %6032 = vmatprep.mubr.bf16.mxu0 0
  %6033 = vmatmul.mubr.bf16.gmra.mxu0 %v5891
  %v6034 = vpop.f32.mrf.mxu0
  %v6035 = vadd.f32 %v5706, %v6034
  %v6036 = vpop.f32.mrf.mxu0
  %v6037 = vpop.f32.mrf.mxu0
  %v6038 = vadd.f32 %v5706, %v6037
  %v6039 = vpop.f32.mrf.mxu0
  %6040 = vmatprep.mubr.bf16.mxu0 0
  %6041 = vmatmul.mubr.bf16.gmra.mxu0 %v5894
  %v6042 = vpop.f32.mrf.mxu0
  %v6043 = vadd.f32 %v5706, %v6042
  %v6044 = vpop.f32.mrf.mxu0
  %v6045 = vpop.f32.mrf.mxu0
  %v6046 = vadd.f32 %v5706, %v6045
  %v6047 = vpop.f32.mrf.mxu0
  %6048 = vmatprep.mubr.bf16.mxu0 0
  %6049 = vmatmul.mubr.bf16.gmra.mxu0 %v5897
  %v6050 = vpop.f32.mrf.mxu0
  %v6051 = vadd.f32 %v5706, %v6050
  %v6052 = vpop.f32.mrf.mxu0
  %v6053 = vpop.f32.mrf.mxu0
  %v6054 = vadd.f32 %v5706, %v6053
  %v6055 = vpop.f32.mrf.mxu0
  %6056 = vmatprep.mubr.bf16.mxu0 0
  %6057 = vmatmul.mubr.bf16.gmra.mxu0 %v5900
  %v6058 = vpop.f32.mrf.mxu0
  %v6059 = vadd.f32 %v5706, %v6058
  %v6060 = vpop.f32.mrf.mxu0
  %v6061 = vpop.f32.mrf.mxu0
  %v6062 = vadd.f32 %v5706, %v6061
  %v6063 = vpop.f32.mrf.mxu0
  %6064 = vmatprep.mubr.bf16.mxu0 0
  %6065 = vmatmul.mubr.bf16.gmra.mxu0 %v5903
  %v6066 = vpop.f32.mrf.mxu0
  %v6067 = vadd.f32 %v5706, %v6066
  %v6068 = vpop.f32.mrf.mxu0
  %v6069 = vpop.f32.mrf.mxu0
  %v6070 = vadd.f32 %v5706, %v6069
  %v6071 = vpop.f32.mrf.mxu0
  %6072 = vmatprep.mubr.bf16.mxu0 0
  %6073 = vmatmul.mubr.bf16.gmra.mxu0 %v5906
  %v6074 = vpop.f32.mrf.mxu0
  %v6075 = vadd.f32 %v5706, %v6074
  %v6076 = vpop.f32.mrf.mxu0
  %v6077 = vpop.f32.mrf.mxu0
  %v6078 = vadd.f32 %v5706, %v6077
  %v6079 = vpop.f32.mrf.mxu0
  %6080 = vmatprep.mubr.bf16.mxu0 0
  %6081 = vmatmul.mubr.bf16.gmra.mxu0 %v5909
  %v6082 = vpop.f32.mrf.mxu0
  %v6083 = vadd.f32 %v5706, %v6082
  %v6084 = vpop.f32.mrf.mxu0
  %v6085 = vpop.f32.mrf.mxu0
  %v6086 = vadd.f32 %v5706, %v6085
  %v6087 = vpop.f32.mrf.mxu0
  %6088 = vmatprep.mubr.bf16.mxu0 0
  %6089 = vmatmul.mubr.bf16.gmra.mxu0 %v5912
  %v6090 = vpop.f32.mrf.mxu0
  %v6091 = vadd.f32 %v5706, %v6090
  %v6092 = vpop.f32.mrf.mxu0
  %v6093 = vpop.f32.mrf.mxu0
  %v6094 = vadd.f32 %v5706, %v6093
  %v6095 = vpop.f32.mrf.mxu0
  %6096 = vmatprep.mubr.bf16.mxu0 0
  %6097 = vmatmul.mubr.bf16.gmra.mxu0 %v5915
  %v6098 = vpop.f32.mrf.mxu0
  %v6099 = vadd.f32 %v5706, %v6098
  %v6100 = vpop.f32.mrf.mxu0
  %v6101 = vpop.f32.mrf.mxu0
  %v6102 = vadd.f32 %v5706, %v6101
  %v6103 = vpop.f32.mrf.mxu0
  %6104 = vmatprep.mubr.bf16.mxu0 0
  %6105 = vmatmul.mubr.bf16.gmra.mxu0 %v5918
  %v6106 = vpop.f32.mrf.mxu0
  %v6107 = vadd.f32 %v5706, %v6106
  %v6108 = vpop.f32.mrf.mxu0
  %v6109 = vpop.f32.mrf.mxu0
  %v6110 = vadd.f32 %v5706, %v6109
  %v6111 = vpop.f32.mrf.mxu0
  %6112 = vmatprep.mubr.bf16.mxu0 0
  %6113 = vmatmul.mubr.bf16.gmra.mxu0 %v5921
  %v6114 = vpop.f32.mrf.mxu0
  %v6115 = vadd.f32 %v5706, %v6114
  %v6116 = vpop.f32.mrf.mxu0
  %v6117 = vpop.f32.mrf.mxu0
  %v6118 = vadd.f32 %v5706, %v6117
  %v6119 = vpop.f32.mrf.mxu0
  %6120 = vmatprep.mubr.bf16.mxu0 0
  %6121 = vmatmul.mubr.bf16.gmra.mxu0 %v5924
  %v6122 = vpop.f32.mrf.mxu0
  %v6123 = vadd.f32 %v5706, %v6122
  %v6124 = vpop.f32.mrf.mxu0
  %v6125 = vpop.f32.mrf.mxu0
  %v6126 = vadd.f32 %v5706, %v6125
  %v6127 = vpop.f32.mrf.mxu0
  %6128 = vmatprep.mubr.bf16.mxu0 0
  %6129 = vmatmul.mubr.bf16.gmra.mxu0 %v5927
  %v6130 = vpop.f32.mrf.mxu0
  %v6131 = vadd.f32 %v5706, %v6130
  %v6132 = vpop.f32.mrf.mxu0
  %v6133 = vpop.f32.mrf.mxu0
  %v6134 = vadd.f32 %v5706, %v6133
  %v6135 = vpop.f32.mrf.mxu0
  %6136 = vmatprep.mubr.bf16.mxu0 0
  %6137 = vmatmul.mubr.bf16.gmra.mxu0 %v5930
  %v6138 = vpop.f32.mrf.mxu0
  %v6139 = vadd.f32 %v5706, %v6138
  %v6140 = vpop.f32.mrf.mxu0
  %v6141 = vpop.f32.mrf.mxu0
  %v6142 = vadd.f32 %v5706, %v6141
  %v6143 = vpop.f32.mrf.mxu0
  %6144 = vmatprep.mubr.bf16.mxu0 0
  %6145 = vmatmul.mubr.bf16.gmra.mxu0 %v5933
  %v6146 = vpop.f32.mrf.mxu0
  %v6147 = vadd.f32 %v5706, %v6146
  %v6148 = vpop.f32.mrf.mxu0
  %v6149 = vpop.f32.mrf.mxu0
  %v6150 = vadd.f32 %v5706, %v6149
  %v6151 = vpop.f32.mrf.mxu0
  %6152 = vmatprep.mubr.bf16.mxu0 0
  %6153 = vmatmul.mubr.bf16.gmra.mxu0 %v5936
  %v6154 = vpop.f32.mrf.mxu0
  %v6155 = vadd.f32 %v5706, %v6154
  %v6156 = vpop.f32.mrf.mxu0
  %v6157 = vpop.f32.mrf.mxu0
  %v6158 = vadd.f32 %v5706, %v6157
  %v6159 = vpop.f32.mrf.mxu0
  %6160 = vmatprep.mubr.bf16.mxu0 0
  %6161 = vmatmul.mubr.bf16.gmra.mxu0 %v5939
  %v6162 = vpop.f32.mrf.mxu0
  %v6163 = vadd.f32 %v5706, %v6162
  %v6164 = vpop.f32.mrf.mxu0
  %v6165 = vpop.f32.mrf.mxu0
  %v6166 = vadd.f32 %v5706, %v6165
  %v6167 = vpop.f32.mrf.mxu0
  %6168 = vmatprep.mubr.bf16.mxu0 0
  %6169 = vmatmul.mubr.bf16.gmra.mxu0 %v5942
  %v6170 = vpop.f32.mrf.mxu0
  %v6171 = vadd.f32 %v5706, %v6170
  %v6172 = vpop.f32.mrf.mxu0
  %v6173 = vpop.f32.mrf.mxu0
  %v6174 = vadd.f32 %v5706, %v6173
  %v6175 = vpop.f32.mrf.mxu0
  %6176 = vmatprep.mubr.bf16.mxu0 0
  %6177 = vmatmul.mubr.bf16.gmra.mxu0 %v5945
  %v6178 = vpop.f32.mrf.mxu0
  %v6179 = vadd.f32 %v5706, %v6178
  %v6180 = vpop.f32.mrf.mxu0
  %v6181 = vpop.f32.mrf.mxu0
  %v6182 = vadd.f32 %v5706, %v6181
  %v6183 = vpop.f32.mrf.mxu0
  %6184 = vmatprep.mubr.bf16.mxu0 0
  %6185 = vmatmul.mubr.bf16.gmra.mxu0 %v5948
  %v6186 = vpop.f32.mrf.mxu0
  %v6187 = vadd.f32 %v5706, %v6186
  %v6188 = vpop.f32.mrf.mxu0
  %v6189 = vpop.f32.mrf.mxu0
  %v6190 = vadd.f32 %v5706, %v6189
  %v6191 = vpop.f32.mrf.mxu0
  %6192 = vmatprep.mubr.bf16.mxu0 0
  %6193 = vmatmul.mubr.bf16.gmra.mxu0 %v5951
  %v6194 = vpop.f32.mrf.mxu0
  %v6195 = vadd.f32 %v5706, %v6194
  %v6196 = vpop.f32.mrf.mxu0
  %v6197 = vpop.f32.mrf.mxu0
  %v6198 = vadd.f32 %v5706, %v6197
  %v6199 = vpop.f32.mrf.mxu0
  %6200 = vmatprep.mubr.bf16.mxu0 0
  %6201 = vmatmul.mubr.bf16.gmra.mxu0 %v5954
  %v6202 = vpop.f32.mrf.mxu0
  %v6203 = vadd.f32 %v5706, %v6202
  %v6204 = vpop.f32.mrf.mxu0
  %v6205 = vpop.f32.mrf.mxu0
  %v6206 = vadd.f32 %v5706, %v6205
  %v6207 = vpop.f32.mrf.mxu0
  %6208 = vmatprep.mubr.bf16.mxu0 0
  %6209 = vmatmul.mubr.bf16.gmra.mxu0 %v5957
  %v6210 = vpop.f32.mrf.mxu0
  %v6211 = vadd.f32 %v5706, %v6210
  %v6212 = vpop.f32.mrf.mxu0
  %v6213 = vpop.f32.mrf.mxu0
  %v6214 = vadd.f32 %v5706, %v6213
  %v6215 = vpop.f32.mrf.mxu0
  %6216 = vmatprep.mubr.bf16.mxu0 0
  %6217 = vmatmul.mubr.bf16.gmra.mxu0 %v5960
  %v6218 = vpop.f32.mrf.mxu0
  %v6219 = vadd.f32 %v5706, %v6218
  %v6220 = vpop.f32.mrf.mxu0
  %v6221 = vpop.f32.mrf.mxu0
  %v6222 = vadd.f32 %v5706, %v6221
  %v6223 = vpop.f32.mrf.mxu0
  %6224 = vmatprep.mubr.bf16.mxu0 0
  %6225 = vmatmul.mubr.bf16.gmra.mxu0 %v5963
  %v6226 = vpop.f32.mrf.mxu0
  %v6227 = vadd.f32 %v5706, %v6226
  %v6228 = vpop.f32.mrf.mxu0
  %v6229 = vpop.f32.mrf.mxu0
  %v6230 = vadd.f32 %v5706, %v6229
  %v6231 = vpop.f32.mrf.mxu0
  %6232 = vmatprep.mubr.bf16.mxu0 0
  %6233 = vmatmul.mubr.bf16.gmra.mxu0 %v5966
  %v6234 = vpop.f32.mrf.mxu0
  %v6235 = vadd.f32 %v5706, %v6234
  %v6236 = vpop.f32.mrf.mxu0
  %v6237 = vpop.f32.mrf.mxu0
  %v6238 = vadd.f32 %v5706, %v6237
  %v6239 = vpop.f32.mrf.mxu0
  %6240 = vmatprep.mubr.bf16.mxu0 0
  %6241 = vmatmul.mubr.bf16.gmra.mxu0 %v5969
  %v6242 = vpop.f32.mrf.mxu0
  %v6243 = vadd.f32 %v5706, %v6242
  %v6244 = vpop.f32.mrf.mxu0
  %v6245 = vpop.f32.mrf.mxu0
  %v6246 = vadd.f32 %v5706, %v6245
  %v6247 = vpop.f32.mrf.mxu0
  %6248 = vmatprep.mubr.bf16.mxu0 0
  %6249 = vmatmul.mubr.bf16.gmra.mxu0 %v5972
  %v6250 = vpop.f32.mrf.mxu0
  %v6251 = vadd.f32 %v5706, %v6250
  %v6252 = vpop.f32.mrf.mxu0
  %v6253 = vpop.f32.mrf.mxu0
  %v6254 = vadd.f32 %v5706, %v6253
  %v6255 = vpop.f32.mrf.mxu0
  %6256 = vmatprep.mubr.bf16.mxu0 0
  %6257 = vmatmul.mubr.bf16.gmra.mxu0 %v5975
  %v6258 = vpop.f32.mrf.mxu0
  %v6259 = vadd.f32 %v5706, %v6258
  %v6260 = vpop.f32.mrf.mxu0
  %v6261 = vpop.f32.mrf.mxu0
  %v6262 = vadd.f32 %v5706, %v6261
  %v6263 = vpop.f32.mrf.mxu0
  %6264 = vmatprep.mubr.bf16.mxu0 0
  %6265 = vmatmul.mubr.bf16.gmra.mxu0 %v5978
  %v6266 = vpop.f32.mrf.mxu0
  %v6267 = vadd.f32 %v5706, %v6266
  %v6268 = vpop.f32.mrf.mxu0
  %v6269 = vpop.f32.mrf.mxu0
  %v6270 = vadd.f32 %v5706, %v6269
  %v6271 = vpop.f32.mrf.mxu0
  %6272 = vdwg.mxu0
  %v6273 = vmax.f32 %v6019, 0.0
  %v6274 = vmax.f32 %v6022, 0.0
  %v6275 = vmax.f32 %v6027, 0.0
  %v6276 = vmax.f32 %v6030, 0.0
  %v6277 = vmax.f32 %v6035, 0.0
  %v6278 = vmax.f32 %v6038, 0.0
  %v6279 = vmax.f32 %v6043, 0.0
  %v6280 = vmax.f32 %v6046, 0.0
  %v6281 = vmax.f32 %v6051, 0.0
  %v6282 = vmax.f32 %v6054, 0.0
  %v6283 = vmax.f32 %v6059, 0.0
  %v6284 = vmax.f32 %v6062, 0.0
  %v6285 = vmax.f32 %v6067, 0.0
  %v6286 = vmax.f32 %v6070, 0.0
  %v6287 = vmax.f32 %v6075, 0.0
  %v6288 = vmax.f32 %v6078, 0.0
  %v6289 = vmax.f32 %v6083, 0.0
  %v6290 = vmax.f32 %v6086, 0.0
  %v6291 = vmax.f32 %v6091, 0.0
  %v6292 = vmax.f32 %v6094, 0.0
  %v6293 = vmax.f32 %v6099, 0.0
  %v6294 = vmax.f32 %v6102, 0.0
  %v6295 = vmax.f32 %v6107, 0.0
  %v6296 = vmax.f32 %v6110, 0.0
  %v6297 = vmax.f32 %v6115, 0.0
  %v6298 = vmax.f32 %v6118, 0.0
  %v6299 = vmax.f32 %v6123, 0.0
  %v6300 = vmax.f32 %v6126, 0.0
  %v6301 = vmax.f32 %v6131, 0.0
  %v6302 = vmax.f32 %v6134, 0.0
  %v6303 = vmax.f32 %v6139, 0.0
  %v6304 = vmax.f32 %v6142, 0.0
  %v6305 = vmax.f32 %v6147, 0.0
  %v6306 = vmax.f32 %v6150, 0.0
  %v6307 = vmax.f32 %v6155, 0.0
  %v6308 = vmax.f32 %v6158, 0.0
  %v6309 = vmax.f32 %v6163, 0.0
  %v6310 = vmax.f32 %v6166, 0.0
  %v6311 = vmax.f32 %v6171, 0.0
  %v6312 = vmax.f32 %v6174, 0.0
  %v6313 = vmax.f32 %v6179, 0.0
  %v6314 = vmax.f32 %v6182, 0.0
  %v6315 = vmax.f32 %v6187, 0.0
  %v6316 = vmax.f32 %v6190, 0.0
  %v6317 = vmax.f32 %v6195, 0.0
  %v6318 = vmax.f32 %v6198, 0.0
  %v6319 = vmax.f32 %v6203, 0.0
  %v6320 = vmax.f32 %v6206, 0.0
  %v6321 = vmax.f32 %v6211, 0.0
  %v6322 = vmax.f32 %v6214, 0.0
  %v6323 = vmax.f32 %v6219, 0.0
  %v6324 = vmax.f32 %v6222, 0.0
  %v6325 = vmax.f32 %v6227, 0.0
  %v6326 = vmax.f32 %v6230, 0.0
  %v6327 = vmax.f32 %v6235, 0.0
  %v6328 = vmax.f32 %v6238, 0.0
  %v6329 = vmax.f32 %v6243, 0.0
  %v6330 = vmax.f32 %v6246, 0.0
  %v6331 = vmax.f32 %v6251, 0.0
  %v6332 = vmax.f32 %v6254, 0.0
  %v6333 = vmax.f32 %v6259, 0.0
  %v6334 = vmax.f32 %v6262, 0.0
  %v6335 = vmax.f32 %v6267, 0.0
  %v6336 = vmax.f32 %v6270, 0.0
  %6337 = vst [vmem:[%s4] sm:$0xff] %v6273
  %6338 = vst [vmem:[%s4 + $0x8] sm:$0xff] %v6274
  %6339 = vst [vmem:[%s4 + $0x10] sm:$0xff] %v6275
  %6340 = vst [vmem:[%s4 + $0x18] sm:$0xff] %v6276
  %6341 = vst [vmem:[%s4 + $0x20] sm:$0xff] %v6277
  %6342 = vst [vmem:[%s4 + $0x28] sm:$0xff] %v6278
  %6343 = vst [vmem:[%s4 + $0x30] sm:$0xff] %v6279
  %6344 = vst [vmem:[%s4 + $0x38] sm:$0xff] %v6280
  %6345 = vst [vmem:[%s4 + $0x40] sm:$0xff] %v6281
  %6346 = vst [vmem:[%s4 + $0x48] sm:$0xff] %v6282
  %6347 = vst [vmem:[%s4 + $0x50] sm:$0xff] %v6283
  %6348 = vst [vmem:[%s4 + $0x58] sm:$0xff] %v6284
  %6349 = vst [vmem:[%s4 + $0x60] sm:$0xff] %v6285
  %6350 = vst [vmem:[%s4 + $0x68] sm:$0xff] %v6286
  %6351 = vst [vmem:[%s4 + $0x70] sm:$0xff] %v6287
  %6352 = vst [vmem:[%s4 + $0x78] sm:$0xff] %v6288
  %6353 = vst [vmem:[%s4 + $0x80] sm:$0xff] %v6289
  %6354 = vst [vmem:[%s4 + $0x88] sm:$0xff] %v6290
  %6355 = vst [vmem:[%s4 + $0x90] sm:$0xff] %v6291
  %6356 = vst [vmem:[%s4 + $0x98] sm:$0xff] %v6292
  %6357 = vst [vmem:[%s4 + $0xa0] sm:$0xff] %v6293
  %6358 = vst [vmem:[%s4 + $0xa8] sm:$0xff] %v6294
  %6359 = vst [vmem:[%s4 + $0xb0] sm:$0xff] %v6295
  %6360 = vst [vmem:[%s4 + $0xb8] sm:$0xff] %v6296
  %6361 = vst [vmem:[%s4 + $0xc0] sm:$0xff] %v6297
  %6362 = vst [vmem:[%s4 + $0xc8] sm:$0xff] %v6298
  %6363 = vst [vmem:[%s4 + $0xd0] sm:$0xff] %v6299
  %6364 = vst [vmem:[%s4 + $0xd8] sm:$0xff] %v6300
  %6365 = vst [vmem:[%s4 + $0xe0] sm:$0xff] %v6301
  %6366 = vst [vmem:[%s4 + $0xe8] sm:$0xff] %v6302
  %6367 = vst [vmem:[%s4 + $0xf0] sm:$0xff] %v6303
  %6368 = vst [vmem:[%s4 + $0xf8] sm:$0xff] %v6304
  %6369 = vst [vmem:[%s4 + $0x100] sm:$0xff] %v6305
  %6370 = vst [vmem:[%s4 + $0x108] sm:$0xff] %v6306
  %6371 = vst [vmem:[%s4 + $0x110] sm:$0xff] %v6307
  %6372 = vst [vmem:[%s4 + $0x118] sm:$0xff] %v6308
  %6373 = vst [vmem:[%s4 + $0x120] sm:$0xff] %v6309
  %6374 = vst [vmem:[%s4 + $0x128] sm:$0xff] %v6310
  %6375 = vst [vmem:[%s4 + $0x130] sm:$0xff] %v6311
  %6376 = vst [vmem:[%s4 + $0x138] sm:$0xff] %v6312
  %6377 = vst [vmem:[%s4 + $0x140] sm:$0xff] %v6313
  %6378 = vst [vmem:[%s4 + $0x148] sm:$0xff] %v6314
  %6379 = vst [vmem:[%s4 + $0x150] sm:$0xff] %v6315
  %6380 = vst [vmem:[%s4 + $0x158] sm:$0xff] %v6316
  %6381 = vst [vmem:[%s4 + $0x160] sm:$0xff] %v6317
  %6382 = vst [vmem:[%s4 + $0x168] sm:$0xff] %v6318
  %6383 = vst [vmem:[%s4 + $0x170] sm:$0xff] %v6319
  %6384 = vst [vmem:[%s4 + $0x178] sm:$0xff] %v6320
  %6385 = vst [vmem:[%s4 + $0x180] sm:$0xff] %v6321
  %6386 = vst [vmem:[%s4 + $0x188] sm:$0xff] %v6322
  %6387 = vst [vmem:[%s4 + $0x190] sm:$0xff] %v6323
  %6388 = vst [vmem:[%s4 + $0x198] sm:$0xff] %v6324
  %6389 = vst [vmem:[%s4 + $0x1a0] sm:$0xff] %v6325
  %6390 = vst [vmem:[%s4 + $0x1a8] sm:$0xff] %v6326
  %6391 = vst [vmem:[%s4 + $0x1b0] sm:$0xff] %v6327
  %6392 = vst [vmem:[%s4 + $0x1b8] sm:$0xff] %v6328
  %6393 = vst [vmem:[%s4 + $0x1c0] sm:$0xff] %v6329
  %6394 = vst [vmem:[%s4 + $0x1c8] sm:$0xff] %v6330
  %6395 = vst [vmem:[%s4 + $0x1d0] sm:$0xff] %v6331
  %6396 = vst [vmem:[%s4 + $0x1d8] sm:$0xff] %v6332
  %6397 = vst [vmem:[%s4 + $0x1e0] sm:$0xff] %v6333
  %6398 = vst [vmem:[%s4 + $0x1e8] sm:$0xff] %v6334
  %6399 = vst [vmem:[%s4 + $0x1f0] sm:$0xff] %v6335
  %6400 = vst [vmem:[%s4 + $0x1f8] sm:$0xff] %v6336
  // Predicated region
  $region18: #{a_call__.1} parent=0 // pred_check
    _
  $region19: #{a_call__.1} parent=0 // pred_check_branch
    %6402 = sbr.rel (0) target = $region21
  $region20: #{a_call__.1} parent=0 // pred_region
    _
  $region21: #{a_call__.1} parent=0 // pred_fallthru
    _
  // Predicated region
  $region22: #{a_call__.1} parent=0 // pred_check
    _
  $region23: #{a_call__.1} parent=0 // pred_check_branch
    %6404 = sbr.rel (0) target = $region25
  $region24: #{a_call__.1} parent=0 // pred_region
    _
  $region25: #{a_call__.1} parent=0 // pred_fallthru
    _

</llo_original>
